<compile_context>
chip_gen: v5e
topology: v5e:2x2
jax: 0.10.0
libtpu: 0.0.40
codegen_flags: <defaults>
</compile_context>

<pallas_src>
import jax
import jax.numpy as jnp
from jax import lax
from jax.experimental import pallas as pl
from jax.experimental.pallas import tpu as pltpu

# ---- hyperparameters (mirror _ATTR_NETWORK.__init__ / args) -----------------
VOCAB_SIZE = 50
USER_NUM = 10
ITEM_NUM = 10
ATTR_EMB = 32          # attr_emb_size == transformer d_model
USER_EMB = 16
ITEM_EMB = 16          # item embedding exists but is unused in forward
NHEAD = 4              # attn_head_num
HEAD_DIM = ATTR_EMB // NHEAD
NLAYERS = 2            # attn_layer_num
FFN_DIM = 2048         # TransformerEncoderLayer default dim_feedforward
OUT_HIDDEN = 64        # output_hidden_size
LN_EPS = 1e-5

B = 4
S = 8


def _ffn_bf16_ok():
    # bf16 VALU exists on v6e/v7x; keep f32 elementwise on v5e and older.
    try:
        kind = jax.devices()[0].device_kind.lower()
    except Exception:
        return False
    return any(t in kind for t in ("v6", "v7", "7x"))


FFN_BF16 = _ffn_bf16_ok()


def _layernorm(x, w, b):
    mean = jnp.mean(x, axis=-1, keepdims=True)
    var = jnp.mean((x - mean) ** 2, axis=-1, keepdims=True)
    return (x - mean) * lax.rsqrt(var + LN_EPS) * w + b


# ---------------------------- Pallas kernel ----------------------------------
def _make_kernel(bpb, seq, ffn_bf16):
    """Build a kernel processing one tile of `bpb` whole batches (bpb*seq rows)."""

    def kernel(
        lens_ref,                                   # scalar-prefetch (SMEM), (B,) i32
        x_ref, tf_ref, user_ref, scal_ref,
        wqkv_ref, bqkv_ref, wo_ref, bo_ref,
        w1_ref, b1_ref, w2_ref, b2_ref,
        ln1w_ref, ln1b_ref, ln2w_ref, ln2b_ref,
        wa_ref, ba_ref, wu_ref, bu_ref,
        o_ref,
    ):
        f32 = jnp.float32
        bf16 = jnp.bfloat16
        tm = bpb * seq                              # rows in this tile
        e = x_ref.shape[-1]                         # model dim
        scale = 1.0 / (HEAD_DIM ** 0.5)
        b0 = pl.program_id(0) * bpb                 # first global batch of this tile

        x = x_ref[0]                                # (TM, E) f32

        # --- head-band column masks (bf16 0/1), built once per tile, no HBM ---
        col_e = lax.broadcasted_iota(jnp.int32, (1, e), 1)
        hmask = [
            ((col_e >= h * HEAD_DIM) & (col_e < (h + 1) * HEAD_DIM)).astype(bf16)
            for h in range(NHEAD)
        ]

        # --- block-diagonal + key-padding additive bias, built from lens (SMEM) ---
        rows = lax.broadcasted_iota(jnp.int32, (tm, tm), 0)
        cols = lax.broadcasted_iota(jnp.int32, (tm, tm), 1)
        allowed = None
        for j in range(bpb):
            lj = lens_ref[b0 + j]
            row_in = (rows >= j * seq) & (rows < (j + 1) * seq)
            col_ok = (cols >= j * seq) & (cols < j * seq + lj)
            term = row_in & col_ok
            allowed = term if allowed is None else (allowed | term)
        bias = jnp.where(allowed, 0.0, -1e30).astype(f32)          # (TM, TM)
        bias_h = jnp.concatenate([bias] * NHEAD, axis=0)           # (NHEAD*TM, TM)

        for l in range(NLAYERS):
            xb = x.astype(bf16)

            # fused QKV projection: one (TM, E) @ (E, 3E) matmul
            qkv = jnp.dot(xb, wqkv_ref[l], preferred_element_type=f32) + bqkv_ref[l]
            q = qkv[:, 0:e].astype(bf16)
            k = qkv[:, e:2 * e].astype(bf16)
            v = qkv[:, 2 * e:3 * e].astype(bf16)

            # Stack head-masked queries along rows: row (h*TM + m) carries q[m]
            # restricted to head-h feature columns, so a single contraction with
            # the full K reproduces per-head scores (off-head dims contribute 0).
            q_stack = jnp.concatenate([q * hmask[h] for h in range(NHEAD)],
                                      axis=0)                       # (NHEAD*TM, E) bf16

            scores = lax.dot_general(q_stack, k, (((1,), (1,)), ((), ())),
                                     preferred_element_type=f32) * scale + bias_h
            scores = scores - jnp.max(scores, axis=-1, keepdims=True)
            p = jnp.exp(scores)                                     # (NHEAD*TM, TM) f32
            p = p * pl.reciprocal(jnp.sum(p, axis=-1, keepdims=True), approx=True)

            # one PV matmul for all heads; head h keeps only its column band
            ctx = jnp.dot(p.astype(bf16), v, preferred_element_type=f32)  # (NHEAD*TM, E)
            attn = ctx[0:tm] * hmask[0]
            for h in range(1, NHEAD):
                attn = attn + ctx[h * tm:(h + 1) * tm] * hmask[h]         # (TM, E) f32

            attn = jnp.dot(attn.astype(bf16), wo_ref[l],
                           preferred_element_type=f32) + bo_ref[l]
            x = _layernorm(x + attn, ln1w_ref[l], ln1b_ref[l])

            # ---- feed-forward (relu) ----
            h1_pre = jnp.dot(x.astype(bf16), w1_ref[l], preferred_element_type=f32)
            if ffn_bf16:
                h1 = jnp.maximum(h1_pre.astype(bf16) + b1_ref[l].astype(bf16), 0.0)
            else:
                h1 = jnp.maximum(h1_pre + b1_ref[l], 0.0).astype(bf16)
            h2 = jnp.dot(h1, w2_ref[l], preferred_element_type=f32) + b2_ref[l]
            x = _layernorm(x + h2, ln2w_ref[l], ln2b_ref[l])

        # ---- output head ----
        attr_h = jnp.dot(x.astype(bf16), wa_ref[...],
                         preferred_element_type=f32) + ba_ref[...]        # (TM, H)
        # user_linear at batch granularity: (BPB, U) @ (U, H)
        user_h = jnp.dot(user_ref[0].astype(bf16), wu_ref[...],
                         preferred_element_type=f32) + bu_ref[...]        # (BPB, H)

        # per-row dot attr_h[m] . user_h[batch(m)], produced lane-dense:
        # C[j, m] = user_h[j] . attr_h[m]  (tiny f32 matmul), mask each batch
        # row j to its lane band, reduce over sublanes -> (1, TM) row.
        c = lax.dot_general(user_h, attr_h, (((1,), (1,)), ((), ())),
                            preferred_element_type=f32)                   # (BPB, TM)
        jrow = lax.broadcasted_iota(jnp.int32, (bpb, tm), 0)
        mcol = lax.broadcasted_iota(jnp.int32, (bpb, tm), 1)
        sel = (mcol >= jrow * seq) & (mcol < (jrow + 1) * seq)
        uw_row = jnp.sum(jnp.where(sel, c, 0.0), axis=0, keepdims=True)   # (1, TM)

        tf_row = tf_ref[0]                                                # (1, TM)
        w_u = scal_ref[0]
        b_u = scal_ref[1]
        w_i = scal_ref[2]
        b_i = scal_ref[3]
        o_ref[0] = (w_u * uw_row + b_u) + (w_i * tf_row + b_i)            # lane-dense

    return kernel


def _choose_bpb(batch, seq, target_rows=256):
    # Group whole batches into one tile; prefer >= 2 tiles (v7x has 2 TensorCores)
    # while keeping tiles at <= ~target_rows rows so scores stay per-tile in VMEM.
    best = 1
    for cand in range(1, batch + 1):
        if cand * seq > target_rows:
            break
        if batch % cand != 0:
            continue
        if batch // cand >= 2:
            best = cand
    return best


# ------------------------------ wrapper ---------------------------------------
def attr_network_forward(params, attr_input, attr_tf_input, lens, user_ids, item_ids):
    del item_ids  # item embedding / item_linear are unused in the reference forward
    batch, seq = attr_input.shape
    bpb = _choose_bpb(batch, seq)
    g = batch // bpb
    tm = bpb * seq

    # glue (plain JAX): embedding gathers, per-tile reshapes, returned pad mask
    x = params["attr_emb"][attr_input].reshape(g, tm, ATTR_EMB)           # (G, TM, E)
    tf = attr_tf_input.astype(jnp.float32).reshape(g, 1, tm)              # (G, 1, TM)
    user = params["user_emb"][user_ids].reshape(g, bpb, USER_EMB)         # (G, BPB, U)
    lens_i32 = lens.astype(jnp.int32)
    mask = jnp.arange(seq)[None, :] >= lens_i32[:, None]                  # (B, S) True==pad

    weights = [
        params["wqkv"], params["bqkv"], params["wo"], params["bo"],
        params["w1"], params["b1"], params["w2"], params["b2"],
        params["ln1w"], params["ln1b"], params["ln2w"], params["ln2b"],
        params["wa"], params["ba"], params["wu"], params["bu"],
    ]

    def _resident(a):
        # full-array block, constant index map -> stays VMEM-resident across tiles
        nd = a.ndim
        return pl.BlockSpec(a.shape, lambda i, lens_ref, _nd=nd: (0,) * _nd)

    in_specs = [
        pl.BlockSpec((1, tm, ATTR_EMB), lambda i, lens_ref: (i, 0, 0)),   # x tile
        pl.BlockSpec((1, 1, tm), lambda i, lens_ref: (i, 0, 0)),          # tf tile (lane-dense)
        pl.BlockSpec((1, bpb, USER_EMB), lambda i, lens_ref: (i, 0, 0)),  # user tile
        pl.BlockSpec(memory_space=pltpu.MemorySpace.SMEM),                # output-affine scalars
    ] + [_resident(w) for w in weights]

    out_specs = pl.BlockSpec((1, 1, tm), lambda i, lens_ref: (i, 0, 0))   # lane-dense logits

    kernel = _make_kernel(bpb, seq, FFN_BF16)

    out = pl.pallas_call(
        kernel,
        out_shape=jax.ShapeDtypeStruct((g, 1, tm), jnp.float32),
        grid_spec=pltpu.PrefetchScalarGridSpec(
            num_scalar_prefetch=1,            # lens -> SMEM, drives in-kernel bias
            grid=(g,),
            in_specs=in_specs,
            out_specs=out_specs,
        ),
        compiler_params=pltpu.CompilerParams(
            dimension_semantics=("parallel",),
            # re-derive if TM grows: per-tile scores are (NHEAD*TM, TM) f32
            vmem_limit_bytes=32 * 1024 * 1024,
        ),
    )(lens_i32, x, tf, user, params["scalars"], *weights)

    logits = out.reshape(batch, seq)
    return logits, mask


# ------------------------ deterministic parameter init ------------------------
def init_params(key):
    ks = jax.random.split(key, 16)
    bf16 = jnp.bfloat16

    def w(k, shape, scale=0.05, dtype=jnp.float32):
        return (jax.random.normal(k, shape, jnp.float32) * scale).astype(dtype)

    p = {}
    p["attr_emb"] = w(ks[0], (VOCAB_SIZE, ATTR_EMB), 0.1)
    p["user_emb"] = w(ks[1], (USER_NUM, USER_EMB), 0.1)
    p["item_emb"] = w(ks[2], (ITEM_NUM, ITEM_EMB), 0.1)   # unused (mirrors module)
    # transformer parameters, weights in (in, out) layout, matmul weights bf16
    p["wqkv"] = w(ks[3], (NLAYERS, ATTR_EMB, 3 * ATTR_EMB), 0.05, bf16)
    p["bqkv"] = w(ks[4], (NLAYERS, 1, 3 * ATTR_EMB))
    p["wo"] = w(ks[5], (NLAYERS, ATTR_EMB, ATTR_EMB), 0.05, bf16)
    p["bo"] = w(ks[6], (NLAYERS, 1, ATTR_EMB))
    p["w1"] = w(ks[7], (NLAYERS, ATTR_EMB, FFN_DIM), 0.05, bf16)
    p["b1"] = w(ks[8], (NLAYERS, 1, FFN_DIM))
    p["w2"] = w(ks[9], (NLAYERS, FFN_DIM, ATTR_EMB), 0.05, bf16)
    p["b2"] = w(ks[10], (NLAYERS, 1, ATTR_EMB))
    p["ln1w"] = jnp.ones((NLAYERS, 1, ATTR_EMB), jnp.float32)
    p["ln1b"] = jnp.zeros((NLAYERS, 1, ATTR_EMB), jnp.float32)
    p["ln2w"] = jnp.ones((NLAYERS, 1, ATTR_EMB), jnp.float32)
    p["ln2b"] = jnp.zeros((NLAYERS, 1, ATTR_EMB), jnp.float32)
    p["wa"] = w(ks[11], (ATTR_EMB, OUT_HIDDEN), 0.05, bf16)
    p["ba"] = w(ks[12], (1, OUT_HIDDEN))
    p["wu"] = w(ks[13], (USER_EMB, OUT_HIDDEN), 0.05, bf16)
    p["bu"] = w(ks[14], (1, OUT_HIDDEN))
    # [user_output.weight, user_output.bias, item_output.weight, item_output.bias]
    p["scalars"] = jnp.array([0.7, 0.1, 0.28, -0.05], jnp.float32)
    return p


# --------------------------- pure-JAX reference --------------------------------
def reference_forward(p, attr_input, attr_tf_input, lens, user_ids):
    bf16, f32 = jnp.bfloat16, jnp.float32
    x = p["attr_emb"][attr_input]                            # (B, S, E) f32
    seq = attr_input.shape[1]
    mask = jnp.arange(seq)[None, :] >= lens[:, None]
    neg = jnp.where(mask, -1e30, 0.0).astype(f32)[:, None, :]  # (B, 1, S)
    scale = 1.0 / (HEAD_DIM ** 0.5)
    for l in range(NLAYERS):
        qkv = jnp.dot(x.astype(bf16), p["wqkv"][l],
                      preferred_element_type=f32) + p["bqkv"][l]
        q = qkv[..., 0:ATTR_EMB]
        k = qkv[..., ATTR_EMB:2 * ATTR_EMB]
        v = qkv[..., 2 * ATTR_EMB:3 * ATTR_EMB]
        outs = []
        for h in range(NHEAD):
            sl = slice(h * HEAD_DIM, (h + 1) * HEAD_DIM)
            qh = q[..., sl].astype(bf16)
            kh = k[..., sl].astype(bf16)
            vh = v[..., sl].astype(bf16)
            s = jnp.einsum("bqd,bkd->bqk", qh, kh,
                           preferred_element_type=f32) * scale + neg
            s = s - s.max(-1, keepdims=True)
            e = jnp.exp(s)
            pr = e / e.sum(-1, keepdims=True)
            outs.append(jnp.einsum("bqk,bkd->bqd", pr.astype(bf16), vh,
                                   preferred_element_type=f32))
        attn = jnp.concatenate(outs, axis=-1)
        attn = jnp.dot(attn.astype(bf16), p["wo"][l],
                       preferred_element_type=f32) + p["bo"][l]
        x = _layernorm(x + attn, p["ln1w"][l], p["ln1b"][l])
        h1_pre = jnp.dot(x.astype(bf16), p["w1"][l], preferred_element_type=f32)
        if FFN_BF16:
            h1 = jnp.maximum(h1_pre.astype(bf16) + p["b1"][l].astype(bf16), 0.0)
        else:
            h1 = jnp.maximum(h1_pre + p["b1"][l], 0.0).astype(bf16)
        h2 = jnp.dot(h1, p["w2"][l], preferred_element_type=f32) + p["b2"][l]
        x = _layernorm(x + h2, p["ln2w"][l], p["ln2b"][l])
    attr_h = jnp.dot(x.astype(bf16), p["wa"],
                     preferred_element_type=f32) + p["ba"]   # (B, S, H)
    user_h = jnp.dot(p["user_emb"][user_ids].astype(bf16), p["wu"],
                     preferred_element_type=f32) + p["bu"]   # (B, H)
    uw = jnp.einsum("bsh,bh->bs", attr_h, user_h)
    sc = p["scalars"]
    logits = (sc[0] * uw + sc[1]) + (sc[2] * attr_tf_input + sc[3])
    return logits, mask


# --------------------------------- main ----------------------------------------
if __name__ == "__main__":
    key = jax.random.PRNGKey(0)
    pkey, dkey = jax.random.split(key)
    params = init_params(pkey)

    k1, k2, k3, k4 = jax.random.split(dkey, 4)
    attr_input = jax.random.randint(k1, (B, S), 0, VOCAB_SIZE)
    attr_tf_input = jax.random.uniform(k2, (B, S), jnp.float32)
    lens = jnp.array([S, 5, 3, S], dtype=jnp.int32)       # every row has >= 1 valid key
    user_ids = jax.random.randint(k3, (B,), 0, USER_NUM)
    item_ids = jax.random.randint(k4, (B,), 0, ITEM_NUM)  # unused in forward

    logits, mask = attr_network_forward(
        params, attr_input, attr_tf_input, lens, user_ids, item_ids)
    jax.block_until_ready(logits)

    ref_logits, ref_mask = reference_forward(
        params, attr_input, attr_tf_input, lens, user_ids)
    assert logits.shape == (B, S) and mask.shape == (B, S)
    assert bool(jnp.all(mask == ref_mask))
    # bf16 matmul / FFN path is mirrored in the reference; remaining diff comes
    # from the approximate softmax reciprocal and f32 accumulation order.
    assert bool(jnp.allclose(logits, ref_logits, atol=1e-2, rtol=1e-2)), "mismatch"
    print("KERNEL_OK")
</pallas_src>

<mosaic_0001>
module attributes {stable_mosaic.version = 11 : i64} {
  func.func @kernel(%arg0: i32, %arg1: memref<4xi32, #tpu.memory_space<smem>>, %arg2: memref<1x16x32xf32, #tpu.memory_space<vmem>>, %arg3: memref<1x1x16xf32, #tpu.memory_space<vmem>>, %arg4: memref<1x2x16xf32, #tpu.memory_space<vmem>>, %arg5: memref<4xf32, #tpu.memory_space<smem>>, %arg6: memref<2x32x96xbf16, #tpu.memory_space<vmem>>, %arg7: memref<2x1x96xf32, #tpu.memory_space<vmem>>, %arg8: memref<2x32x32xbf16, #tpu.memory_space<vmem>>, %arg9: memref<2x1x32xf32, #tpu.memory_space<vmem>>, %arg10: memref<2x32x2048xbf16, #tpu.memory_space<vmem>>, %arg11: memref<2x1x2048xf32, #tpu.memory_space<vmem>>, %arg12: memref<2x2048x32xbf16, #tpu.memory_space<vmem>>, %arg13: memref<2x1x32xf32, #tpu.memory_space<vmem>>, %arg14: memref<2x1x32xf32, #tpu.memory_space<vmem>>, %arg15: memref<2x1x32xf32, #tpu.memory_space<vmem>>, %arg16: memref<2x1x32xf32, #tpu.memory_space<vmem>>, %arg17: memref<2x1x32xf32, #tpu.memory_space<vmem>>, %arg18: memref<32x64xbf16, #tpu.memory_space<vmem>>, %arg19: memref<1x64xf32, #tpu.memory_space<vmem>>, %arg20: memref<16x64xbf16, #tpu.memory_space<vmem>>, %arg21: memref<1x64xf32, #tpu.memory_space<vmem>>, %arg22: memref<1x1x16xf32, #tpu.memory_space<vmem>>) attributes {dimension_semantics = [#tpu.dimension_semantics<parallel>], iteration_bounds = array<i64: 2>, scalar_prefetch = 1 : i64, scratch_operands = 0 : i64, tpu.core_type = #tpu.core_type<tc>, window_params = [{transform_indices = @transform_0, window_bounds = array<i64: 1, 16, 32>}, {transform_indices = @transform_1, window_bounds = array<i64: 1, 1, 16>}, {transform_indices = @transform_2, window_bounds = array<i64: 1, 2, 16>}, {transform_indices = @transform_3, window_bounds = array<i64: 4>}, {pipeline_mode = #tpu.pipeline_mode<synchronous>, transform_indices = @transform_4, window_bounds = array<i64: 2, 32, 96>}, {pipeline_mode = #tpu.pipeline_mode<synchronous>, transform_indices = @transform_5, window_bounds = array<i64: 2, 1, 96>}, {pipeline_mode = #tpu.pipeline_mode<synchronous>, transform_indices = @transform_6, window_bounds = array<i64: 2, 32, 32>}, {pipeline_mode = #tpu.pipeline_mode<synchronous>, transform_indices = @transform_7, window_bounds = array<i64: 2, 1, 32>}, {pipeline_mode = #tpu.pipeline_mode<synchronous>, transform_indices = @transform_8, window_bounds = array<i64: 2, 32, 2048>}, {pipeline_mode = #tpu.pipeline_mode<synchronous>, transform_indices = @transform_9, window_bounds = array<i64: 2, 1, 2048>}, {pipeline_mode = #tpu.pipeline_mode<synchronous>, transform_indices = @transform_10, window_bounds = array<i64: 2, 2048, 32>}, {pipeline_mode = #tpu.pipeline_mode<synchronous>, transform_indices = @transform_11, window_bounds = array<i64: 2, 1, 32>}, {pipeline_mode = #tpu.pipeline_mode<synchronous>, transform_indices = @transform_12, window_bounds = array<i64: 2, 1, 32>}, {pipeline_mode = #tpu.pipeline_mode<synchronous>, transform_indices = @transform_13, window_bounds = array<i64: 2, 1, 32>}, {pipeline_mode = #tpu.pipeline_mode<synchronous>, transform_indices = @transform_14, window_bounds = array<i64: 2, 1, 32>}, {pipeline_mode = #tpu.pipeline_mode<synchronous>, transform_indices = @transform_15, window_bounds = array<i64: 2, 1, 32>}, {pipeline_mode = #tpu.pipeline_mode<synchronous>, transform_indices = @transform_16, window_bounds = array<i64: 32, 64>}, {pipeline_mode = #tpu.pipeline_mode<synchronous>, transform_indices = @transform_17, window_bounds = array<i64: 1, 64>}, {pipeline_mode = #tpu.pipeline_mode<synchronous>, transform_indices = @transform_18, window_bounds = array<i64: 16, 64>}, {pipeline_mode = #tpu.pipeline_mode<synchronous>, transform_indices = @transform_19, window_bounds = array<i64: 1, 64>}, {transform_indices = @transform_20, window_bounds = array<i64: 1, 1, 16>}]} {
    %c2_i32 = arith.constant 2 : i32
    %0 = arith.muli %arg0, %c2_i32 : i32
    %c0 = arith.constant 0 : index
    %c0_0 = arith.constant 0 : index
    %c0_1 = arith.constant 0 : index
    %1 = vector.load %arg2[%c0, %c0_0, %c0_1] : memref<1x16x32xf32, #tpu.memory_space<vmem>>, vector<1x16x32xf32>
    %2 = vector.shape_cast %1 : vector<1x16x32xf32> to vector<16x32xf32>
    %3 = tpu.iota {dimensions = array<i32: 1>} : vector<1x32xi32>
    %c0_i32 = arith.constant 0 : i32
    %4 = vector.broadcast %c0_i32 : i32 to vector<1x32xi32>
    %5 = arith.cmpi sge, %3, %4 : vector<1x32xi32>
    %c8_i32 = arith.constant 8 : i32
    %6 = vector.broadcast %c8_i32 : i32 to vector<1x32xi32>
    %7 = arith.cmpi slt, %3, %6 : vector<1x32xi32>
    %8 = arith.andi %5, %7 : vector<1x32xi1>
    %9 = arith.extui %8 : vector<1x32xi1> to vector<1x32xi32>
    %10 = arith.sitofp %9 : vector<1x32xi32> to vector<1x32xf32>
    %11 = arith.truncf %10 : vector<1x32xf32> to vector<1x32xbf16>
    %c8_i32_2 = arith.constant 8 : i32
    %12 = vector.broadcast %c8_i32_2 : i32 to vector<1x32xi32>
    %13 = arith.cmpi sge, %3, %12 : vector<1x32xi32>
    %c16_i32 = arith.constant 16 : i32
    %14 = vector.broadcast %c16_i32 : i32 to vector<1x32xi32>
    %15 = arith.cmpi slt, %3, %14 : vector<1x32xi32>
    %16 = arith.andi %13, %15 : vector<1x32xi1>
    %17 = arith.extui %16 : vector<1x32xi1> to vector<1x32xi32>
    %18 = arith.sitofp %17 : vector<1x32xi32> to vector<1x32xf32>
    %19 = arith.truncf %18 : vector<1x32xf32> to vector<1x32xbf16>
    %c16_i32_3 = arith.constant 16 : i32
    %20 = vector.broadcast %c16_i32_3 : i32 to vector<1x32xi32>
    %21 = arith.cmpi sge, %3, %20 : vector<1x32xi32>
    %c24_i32 = arith.constant 24 : i32
    %22 = vector.broadcast %c24_i32 : i32 to vector<1x32xi32>
    %23 = arith.cmpi slt, %3, %22 : vector<1x32xi32>
    %24 = arith.andi %21, %23 : vector<1x32xi1>
    %25 = arith.extui %24 : vector<1x32xi1> to vector<1x32xi32>
    %26 = arith.sitofp %25 : vector<1x32xi32> to vector<1x32xf32>
    %27 = arith.truncf %26 : vector<1x32xf32> to vector<1x32xbf16>
    %c24_i32_4 = arith.constant 24 : i32
    %28 = vector.broadcast %c24_i32_4 : i32 to vector<1x32xi32>
    %29 = arith.cmpi sge, %3, %28 : vector<1x32xi32>
    %c32_i32 = arith.constant 32 : i32
    %30 = vector.broadcast %c32_i32 : i32 to vector<1x32xi32>
    %31 = arith.cmpi slt, %3, %30 : vector<1x32xi32>
    %32 = arith.andi %29, %31 : vector<1x32xi1>
    %33 = arith.extui %32 : vector<1x32xi1> to vector<1x32xi32>
    %34 = arith.sitofp %33 : vector<1x32xi32> to vector<1x32xf32>
    %35 = arith.truncf %34 : vector<1x32xf32> to vector<1x32xbf16>
    %36 = tpu.iota {dimensions = array<i32: 0>} : vector<16x16xi32>
    %37 = tpu.iota {dimensions = array<i32: 1>} : vector<16x16xi32>
    %c0_i32_5 = arith.constant 0 : i32
    %38 = arith.addi %0, %c0_i32_5 : i32
    %39 = arith.index_cast %38 : i32 to index
    %40 = memref.load %arg1[%39] : memref<4xi32, #tpu.memory_space<smem>>
    %c0_i32_6 = arith.constant 0 : i32
    %41 = vector.broadcast %c0_i32_6 : i32 to vector<16x16xi32>
    %42 = arith.cmpi sge, %36, %41 : vector<16x16xi32>
    %c8_i32_7 = arith.constant 8 : i32
    %43 = vector.broadcast %c8_i32_7 : i32 to vector<16x16xi32>
    %44 = arith.cmpi slt, %36, %43 : vector<16x16xi32>
    %45 = arith.andi %42, %44 : vector<16x16xi1>
    %c0_i32_8 = arith.constant 0 : i32
    %46 = vector.broadcast %c0_i32_8 : i32 to vector<16x16xi32>
    %47 = arith.cmpi sge, %37, %46 : vector<16x16xi32>
    %c0_i32_9 = arith.constant 0 : i32
    %48 = arith.addi %c0_i32_9, %40 : i32
    %49 = vector.broadcast %48 : i32 to vector<16x16xi32>
    %50 = arith.cmpi slt, %37, %49 : vector<16x16xi32>
    %51 = arith.andi %47, %50 : vector<16x16xi1>
    %52 = arith.andi %45, %51 : vector<16x16xi1>
    %c1_i32 = arith.constant 1 : i32
    %53 = arith.addi %0, %c1_i32 : i32
    %54 = arith.index_cast %53 : i32 to index
    %55 = memref.load %arg1[%54] : memref<4xi32, #tpu.memory_space<smem>>
    %c8_i32_10 = arith.constant 8 : i32
    %56 = vector.broadcast %c8_i32_10 : i32 to vector<16x16xi32>
    %57 = arith.cmpi sge, %36, %56 : vector<16x16xi32>
    %c16_i32_11 = arith.constant 16 : i32
    %58 = vector.broadcast %c16_i32_11 : i32 to vector<16x16xi32>
    %59 = arith.cmpi slt, %36, %58 : vector<16x16xi32>
    %60 = arith.andi %57, %59 : vector<16x16xi1>
    %c8_i32_12 = arith.constant 8 : i32
    %61 = vector.broadcast %c8_i32_12 : i32 to vector<16x16xi32>
    %62 = arith.cmpi sge, %37, %61 : vector<16x16xi32>
    %c8_i32_13 = arith.constant 8 : i32
    %63 = arith.addi %c8_i32_13, %55 : i32
    %64 = vector.broadcast %63 : i32 to vector<16x16xi32>
    %65 = arith.cmpi slt, %37, %64 : vector<16x16xi32>
    %66 = arith.andi %62, %65 : vector<16x16xi1>
    %67 = arith.andi %60, %66 : vector<16x16xi1>
    %68 = arith.ori %52, %67 : vector<16x16xi1>
    %cst = arith.constant 0.000000e+00 : f32
    %cst_14 = arith.constant -1.000000e+30 : f32
    %69 = vector.broadcast %cst : f32 to vector<16x16xf32>
    %70 = vector.broadcast %cst_14 : f32 to vector<16x16xf32>
    %71 = arith.select %68, %69, %70 : vector<16x16xi1>, vector<16x16xf32>
    %72 = tpu.concatenate %71, %71, %71, %71 in 0 : vector<16x16xf32>, vector<16x16xf32>, vector<16x16xf32>, vector<16x16xf32> -> vector<64x16xf32>
    %73 = arith.truncf %2 : vector<16x32xf32> to vector<16x32xbf16>
    %c0_15 = arith.constant 0 : index
    %c0_16 = arith.constant 0 : index
    %c0_17 = arith.constant 0 : index
    %74 = vector.load %arg6[%c0_15, %c0_16, %c0_17] : memref<2x32x96xbf16, #tpu.memory_space<vmem>>, vector<1x32x96xbf16>
    %75 = vector.shape_cast %74 : vector<1x32x96xbf16> to vector<32x96xbf16>
    %cst_18 = arith.constant dense<0.000000e+00> : vector<16x96xf32>
    %76 = tpu.matmul %73, %75, %cst_18 {dimension_numbers = #tpu.dot_dimension_numbers<[1], [0], [0], [1], [0, 0, 1, 1], [], []>} : vector<16x32xbf16>, vector<32x96xbf16>, vector<16x96xf32> -> vector<16x96xf32>
    %c0_19 = arith.constant 0 : index
    %c0_20 = arith.constant 0 : index
    %c0_21 = arith.constant 0 : index
    %77 = vector.load %arg7[%c0_19, %c0_20, %c0_21] : memref<2x1x96xf32, #tpu.memory_space<vmem>>, vector<1x1x96xf32>
    %78 = vector.shape_cast %77 : vector<1x1x96xf32> to vector<1x96xf32>
    %79 = vector.broadcast %78 : vector<1x96xf32> to vector<16x96xf32>
    %80 = arith.addf %76, %79 : vector<16x96xf32>
    %81 = vector.extract_strided_slice %80 {offsets = [0, 0], sizes = [16, 32], strides = [1, 1]} : vector<16x96xf32> to vector<16x32xf32>
    %82 = arith.truncf %81 : vector<16x32xf32> to vector<16x32xbf16>
    %83 = vector.extract_strided_slice %80 {offsets = [0, 32], sizes = [16, 32], strides = [1, 1]} : vector<16x96xf32> to vector<16x32xf32>
    %84 = arith.truncf %83 : vector<16x32xf32> to vector<16x32xbf16>
    %85 = vector.extract_strided_slice %80 {offsets = [0, 64], sizes = [16, 32], strides = [1, 1]} : vector<16x96xf32> to vector<16x32xf32>
    %86 = arith.truncf %85 : vector<16x32xf32> to vector<16x32xbf16>
    %87 = vector.broadcast %11 : vector<1x32xbf16> to vector<16x32xbf16>
    %88 = arith.mulf %82, %87 : vector<16x32xbf16>
    %89 = vector.broadcast %19 : vector<1x32xbf16> to vector<16x32xbf16>
    %90 = arith.mulf %82, %89 : vector<16x32xbf16>
    %91 = vector.broadcast %27 : vector<1x32xbf16> to vector<16x32xbf16>
    %92 = arith.mulf %82, %91 : vector<16x32xbf16>
    %93 = vector.broadcast %35 : vector<1x32xbf16> to vector<16x32xbf16>
    %94 = arith.mulf %82, %93 : vector<16x32xbf16>
    %95 = tpu.concatenate %88, %90, %92, %94 in 0 : vector<16x32xbf16>, vector<16x32xbf16>, vector<16x32xbf16>, vector<16x32xbf16> -> vector<64x32xbf16>
    %cst_22 = arith.constant dense<0.000000e+00> : vector<64x16xf32>
    %96 = tpu.matmul %95, %84, %cst_22 {dimension_numbers = #tpu.dot_dimension_numbers<[1], [1], [0], [0], [0, 0, 1, 0], [], []>} : vector<64x32xbf16>, vector<16x32xbf16>, vector<64x16xf32> -> vector<64x16xf32>
    %cst_23 = arith.constant 0.353553385 : f32
    %97 = vector.broadcast %cst_23 : f32 to vector<64x16xf32>
    %98 = arith.mulf %96, %97 : vector<64x16xf32>
    %99 = arith.addf %98, %72 : vector<64x16xf32>
    %cst_24 = arith.constant dense<0xFF800000> : vector<64xf32>
    %100 = vector.multi_reduction <maximumf>, %99, %cst_24 [1] : vector<64x16xf32> to vector<64xf32>
    %101 = vector.shape_cast %100 : vector<64xf32> to vector<64x1xf32>
    %102 = vector.broadcast %101 : vector<64x1xf32> to vector<64x16xf32>
    %103 = arith.subf %99, %102 : vector<64x16xf32>
    %104 = math.exp %103 : vector<64x16xf32>
    %cst_25 = arith.constant dense<0.000000e+00> : vector<64xf32>
    %105 = vector.multi_reduction <add>, %104, %cst_25 [1] : vector<64x16xf32> to vector<64xf32>
    %106 = vector.shape_cast %105 : vector<64xf32> to vector<64x1xf32>
    %107 = tpu.reciprocal %106 {approx = true} : vector<64x1xf32> -> vector<64x1xf32>
    %108 = vector.broadcast %107 : vector<64x1xf32> to vector<64x16xf32>
    %109 = arith.mulf %104, %108 : vector<64x16xf32>
    %110 = arith.truncf %109 : vector<64x16xf32> to vector<64x16xbf16>
    %cst_26 = arith.constant dense<0.000000e+00> : vector<64x32xf32>
    %111 = tpu.matmul %110, %86, %cst_26 {dimension_numbers = #tpu.dot_dimension_numbers<[1], [0], [0], [1], [0, 0, 1, 1], [], []>} : vector<64x16xbf16>, vector<16x32xbf16>, vector<64x32xf32> -> vector<64x32xf32>
    %112 = vector.extract_strided_slice %111 {offsets = [0, 0], sizes = [16, 32], strides = [1, 1]} : vector<64x32xf32> to vector<16x32xf32>
    %113 = arith.extf %11 : vector<1x32xbf16> to vector<1x32xf32>
    %114 = vector.broadcast %113 : vector<1x32xf32> to vector<16x32xf32>
    %115 = arith.mulf %112, %114 : vector<16x32xf32>
    %116 = vector.extract_strided_slice %111 {offsets = [16, 0], sizes = [16, 32], strides = [1, 1]} : vector<64x32xf32> to vector<16x32xf32>
    %117 = arith.extf %19 : vector<1x32xbf16> to vector<1x32xf32>
    %118 = vector.broadcast %117 : vector<1x32xf32> to vector<16x32xf32>
    %119 = arith.mulf %116, %118 : vector<16x32xf32>
    %120 = arith.addf %115, %119 : vector<16x32xf32>
    %121 = vector.extract_strided_slice %111 {offsets = [32, 0], sizes = [16, 32], strides = [1, 1]} : vector<64x32xf32> to vector<16x32xf32>
    %122 = arith.extf %27 : vector<1x32xbf16> to vector<1x32xf32>
    %123 = vector.broadcast %122 : vector<1x32xf32> to vector<16x32xf32>
    %124 = arith.mulf %121, %123 : vector<16x32xf32>
    %125 = arith.addf %120, %124 : vector<16x32xf32>
    %126 = vector.extract_strided_slice %111 {offsets = [48, 0], sizes = [16, 32], strides = [1, 1]} : vector<64x32xf32> to vector<16x32xf32>
    %127 = arith.extf %35 : vector<1x32xbf16> to vector<1x32xf32>
    %128 = vector.broadcast %127 : vector<1x32xf32> to vector<16x32xf32>
    %129 = arith.mulf %126, %128 : vector<16x32xf32>
    %130 = arith.addf %125, %129 : vector<16x32xf32>
    %131 = arith.truncf %130 : vector<16x32xf32> to vector<16x32xbf16>
    %c0_27 = arith.constant 0 : index
    %c0_28 = arith.constant 0 : index
    %c0_29 = arith.constant 0 : index
    %132 = vector.load %arg8[%c0_27, %c0_28, %c0_29] : memref<2x32x32xbf16, #tpu.memory_space<vmem>>, vector<1x32x32xbf16>
    %133 = vector.shape_cast %132 : vector<1x32x32xbf16> to vector<32x32xbf16>
    %cst_30 = arith.constant dense<0.000000e+00> : vector<16x32xf32>
    %134 = tpu.matmul %131, %133, %cst_30 {dimension_numbers = #tpu.dot_dimension_numbers<[1], [0], [0], [1], [0, 0, 1, 1], [], []>} : vector<16x32xbf16>, vector<32x32xbf16>, vector<16x32xf32> -> vector<16x32xf32>
    %c0_31 = arith.constant 0 : index
    %c0_32 = arith.constant 0 : index
    %c0_33 = arith.constant 0 : index
    %135 = vector.load %arg9[%c0_31, %c0_32, %c0_33] : memref<2x1x32xf32, #tpu.memory_space<vmem>>, vector<1x1x32xf32>
    %136 = vector.shape_cast %135 : vector<1x1x32xf32> to vector<1x32xf32>
    %137 = vector.broadcast %136 : vector<1x32xf32> to vector<16x32xf32>
    %138 = arith.addf %134, %137 : vector<16x32xf32>
    %139 = arith.addf %2, %138 : vector<16x32xf32>
    %c0_34 = arith.constant 0 : index
    %c0_35 = arith.constant 0 : index
    %c0_36 = arith.constant 0 : index
    %140 = vector.load %arg14[%c0_34, %c0_35, %c0_36] : memref<2x1x32xf32, #tpu.memory_space<vmem>>, vector<1x1x32xf32>
    %141 = vector.shape_cast %140 : vector<1x1x32xf32> to vector<1x32xf32>
    %c0_37 = arith.constant 0 : index
    %c0_38 = arith.constant 0 : index
    %c0_39 = arith.constant 0 : index
    %142 = vector.load %arg15[%c0_37, %c0_38, %c0_39] : memref<2x1x32xf32, #tpu.memory_space<vmem>>, vector<1x1x32xf32>
    %143 = vector.shape_cast %142 : vector<1x1x32xf32> to vector<1x32xf32>
    %cst_40 = arith.constant dense<0.000000e+00> : vector<16xf32>
    %144 = vector.multi_reduction <add>, %139, %cst_40 [1] : vector<16x32xf32> to vector<16xf32>
    %145 = vector.shape_cast %144 : vector<16xf32> to vector<16x1xf32>
    %cst_41 = arith.constant 3.200000e+01 : f32
    %146 = vector.broadcast %cst_41 : f32 to vector<16x1xf32>
    %147 = arith.divf %145, %146 : vector<16x1xf32>
    %148 = vector.broadcast %147 : vector<16x1xf32> to vector<16x32xf32>
    %149 = arith.subf %139, %148 : vector<16x32xf32>
    %150 = arith.mulf %149, %149 : vector<16x32xf32>
    %cst_42 = arith.constant dense<0.000000e+00> : vector<16xf32>
    %151 = vector.multi_reduction <add>, %150, %cst_42 [1] : vector<16x32xf32> to vector<16xf32>
    %152 = vector.shape_cast %151 : vector<16xf32> to vector<16x1xf32>
    %cst_43 = arith.constant 3.200000e+01 : f32
    %153 = vector.broadcast %cst_43 : f32 to vector<16x1xf32>
    %154 = arith.divf %152, %153 : vector<16x1xf32>
    %155 = vector.broadcast %147 : vector<16x1xf32> to vector<16x32xf32>
    %156 = arith.subf %139, %155 : vector<16x32xf32>
    %cst_44 = arith.constant 9.99999974E-6 : f32
    %157 = vector.broadcast %cst_44 : f32 to vector<16x1xf32>
    %158 = arith.addf %154, %157 : vector<16x1xf32>
    %159 = math.rsqrt %158 : vector<16x1xf32>
    %160 = vector.broadcast %159 : vector<16x1xf32> to vector<16x32xf32>
    %161 = arith.mulf %156, %160 : vector<16x32xf32>
    %162 = vector.broadcast %141 : vector<1x32xf32> to vector<16x32xf32>
    %163 = arith.mulf %161, %162 : vector<16x32xf32>
    %164 = vector.broadcast %143 : vector<1x32xf32> to vector<16x32xf32>
    %165 = arith.addf %163, %164 : vector<16x32xf32>
    %166 = arith.truncf %165 : vector<16x32xf32> to vector<16x32xbf16>
    %c0_45 = arith.constant 0 : index
    %c0_46 = arith.constant 0 : index
    %c0_47 = arith.constant 0 : index
    %167 = vector.load %arg10[%c0_45, %c0_46, %c0_47] : memref<2x32x2048xbf16, #tpu.memory_space<vmem>>, vector<1x32x2048xbf16>
    %168 = vector.shape_cast %167 : vector<1x32x2048xbf16> to vector<32x2048xbf16>
    %cst_48 = arith.constant dense<0.000000e+00> : vector<16x2048xf32>
    %169 = tpu.matmul %166, %168, %cst_48 {dimension_numbers = #tpu.dot_dimension_numbers<[1], [0], [0], [1], [0, 0, 1, 1], [], []>} : vector<16x32xbf16>, vector<32x2048xbf16>, vector<16x2048xf32> -> vector<16x2048xf32>
    %c0_49 = arith.constant 0 : index
    %c0_50 = arith.constant 0 : index
    %c0_51 = arith.constant 0 : index
    %170 = vector.load %arg11[%c0_49, %c0_50, %c0_51] : memref<2x1x2048xf32, #tpu.memory_space<vmem>>, vector<1x1x2048xf32>
    %171 = vector.shape_cast %170 : vector<1x1x2048xf32> to vector<1x2048xf32>
    %172 = vector.broadcast %171 : vector<1x2048xf32> to vector<16x2048xf32>
    %173 = arith.addf %169, %172 : vector<16x2048xf32>
    %cst_52 = arith.constant 0.000000e+00 : f32
    %174 = vector.broadcast %cst_52 : f32 to vector<16x2048xf32>
    %175 = arith.maximumf %173, %174 : vector<16x2048xf32>
    %176 = arith.truncf %175 : vector<16x2048xf32> to vector<16x2048xbf16>
    %c0_53 = arith.constant 0 : index
    %c0_54 = arith.constant 0 : index
    %c0_55 = arith.constant 0 : index
    %177 = vector.load %arg12[%c0_53, %c0_54, %c0_55] : memref<2x2048x32xbf16, #tpu.memory_space<vmem>>, vector<1x2048x32xbf16>
    %178 = vector.shape_cast %177 : vector<1x2048x32xbf16> to vector<2048x32xbf16>
    %cst_56 = arith.constant dense<0.000000e+00> : vector<16x32xf32>
    %179 = tpu.matmul %176, %178, %cst_56 {dimension_numbers = #tpu.dot_dimension_numbers<[1], [0], [0], [1], [0, 0, 1, 1], [], []>} : vector<16x2048xbf16>, vector<2048x32xbf16>, vector<16x32xf32> -> vector<16x32xf32>
    %c0_57 = arith.constant 0 : index
    %c0_58 = arith.constant 0 : index
    %c0_59 = arith.constant 0 : index
    %180 = vector.load %arg13[%c0_57, %c0_58, %c0_59] : memref<2x1x32xf32, #tpu.memory_space<vmem>>, vector<1x1x32xf32>
    %181 = vector.shape_cast %180 : vector<1x1x32xf32> to vector<1x32xf32>
    %182 = vector.broadcast %181 : vector<1x32xf32> to vector<16x32xf32>
    %183 = arith.addf %179, %182 : vector<16x32xf32>
    %184 = arith.addf %165, %183 : vector<16x32xf32>
    %c0_60 = arith.constant 0 : index
    %c0_61 = arith.constant 0 : index
    %c0_62 = arith.constant 0 : index
    %185 = vector.load %arg16[%c0_60, %c0_61, %c0_62] : memref<2x1x32xf32, #tpu.memory_space<vmem>>, vector<1x1x32xf32>
    %186 = vector.shape_cast %185 : vector<1x1x32xf32> to vector<1x32xf32>
    %c0_63 = arith.constant 0 : index
    %c0_64 = arith.constant 0 : index
    %c0_65 = arith.constant 0 : index
    %187 = vector.load %arg17[%c0_63, %c0_64, %c0_65] : memref<2x1x32xf32, #tpu.memory_space<vmem>>, vector<1x1x32xf32>
    %188 = vector.shape_cast %187 : vector<1x1x32xf32> to vector<1x32xf32>
    %cst_66 = arith.constant dense<0.000000e+00> : vector<16xf32>
    %189 = vector.multi_reduction <add>, %184, %cst_66 [1] : vector<16x32xf32> to vector<16xf32>
    %190 = vector.shape_cast %189 : vector<16xf32> to vector<16x1xf32>
    %cst_67 = arith.constant 3.200000e+01 : f32
    %191 = vector.broadcast %cst_67 : f32 to vector<16x1xf32>
    %192 = arith.divf %190, %191 : vector<16x1xf32>
    %193 = vector.broadcast %192 : vector<16x1xf32> to vector<16x32xf32>
    %194 = arith.subf %184, %193 : vector<16x32xf32>
    %195 = arith.mulf %194, %194 : vector<16x32xf32>
    %cst_68 = arith.constant dense<0.000000e+00> : vector<16xf32>
    %196 = vector.multi_reduction <add>, %195, %cst_68 [1] : vector<16x32xf32> to vector<16xf32>
    %197 = vector.shape_cast %196 : vector<16xf32> to vector<16x1xf32>
    %cst_69 = arith.constant 3.200000e+01 : f32
    %198 = vector.broadcast %cst_69 : f32 to vector<16x1xf32>
    %199 = arith.divf %197, %198 : vector<16x1xf32>
    %200 = vector.broadcast %192 : vector<16x1xf32> to vector<16x32xf32>
    %201 = arith.subf %184, %200 : vector<16x32xf32>
    %cst_70 = arith.constant 9.99999974E-6 : f32
    %202 = vector.broadcast %cst_70 : f32 to vector<16x1xf32>
    %203 = arith.addf %199, %202 : vector<16x1xf32>
    %204 = math.rsqrt %203 : vector<16x1xf32>
    %205 = vector.broadcast %204 : vector<16x1xf32> to vector<16x32xf32>
    %206 = arith.mulf %201, %205 : vector<16x32xf32>
    %207 = vector.broadcast %186 : vector<1x32xf32> to vector<16x32xf32>
    %208 = arith.mulf %206, %207 : vector<16x32xf32>
    %209 = vector.broadcast %188 : vector<1x32xf32> to vector<16x32xf32>
    %210 = arith.addf %208, %209 : vector<16x32xf32>
    %211 = arith.truncf %210 : vector<16x32xf32> to vector<16x32xbf16>
    %c1 = arith.constant 1 : index
    %c0_71 = arith.constant 0 : index
    %c0_72 = arith.constant 0 : index
    %212 = vector.load %arg6[%c1, %c0_71, %c0_72] : memref<2x32x96xbf16, #tpu.memory_space<vmem>>, vector<1x32x96xbf16>
    %213 = vector.shape_cast %212 : vector<1x32x96xbf16> to vector<32x96xbf16>
    %cst_73 = arith.constant dense<0.000000e+00> : vector<16x96xf32>
    %214 = tpu.matmul %211, %213, %cst_73 {dimension_numbers = #tpu.dot_dimension_numbers<[1], [0], [0], [1], [0, 0, 1, 1], [], []>} : vector<16x32xbf16>, vector<32x96xbf16>, vector<16x96xf32> -> vector<16x96xf32>
    %c1_74 = arith.constant 1 : index
    %c0_75 = arith.constant 0 : index
    %c0_76 = arith.constant 0 : index
    %215 = vector.load %arg7[%c1_74, %c0_75, %c0_76] : memref<2x1x96xf32, #tpu.memory_space<vmem>>, vector<1x1x96xf32>
    %216 = vector.shape_cast %215 : vector<1x1x96xf32> to vector<1x96xf32>
    %217 = vector.broadcast %216 : vector<1x96xf32> to vector<16x96xf32>
    %218 = arith.addf %214, %217 : vector<16x96xf32>
    %219 = vector.extract_strided_slice %218 {offsets = [0, 0], sizes = [16, 32], strides = [1, 1]} : vector<16x96xf32> to vector<16x32xf32>
    %220 = arith.truncf %219 : vector<16x32xf32> to vector<16x32xbf16>
    %221 = vector.extract_strided_slice %218 {offsets = [0, 32], sizes = [16, 32], strides = [1, 1]} : vector<16x96xf32> to vector<16x32xf32>
    %222 = arith.truncf %221 : vector<16x32xf32> to vector<16x32xbf16>
    %223 = vector.extract_strided_slice %218 {offsets = [0, 64], sizes = [16, 32], strides = [1, 1]} : vector<16x96xf32> to vector<16x32xf32>
    %224 = arith.truncf %223 : vector<16x32xf32> to vector<16x32xbf16>
    %225 = vector.broadcast %11 : vector<1x32xbf16> to vector<16x32xbf16>
    %226 = arith.mulf %220, %225 : vector<16x32xbf16>
    %227 = vector.broadcast %19 : vector<1x32xbf16> to vector<16x32xbf16>
    %228 = arith.mulf %220, %227 : vector<16x32xbf16>
    %229 = vector.broadcast %27 : vector<1x32xbf16> to vector<16x32xbf16>
    %230 = arith.mulf %220, %229 : vector<16x32xbf16>
    %231 = vector.broadcast %35 : vector<1x32xbf16> to vector<16x32xbf16>
    %232 = arith.mulf %220, %231 : vector<16x32xbf16>
    %233 = tpu.concatenate %226, %228, %230, %232 in 0 : vector<16x32xbf16>, vector<16x32xbf16>, vector<16x32xbf16>, vector<16x32xbf16> -> vector<64x32xbf16>
    %cst_77 = arith.constant dense<0.000000e+00> : vector<64x16xf32>
    %234 = tpu.matmul %233, %222, %cst_77 {dimension_numbers = #tpu.dot_dimension_numbers<[1], [1], [0], [0], [0, 0, 1, 0], [], []>} : vector<64x32xbf16>, vector<16x32xbf16>, vector<64x16xf32> -> vector<64x16xf32>
    %cst_78 = arith.constant 0.353553385 : f32
    %235 = vector.broadcast %cst_78 : f32 to vector<64x16xf32>
    %236 = arith.mulf %234, %235 : vector<64x16xf32>
    %237 = arith.addf %236, %72 : vector<64x16xf32>
    %cst_79 = arith.constant dense<0xFF800000> : vector<64xf32>
    %238 = vector.multi_reduction <maximumf>, %237, %cst_79 [1] : vector<64x16xf32> to vector<64xf32>
    %239 = vector.shape_cast %238 : vector<64xf32> to vector<64x1xf32>
    %240 = vector.broadcast %239 : vector<64x1xf32> to vector<64x16xf32>
    %241 = arith.subf %237, %240 : vector<64x16xf32>
    %242 = math.exp %241 : vector<64x16xf32>
    %cst_80 = arith.constant dense<0.000000e+00> : vector<64xf32>
    %243 = vector.multi_reduction <add>, %242, %cst_80 [1] : vector<64x16xf32> to vector<64xf32>
    %244 = vector.shape_cast %243 : vector<64xf32> to vector<64x1xf32>
    %245 = tpu.reciprocal %244 {approx = true} : vector<64x1xf32> -> vector<64x1xf32>
    %246 = vector.broadcast %245 : vector<64x1xf32> to vector<64x16xf32>
    %247 = arith.mulf %242, %246 : vector<64x16xf32>
    %248 = arith.truncf %247 : vector<64x16xf32> to vector<64x16xbf16>
    %cst_81 = arith.constant dense<0.000000e+00> : vector<64x32xf32>
    %249 = tpu.matmul %248, %224, %cst_81 {dimension_numbers = #tpu.dot_dimension_numbers<[1], [0], [0], [1], [0, 0, 1, 1], [], []>} : vector<64x16xbf16>, vector<16x32xbf16>, vector<64x32xf32> -> vector<64x32xf32>
    %250 = vector.extract_strided_slice %249 {offsets = [0, 0], sizes = [16, 32], strides = [1, 1]} : vector<64x32xf32> to vector<16x32xf32>
    %251 = arith.extf %11 : vector<1x32xbf16> to vector<1x32xf32>
    %252 = vector.broadcast %251 : vector<1x32xf32> to vector<16x32xf32>
    %253 = arith.mulf %250, %252 : vector<16x32xf32>
    %254 = vector.extract_strided_slice %249 {offsets = [16, 0], sizes = [16, 32], strides = [1, 1]} : vector<64x32xf32> to vector<16x32xf32>
    %255 = arith.extf %19 : vector<1x32xbf16> to vector<1x32xf32>
    %256 = vector.broadcast %255 : vector<1x32xf32> to vector<16x32xf32>
    %257 = arith.mulf %254, %256 : vector<16x32xf32>
    %258 = arith.addf %253, %257 : vector<16x32xf32>
    %259 = vector.extract_strided_slice %249 {offsets = [32, 0], sizes = [16, 32], strides = [1, 1]} : vector<64x32xf32> to vector<16x32xf32>
    %260 = arith.extf %27 : vector<1x32xbf16> to vector<1x32xf32>
    %261 = vector.broadcast %260 : vector<1x32xf32> to vector<16x32xf32>
    %262 = arith.mulf %259, %261 : vector<16x32xf32>
    %263 = arith.addf %258, %262 : vector<16x32xf32>
    %264 = vector.extract_strided_slice %249 {offsets = [48, 0], sizes = [16, 32], strides = [1, 1]} : vector<64x32xf32> to vector<16x32xf32>
    %265 = arith.extf %35 : vector<1x32xbf16> to vector<1x32xf32>
    %266 = vector.broadcast %265 : vector<1x32xf32> to vector<16x32xf32>
    %267 = arith.mulf %264, %266 : vector<16x32xf32>
    %268 = arith.addf %263, %267 : vector<16x32xf32>
    %269 = arith.truncf %268 : vector<16x32xf32> to vector<16x32xbf16>
    %c1_82 = arith.constant 1 : index
    %c0_83 = arith.constant 0 : index
    %c0_84 = arith.constant 0 : index
    %270 = vector.load %arg8[%c1_82, %c0_83, %c0_84] : memref<2x32x32xbf16, #tpu.memory_space<vmem>>, vector<1x32x32xbf16>
    %271 = vector.shape_cast %270 : vector<1x32x32xbf16> to vector<32x32xbf16>
    %cst_85 = arith.constant dense<0.000000e+00> : vector<16x32xf32>
    %272 = tpu.matmul %269, %271, %cst_85 {dimension_numbers = #tpu.dot_dimension_numbers<[1], [0], [0], [1], [0, 0, 1, 1], [], []>} : vector<16x32xbf16>, vector<32x32xbf16>, vector<16x32xf32> -> vector<16x32xf32>
    %c1_86 = arith.constant 1 : index
    %c0_87 = arith.constant 0 : index
    %c0_88 = arith.constant 0 : index
    %273 = vector.load %arg9[%c1_86, %c0_87, %c0_88] : memref<2x1x32xf32, #tpu.memory_space<vmem>>, vector<1x1x32xf32>
    %274 = vector.shape_cast %273 : vector<1x1x32xf32> to vector<1x32xf32>
    %275 = vector.broadcast %274 : vector<1x32xf32> to vector<16x32xf32>
    %276 = arith.addf %272, %275 : vector<16x32xf32>
    %277 = arith.addf %210, %276 : vector<16x32xf32>
    %c1_89 = arith.constant 1 : index
    %c0_90 = arith.constant 0 : index
    %c0_91 = arith.constant 0 : index
    %278 = vector.load %arg14[%c1_89, %c0_90, %c0_91] : memref<2x1x32xf32, #tpu.memory_space<vmem>>, vector<1x1x32xf32>
    %279 = vector.shape_cast %278 : vector<1x1x32xf32> to vector<1x32xf32>
    %c1_92 = arith.constant 1 : index
    %c0_93 = arith.constant 0 : index
    %c0_94 = arith.constant 0 : index
    %280 = vector.load %arg15[%c1_92, %c0_93, %c0_94] : memref<2x1x32xf32, #tpu.memory_space<vmem>>, vector<1x1x32xf32>
    %281 = vector.shape_cast %280 : vector<1x1x32xf32> to vector<1x32xf32>
    %cst_95 = arith.constant dense<0.000000e+00> : vector<16xf32>
    %282 = vector.multi_reduction <add>, %277, %cst_95 [1] : vector<16x32xf32> to vector<16xf32>
    %283 = vector.shape_cast %282 : vector<16xf32> to vector<16x1xf32>
    %cst_96 = arith.constant 3.200000e+01 : f32
    %284 = vector.broadcast %cst_96 : f32 to vector<16x1xf32>
    %285 = arith.divf %283, %284 : vector<16x1xf32>
    %286 = vector.broadcast %285 : vector<16x1xf32> to vector<16x32xf32>
    %287 = arith.subf %277, %286 : vector<16x32xf32>
    %288 = arith.mulf %287, %287 : vector<16x32xf32>
    %cst_97 = arith.constant dense<0.000000e+00> : vector<16xf32>
    %289 = vector.multi_reduction <add>, %288, %cst_97 [1] : vector<16x32xf32> to vector<16xf32>
    %290 = vector.shape_cast %289 : vector<16xf32> to vector<16x1xf32>
    %cst_98 = arith.constant 3.200000e+01 : f32
    %291 = vector.broadcast %cst_98 : f32 to vector<16x1xf32>
    %292 = arith.divf %290, %291 : vector<16x1xf32>
    %293 = vector.broadcast %285 : vector<16x1xf32> to vector<16x32xf32>
    %294 = arith.subf %277, %293 : vector<16x32xf32>
    %cst_99 = arith.constant 9.99999974E-6 : f32
    %295 = vector.broadcast %cst_99 : f32 to vector<16x1xf32>
    %296 = arith.addf %292, %295 : vector<16x1xf32>
    %297 = math.rsqrt %296 : vector<16x1xf32>
    %298 = vector.broadcast %297 : vector<16x1xf32> to vector<16x32xf32>
    %299 = arith.mulf %294, %298 : vector<16x32xf32>
    %300 = vector.broadcast %279 : vector<1x32xf32> to vector<16x32xf32>
    %301 = arith.mulf %299, %300 : vector<16x32xf32>
    %302 = vector.broadcast %281 : vector<1x32xf32> to vector<16x32xf32>
    %303 = arith.addf %301, %302 : vector<16x32xf32>
    %304 = arith.truncf %303 : vector<16x32xf32> to vector<16x32xbf16>
    %c1_100 = arith.constant 1 : index
    %c0_101 = arith.constant 0 : index
    %c0_102 = arith.constant 0 : index
    %305 = vector.load %arg10[%c1_100, %c0_101, %c0_102] : memref<2x32x2048xbf16, #tpu.memory_space<vmem>>, vector<1x32x2048xbf16>
    %306 = vector.shape_cast %305 : vector<1x32x2048xbf16> to vector<32x2048xbf16>
    %cst_103 = arith.constant dense<0.000000e+00> : vector<16x2048xf32>
    %307 = tpu.matmul %304, %306, %cst_103 {dimension_numbers = #tpu.dot_dimension_numbers<[1], [0], [0], [1], [0, 0, 1, 1], [], []>} : vector<16x32xbf16>, vector<32x2048xbf16>, vector<16x2048xf32> -> vector<16x2048xf32>
    %c1_104 = arith.constant 1 : index
    %c0_105 = arith.constant 0 : index
    %c0_106 = arith.constant 0 : index
    %308 = vector.load %arg11[%c1_104, %c0_105, %c0_106] : memref<2x1x2048xf32, #tpu.memory_space<vmem>>, vector<1x1x2048xf32>
    %309 = vector.shape_cast %308 : vector<1x1x2048xf32> to vector<1x2048xf32>
    %310 = vector.broadcast %309 : vector<1x2048xf32> to vector<16x2048xf32>
    %311 = arith.addf %307, %310 : vector<16x2048xf32>
    %cst_107 = arith.constant 0.000000e+00 : f32
    %312 = vector.broadcast %cst_107 : f32 to vector<16x2048xf32>
    %313 = arith.maximumf %311, %312 : vector<16x2048xf32>
    %314 = arith.truncf %313 : vector<16x2048xf32> to vector<16x2048xbf16>
    %c1_108 = arith.constant 1 : index
    %c0_109 = arith.constant 0 : index
    %c0_110 = arith.constant 0 : index
    %315 = vector.load %arg12[%c1_108, %c0_109, %c0_110] : memref<2x2048x32xbf16, #tpu.memory_space<vmem>>, vector<1x2048x32xbf16>
    %316 = vector.shape_cast %315 : vector<1x2048x32xbf16> to vector<2048x32xbf16>
    %cst_111 = arith.constant dense<0.000000e+00> : vector<16x32xf32>
    %317 = tpu.matmul %314, %316, %cst_111 {dimension_numbers = #tpu.dot_dimension_numbers<[1], [0], [0], [1], [0, 0, 1, 1], [], []>} : vector<16x2048xbf16>, vector<2048x32xbf16>, vector<16x32xf32> -> vector<16x32xf32>
    %c1_112 = arith.constant 1 : index
    %c0_113 = arith.constant 0 : index
    %c0_114 = arith.constant 0 : index
    %318 = vector.load %arg13[%c1_112, %c0_113, %c0_114] : memref<2x1x32xf32, #tpu.memory_space<vmem>>, vector<1x1x32xf32>
    %319 = vector.shape_cast %318 : vector<1x1x32xf32> to vector<1x32xf32>
    %320 = vector.broadcast %319 : vector<1x32xf32> to vector<16x32xf32>
    %321 = arith.addf %317, %320 : vector<16x32xf32>
    %322 = arith.addf %303, %321 : vector<16x32xf32>
    %c1_115 = arith.constant 1 : index
    %c0_116 = arith.constant 0 : index
    %c0_117 = arith.constant 0 : index
    %323 = vector.load %arg16[%c1_115, %c0_116, %c0_117] : memref<2x1x32xf32, #tpu.memory_space<vmem>>, vector<1x1x32xf32>
    %324 = vector.shape_cast %323 : vector<1x1x32xf32> to vector<1x32xf32>
    %c1_118 = arith.constant 1 : index
    %c0_119 = arith.constant 0 : index
    %c0_120 = arith.constant 0 : index
    %325 = vector.load %arg17[%c1_118, %c0_119, %c0_120] : memref<2x1x32xf32, #tpu.memory_space<vmem>>, vector<1x1x32xf32>
    %326 = vector.shape_cast %325 : vector<1x1x32xf32> to vector<1x32xf32>
    %cst_121 = arith.constant dense<0.000000e+00> : vector<16xf32>
    %327 = vector.multi_reduction <add>, %322, %cst_121 [1] : vector<16x32xf32> to vector<16xf32>
    %328 = vector.shape_cast %327 : vector<16xf32> to vector<16x1xf32>
    %cst_122 = arith.constant 3.200000e+01 : f32
    %329 = vector.broadcast %cst_122 : f32 to vector<16x1xf32>
    %330 = arith.divf %328, %329 : vector<16x1xf32>
    %331 = vector.broadcast %330 : vector<16x1xf32> to vector<16x32xf32>
    %332 = arith.subf %322, %331 : vector<16x32xf32>
    %333 = arith.mulf %332, %332 : vector<16x32xf32>
    %cst_123 = arith.constant dense<0.000000e+00> : vector<16xf32>
    %334 = vector.multi_reduction <add>, %333, %cst_123 [1] : vector<16x32xf32> to vector<16xf32>
    %335 = vector.shape_cast %334 : vector<16xf32> to vector<16x1xf32>
    %cst_124 = arith.constant 3.200000e+01 : f32
    %336 = vector.broadcast %cst_124 : f32 to vector<16x1xf32>
    %337 = arith.divf %335, %336 : vector<16x1xf32>
    %338 = vector.broadcast %330 : vector<16x1xf32> to vector<16x32xf32>
    %339 = arith.subf %322, %338 : vector<16x32xf32>
    %cst_125 = arith.constant 9.99999974E-6 : f32
    %340 = vector.broadcast %cst_125 : f32 to vector<16x1xf32>
    %341 = arith.addf %337, %340 : vector<16x1xf32>
    %342 = math.rsqrt %341 : vector<16x1xf32>
    %343 = vector.broadcast %342 : vector<16x1xf32> to vector<16x32xf32>
    %344 = arith.mulf %339, %343 : vector<16x32xf32>
    %345 = vector.broadcast %324 : vector<1x32xf32> to vector<16x32xf32>
    %346 = arith.mulf %344, %345 : vector<16x32xf32>
    %347 = vector.broadcast %326 : vector<1x32xf32> to vector<16x32xf32>
    %348 = arith.addf %346, %347 : vector<16x32xf32>
    %349 = arith.truncf %348 : vector<16x32xf32> to vector<16x32xbf16>
    %c0_126 = arith.constant 0 : index
    %c0_127 = arith.constant 0 : index
    %350 = vector.load %arg18[%c0_126, %c0_127] : memref<32x64xbf16, #tpu.memory_space<vmem>>, vector<32x64xbf16>
    %cst_128 = arith.constant dense<0.000000e+00> : vector<16x64xf32>
    %351 = tpu.matmul %349, %350, %cst_128 {dimension_numbers = #tpu.dot_dimension_numbers<[1], [0], [0], [1], [0, 0, 1, 1], [], []>} : vector<16x32xbf16>, vector<32x64xbf16>, vector<16x64xf32> -> vector<16x64xf32>
    %c0_129 = arith.constant 0 : index
    %c0_130 = arith.constant 0 : index
    %352 = vector.load %arg19[%c0_129, %c0_130] : memref<1x64xf32, #tpu.memory_space<vmem>>, vector<1x64xf32>
    %353 = vector.broadcast %352 : vector<1x64xf32> to vector<16x64xf32>
    %354 = arith.addf %351, %353 : vector<16x64xf32>
    %c0_131 = arith.constant 0 : index
    %c0_132 = arith.constant 0 : index
    %c0_133 = arith.constant 0 : index
    %355 = vector.load %arg4[%c0_131, %c0_132, %c0_133] : memref<1x2x16xf32, #tpu.memory_space<vmem>>, vector<1x2x16xf32>
    %356 = vector.shape_cast %355 : vector<1x2x16xf32> to vector<2x16xf32>
    %357 = arith.truncf %356 : vector<2x16xf32> to vector<2x16xbf16>
    %c0_134 = arith.constant 0 : index
    %c0_135 = arith.constant 0 : index
    %358 = vector.load %arg20[%c0_134, %c0_135] : memref<16x64xbf16, #tpu.memory_space<vmem>>, vector<16x64xbf16>
    %cst_136 = arith.constant dense<0.000000e+00> : vector<2x64xf32>
    %359 = tpu.matmul %357, %358, %cst_136 {dimension_numbers = #tpu.dot_dimension_numbers<[1], [0], [0], [1], [0, 0, 1, 1], [], []>} : vector<2x16xbf16>, vector<16x64xbf16>, vector<2x64xf32> -> vector<2x64xf32>
    %c0_137 = arith.constant 0 : index
    %c0_138 = arith.constant 0 : index
    %360 = vector.load %arg21[%c0_137, %c0_138] : memref<1x64xf32, #tpu.memory_space<vmem>>, vector<1x64xf32>
    %361 = vector.broadcast %360 : vector<1x64xf32> to vector<2x64xf32>
    %362 = arith.addf %359, %361 : vector<2x64xf32>
    %cst_139 = arith.constant dense<0.000000e+00> : vector<2x16xf32>
    %363 = tpu.matmul %362, %354, %cst_139 {dimension_numbers = #tpu.dot_dimension_numbers<[1], [1], [0], [0], [0, 0, 1, 0], [], []>} : vector<2x64xf32>, vector<16x64xf32>, vector<2x16xf32> -> vector<2x16xf32>
    %364 = tpu.iota {dimensions = array<i32: 0>} : vector<2x16xi32>
    %365 = tpu.iota {dimensions = array<i32: 1>} : vector<2x16xi32>
    %c8_i32_140 = arith.constant 8 : i32
    %366 = vector.broadcast %c8_i32_140 : i32 to vector<2x16xi32>
    %367 = arith.muli %364, %366 : vector<2x16xi32>
    %368 = arith.cmpi sge, %365, %367 : vector<2x16xi32>
    %c1_i32_141 = arith.constant 1 : i32
    %369 = vector.broadcast %c1_i32_141 : i32 to vector<2x16xi32>
    %370 = arith.addi %364, %369 : vector<2x16xi32>
    %c8_i32_142 = arith.constant 8 : i32
    %371 = vector.broadcast %c8_i32_142 : i32 to vector<2x16xi32>
    %372 = arith.muli %370, %371 : vector<2x16xi32>
    %373 = arith.cmpi slt, %365, %372 : vector<2x16xi32>
    %374 = arith.andi %368, %373 : vector<2x16xi1>
    %cst_143 = arith.constant 0.000000e+00 : f32
    %375 = vector.broadcast %cst_143 : f32 to vector<2x16xf32>
    %376 = arith.select %374, %363, %375 : vector<2x16xi1>, vector<2x16xf32>
    %cst_144 = arith.constant dense<0.000000e+00> : vector<16xf32>
    %377 = vector.multi_reduction <add>, %376, %cst_144 [0] : vector<2x16xf32> to vector<16xf32>
    %378 = vector.shape_cast %377 : vector<16xf32> to vector<1x16xf32>
    %c0_145 = arith.constant 0 : index
    %c0_146 = arith.constant 0 : index
    %c0_147 = arith.constant 0 : index
    %379 = vector.load %arg3[%c0_145, %c0_146, %c0_147] : memref<1x1x16xf32, #tpu.memory_space<vmem>>, vector<1x1x16xf32>
    %380 = vector.shape_cast %379 : vector<1x1x16xf32> to vector<1x16xf32>
    %c0_148 = arith.constant 0 : index
    %381 = memref.load %arg5[%c0_148] : memref<4xf32, #tpu.memory_space<smem>>
    %c1_149 = arith.constant 1 : index
    %382 = memref.load %arg5[%c1_149] : memref<4xf32, #tpu.memory_space<smem>>
    %c2 = arith.constant 2 : index
    %383 = memref.load %arg5[%c2] : memref<4xf32, #tpu.memory_space<smem>>
    %c3 = arith.constant 3 : index
    %384 = memref.load %arg5[%c3] : memref<4xf32, #tpu.memory_space<smem>>
    %385 = vector.broadcast %381 : f32 to vector<1x16xf32>
    %386 = arith.mulf %385, %378 : vector<1x16xf32>
    %387 = vector.broadcast %382 : f32 to vector<1x16xf32>
    %388 = arith.addf %386, %387 : vector<1x16xf32>
    %389 = vector.broadcast %383 : f32 to vector<1x16xf32>
    %390 = arith.mulf %389, %380 : vector<1x16xf32>
    %391 = vector.broadcast %384 : f32 to vector<1x16xf32>
    %392 = arith.addf %390, %391 : vector<1x16xf32>
    %393 = arith.addf %388, %392 : vector<1x16xf32>
    %c0_150 = arith.constant 0 : index
    %c0_151 = arith.constant 0 : index
    %c0_152 = arith.constant 0 : index
    %394 = vector.load %arg22[%c0_150, %c0_151, %c0_152] : memref<1x1x16xf32, #tpu.memory_space<vmem>>, vector<1x1x16xf32>
    %395 = vector.shape_cast %394 : vector<1x1x16xf32> to vector<1x16xf32>
    %396 = vector.shape_cast %393 : vector<1x16xf32> to vector<1x1x16xf32>
    tpu.vector_store %arg22[%c0_150, %c0_151, %c0_152], %396 {strides = array<i32>} : memref<1x1x16xf32, #tpu.memory_space<vmem>>, vector<1x1x16xf32>,
    return
  }
  func.func @transform_0(%arg0: i32, %arg1: memref<4xi32, #tpu.memory_space<smem>>) -> (i32, i32, i32) {
    %c0_i32 = arith.constant 0 : i32
    %c0_i32_0 = arith.constant 0 : i32
    %c0_i32_1 = arith.constant 0 : i32
    return %arg0, %c0_i32, %c0_i32_0 : i32, i32, i32
  }
  func.func @transform_1(%arg0: i32, %arg1: memref<4xi32, #tpu.memory_space<smem>>) -> (i32, i32, i32) {
    %c0_i32 = arith.constant 0 : i32
    %c0_i32_0 = arith.constant 0 : i32
    %c0_i32_1 = arith.constant 0 : i32
    return %arg0, %c0_i32, %c0_i32_0 : i32, i32, i32
  }
  func.func @transform_2(%arg0: i32, %arg1: memref<4xi32, #tpu.memory_space<smem>>) -> (i32, i32, i32) {
    %c0_i32 = arith.constant 0 : i32
    %c0_i32_0 = arith.constant 0 : i32
    %c0_i32_1 = arith.constant 0 : i32
    return %arg0, %c0_i32, %c0_i32_0 : i32, i32, i32
  }
  func.func @transform_3(%arg0: i32, %arg1: memref<4xi32, #tpu.memory_space<smem>>) -> i32 {
    %c0_i32 = arith.constant 0 : i32
    %c0_i32_0 = arith.constant 0 : i32
    return %c0_i32 : i32
  }
  func.func @transform_4(%arg0: i32, %arg1: memref<4xi32, #tpu.memory_space<smem>>) -> (i32, i32, i32) {
    %c0_i32 = arith.constant 0 : i32
    %c0_i32_0 = arith.constant 0 : i32
    %c0_i32_1 = arith.constant 0 : i32
    %c0_i32_2 = arith.constant 0 : i32
    return %c0_i32, %c0_i32_0, %c0_i32_1 : i32, i32, i32
  }
  func.func @transform_5(%arg0: i32, %arg1: memref<4xi32, #tpu.memory_space<smem>>) -> (i32, i32, i32) {
    %c0_i32 = arith.constant 0 : i32
    %c0_i32_0 = arith.constant 0 : i32
    %c0_i32_1 = arith.constant 0 : i32
    %c0_i32_2 = arith.constant 0 : i32
    return %c0_i32, %c0_i32_0, %c0_i32_1 : i32, i32, i32
  }
  func.func @transform_6(%arg0: i32, %arg1: memref<4xi32, #tpu.memory_space<smem>>) -> (i32, i32, i32) {
    %c0_i32 = arith.constant 0 : i32
    %c0_i32_0 = arith.constant 0 : i32
    %c0_i32_1 = arith.constant 0 : i32
    %c0_i32_2 = arith.constant 0 : i32
    return %c0_i32, %c0_i32_0, %c0_i32_1 : i32, i32, i32
  }
  func.func @transform_7(%arg0: i32, %arg1: memref<4xi32, #tpu.memory_space<smem>>) -> (i32, i32, i32) {
    %c0_i32 = arith.constant 0 : i32
    %c0_i32_0 = arith.constant 0 : i32
    %c0_i32_1 = arith.constant 0 : i32
    %c0_i32_2 = arith.constant 0 : i32
    return %c0_i32, %c0_i32_0, %c0_i32_1 : i32, i32, i32
  }
  func.func @transform_8(%arg0: i32, %arg1: memref<4xi32, #tpu.memory_space<smem>>) -> (i32, i32, i32) {
    %c0_i32 = arith.constant 0 : i32
    %c0_i32_0 = arith.constant 0 : i32
    %c0_i32_1 = arith.constant 0 : i32
    %c0_i32_2 = arith.constant 0 : i32
    return %c0_i32, %c0_i32_0, %c0_i32_1 : i32, i32, i32
  }
  func.func @transform_9(%arg0: i32, %arg1: memref<4xi32, #tpu.memory_space<smem>>) -> (i32, i32, i32) {
    %c0_i32 = arith.constant 0 : i32
    %c0_i32_0 = arith.constant 0 : i32
    %c0_i32_1 = arith.constant 0 : i32
    %c0_i32_2 = arith.constant 0 : i32
    return %c0_i32, %c0_i32_0, %c0_i32_1 : i32, i32, i32
  }
  func.func @transform_10(%arg0: i32, %arg1: memref<4xi32, #tpu.memory_space<smem>>) -> (i32, i32, i32) {
    %c0_i32 = arith.constant 0 : i32
    %c0_i32_0 = arith.constant 0 : i32
    %c0_i32_1 = arith.constant 0 : i32
    %c0_i32_2 = arith.constant 0 : i32
    return %c0_i32, %c0_i32_0, %c0_i32_1 : i32, i32, i32
  }
  func.func @transform_11(%arg0: i32, %arg1: memref<4xi32, #tpu.memory_space<smem>>) -> (i32, i32, i32) {
    %c0_i32 = arith.constant 0 : i32
    %c0_i32_0 = arith.constant 0 : i32
    %c0_i32_1 = arith.constant 0 : i32
    %c0_i32_2 = arith.constant 0 : i32
    return %c0_i32, %c0_i32_0, %c0_i32_1 : i32, i32, i32
  }
  func.func @transform_12(%arg0: i32, %arg1: memref<4xi32, #tpu.memory_space<smem>>) -> (i32, i32, i32) {
    %c0_i32 = arith.constant 0 : i32
    %c0_i32_0 = arith.constant 0 : i32
    %c0_i32_1 = arith.constant 0 : i32
    %c0_i32_2 = arith.constant 0 : i32
    return %c0_i32, %c0_i32_0, %c0_i32_1 : i32, i32, i32
  }
  func.func @transform_13(%arg0: i32, %arg1: memref<4xi32, #tpu.memory_space<smem>>) -> (i32, i32, i32) {
    %c0_i32 = arith.constant 0 : i32
    %c0_i32_0 = arith.constant 0 : i32
    %c0_i32_1 = arith.constant 0 : i32
    %c0_i32_2 = arith.constant 0 : i32
    return %c0_i32, %c0_i32_0, %c0_i32_1 : i32, i32, i32
  }
  func.func @transform_14(%arg0: i32, %arg1: memref<4xi32, #tpu.memory_space<smem>>) -> (i32, i32, i32) {
    %c0_i32 = arith.constant 0 : i32
    %c0_i32_0 = arith.constant 0 : i32
    %c0_i32_1 = arith.constant 0 : i32
    %c0_i32_2 = arith.constant 0 : i32
    return %c0_i32, %c0_i32_0, %c0_i32_1 : i32, i32, i32
  }
  func.func @transform_15(%arg0: i32, %arg1: memref<4xi32, #tpu.memory_space<smem>>) -> (i32, i32, i32) {
    %c0_i32 = arith.constant 0 : i32
    %c0_i32_0 = arith.constant 0 : i32
    %c0_i32_1 = arith.constant 0 : i32
    %c0_i32_2 = arith.constant 0 : i32
    return %c0_i32, %c0_i32_0, %c0_i32_1 : i32, i32, i32
  }
  func.func @transform_16(%arg0: i32, %arg1: memref<4xi32, #tpu.memory_space<smem>>) -> (i32, i32) {
    %c0_i32 = arith.constant 0 : i32
    %c0_i32_0 = arith.constant 0 : i32
    %c0_i32_1 = arith.constant 0 : i32
    return %c0_i32, %c0_i32_0 : i32, i32
  }
  func.func @transform_17(%arg0: i32, %arg1: memref<4xi32, #tpu.memory_space<smem>>) -> (i32, i32) {
    %c0_i32 = arith.constant 0 : i32
    %c0_i32_0 = arith.constant 0 : i32
    %c0_i32_1 = arith.constant 0 : i32
    return %c0_i32, %c0_i32_0 : i32, i32
  }
  func.func @transform_18(%arg0: i32, %arg1: memref<4xi32, #tpu.memory_space<smem>>) -> (i32, i32) {
    %c0_i32 = arith.constant 0 : i32
    %c0_i32_0 = arith.constant 0 : i32
    %c0_i32_1 = arith.constant 0 : i32
    return %c0_i32, %c0_i32_0 : i32, i32
  }
  func.func @transform_19(%arg0: i32, %arg1: memref<4xi32, #tpu.memory_space<smem>>) -> (i32, i32) {
    %c0_i32 = arith.constant 0 : i32
    %c0_i32_0 = arith.constant 0 : i32
    %c0_i32_1 = arith.constant 0 : i32
    return %c0_i32, %c0_i32_0 : i32, i32
  }
  func.func @transform_20(%arg0: i32, %arg1: memref<4xi32, #tpu.memory_space<smem>>) -> (i32, i32, i32) {
    %c0_i32 = arith.constant 0 : i32
    %c0_i32_0 = arith.constant 0 : i32
    %c0_i32_1 = arith.constant 0 : i32
    return %arg0, %c0_i32, %c0_i32_0 : i32, i32, i32
  }
}

</mosaic_0001>

<llo_original>
// kernel: tpu_custom_call.1
$region0: #{tpu_custom_call.1}
  #allocation0 [shape = 'u32[]', space=smem, size = 0x4, offset = 0x4, fixed_abs, tag = 'smem constant byte address 0x4 - core index']
  #allocation1 [shape = 'u32[72,128]{1,0:T(1,128)}', space=vmem, size = 0x9000, scoped, tag = 'internal scratch']
  #allocation2 [shape = 's32[1]{0}', space=sflag, size = 0x4, scoped, tag = 'scoped memory for tpu_custom_call.1']
  #allocation3 [shape = 'u8[512]{0}', space=smem, size = 0x200, scoped, tag = 'prefetched SMEM operand 0']
  %s0 = inlined_call_operand.vmem [shape: s32[4], index: 0, kind: input, shape index: {}]
  %s1 = inlined_call_operand.vmem [shape: f32[2,16,32], index: 1, kind: input, shape index: {}]
  %s2 = inlined_call_operand.vmem [shape: f32[2,1,16], index: 2, kind: input, shape index: {}]
  %s3 = inlined_call_operand.vmem [shape: f32[2,2,16], index: 3, kind: input, shape index: {}]
  %s4 = inlined_call_operand.vmem [shape: f32[4], index: 4, kind: input, shape index: {}]
  %s5 = inlined_call_operand.vmem [shape: bf16[2,32,96], index: 5, kind: input, shape index: {}]
  %s6 = inlined_call_operand.vmem [shape: f32[2,1,96], index: 6, kind: input, shape index: {}]
  %s7 = inlined_call_operand.vmem [shape: bf16[2,32,32], index: 7, kind: input, shape index: {}]
  %s8 = inlined_call_operand.vmem [shape: f32[2,1,32], index: 8, kind: input, shape index: {}]
  %s9 = inlined_call_operand.vmem [shape: bf16[2,32,2048], index: 9, kind: input, shape index: {}]
  %s10 = inlined_call_operand.vmem [shape: f32[2,1,2048], index: 10, kind: input, shape index: {}]
  %s11 = inlined_call_operand.vmem [shape: bf16[2,2048,32], index: 11, kind: input, shape index: {}]
  %s12 = inlined_call_operand.vmem [shape: f32[2,1,32], index: 12, kind: input, shape index: {}]
  %s13 = inlined_call_operand.vmem [shape: f32[2,1,32], index: 13, kind: input, shape index: {}]
  %s14 = inlined_call_operand.vmem [shape: f32[2,1,32], index: 14, kind: input, shape index: {}]
  %s15 = inlined_call_operand.vmem [shape: f32[2,1,32], index: 15, kind: input, shape index: {}]
  %s16 = inlined_call_operand.vmem [shape: f32[2,1,32], index: 16, kind: input, shape index: {}]
  %s17 = inlined_call_operand.vmem [shape: bf16[32,64], index: 17, kind: input, shape index: {}]
  %s18 = inlined_call_operand.vmem [shape: f32[1,64], index: 18, kind: input, shape index: {}]
  %s19 = inlined_call_operand.vmem [shape: bf16[16,64], index: 19, kind: input, shape index: {}]
  %s20 = inlined_call_operand.vmem [shape: f32[1,64], index: 20, kind: input, shape index: {}]
  %s21 = inlined_call_operand.hbm [shape: f32[2,1,16], index: 21, kind: output, shape index: {}]
  %s22 = sld [smem:[#allocation0]]
  $region117: #{tpu_custom_call.1} parent=0
    _
  %s24 = ssub.s32 1, %s22
  %s25 = scalar_select 0, %s24, %s22
  %s27 = sshll.u32 %s0, 4
  %s28 = int_to_ptr.vmem [resolvable:$true] %s27
  %30 = dma.vmem_to_smem %s28, 16, [#allocation3], [#allocation2]
  %32 = dma.done [#allocation2], 16
  %33 = sfence
  $region1: #{tpu_custom_call.1} parent=0
    #allocation4 [shape = 'u8[512]{0}', space=smem, size = 0x200, scoped, tag = 'input window, operand 4, single buffered']
    #allocation5 [shape = 's32[2]{0}', space=sflag, size = 0x8, scoped, tag = 'scoped memory for tpu_custom_call.1']
    #allocation6 [shape = 's32[2]{0}', space=sflag, size = 0x8, scoped, tag = 'scoped memory for tpu_custom_call.1']
    #allocation7 [shape = 'u8[1024]{0}', space=vmem, size = 0x400, scoped, tag = 'output window, operand 0']
    %34 = vsyncpa [#allocation6], 0
    %35 = vsyncpa [#allocation5], 0
    %s36 = scalar_lea.sflag [#allocation5], 1
    %37 = vsyncpa %s36, 0
    loop: start=0, step=1, limit=4
    $region2: #{tpu_custom_call.1} parent=1 // loop_pre_header
      _
    $region3: #{tpu_custom_call.1} parent=1 // loop_header
      %s39 = sphi 0, %s43
      %p40 = scmp.ge.s32.totalorder %s39, 4
      %s49 = sphi 0, %s51
      %s52 = sphi 0, %s49
      %s53 = sphi 0, %s52
      %s69 = sphi 0, %s53
      %s75 = sphi 0, %s77
      %s78 = sphi 0, %s75
      %s79 = sphi 0, %s78
      %s95 = sphi 0, %s79
      %s101 = sphi 0, %s103
      %s104 = sphi 0, %s101
      %s105 = sphi 0, %s104
      %s121 = sphi 0, %s105
      %s125 = sphi 0, %s125
      %s127 = sphi 0, %s125
      %s128 = sphi 0, %s127
      %s142 = sphi 0, %s128
      %s146 = sphi 0, %s146
      %s148 = sphi 0, %s146
      %s149 = sphi 0, %s148
      %s163 = sphi 0, %s149
      %s167 = sphi 0, %s167
      %s169 = sphi 0, %s167
      %s170 = sphi 0, %s169
      %s184 = sphi 0, %s170
      %s188 = sphi 0, %s188
      %s190 = sphi 0, %s188
      %s191 = sphi 0, %s190
      %s205 = sphi 0, %s191
      %s209 = sphi 0, %s209
      %s211 = sphi 0, %s209
      %s212 = sphi 0, %s211
      %s226 = sphi 0, %s212
      %s230 = sphi 0, %s230
      %s232 = sphi 0, %s230
      %s233 = sphi 0, %s232
      %s247 = sphi 0, %s233
      %s251 = sphi 0, %s251
      %s253 = sphi 0, %s251
      %s254 = sphi 0, %s253
      %s268 = sphi 0, %s254
      %s272 = sphi 0, %s272
      %s274 = sphi 0, %s272
      %s275 = sphi 0, %s274
      %s289 = sphi 0, %s275
      %s293 = sphi 0, %s293
      %s295 = sphi 0, %s293
      %s296 = sphi 0, %s295
      %s310 = sphi 0, %s296
      %s314 = sphi 0, %s314
      %s316 = sphi 0, %s314
      %s317 = sphi 0, %s316
      %s331 = sphi 0, %s317
      %s335 = sphi 0, %s335
      %s337 = sphi 0, %s335
      %s338 = sphi 0, %s337
      %s352 = sphi 0, %s338
      %s356 = sphi 0, %s356
      %s358 = sphi 0, %s356
      %s359 = sphi 0, %s358
      %s373 = sphi 0, %s359
      %s377 = sphi 0, %s377
      %s379 = sphi 0, %s377
      %s380 = sphi 0, %s379
      %s394 = sphi 0, %s380
      %s398 = sphi 0, %s398
      %s400 = sphi 0, %s398
      %s401 = sphi 0, %s400
      %s415 = sphi 0, %s401
      %s419 = sphi 0, %s419
      %s421 = sphi 0, %s419
      %s422 = sphi 0, %s421
      %s436 = sphi 0, %s422
      %s440 = sphi 0, %s440
      %s442 = sphi 0, %s440
      %s443 = sphi 0, %s442
      %s457 = sphi 0, %s443
      %s461 = sphi 0, %s461
      %s463 = sphi 0, %s461
      %s464 = sphi 0, %s463
      %s478 = sphi 0, %s464
      %s484 = sphi 0, %s486
      %s487 = sphi 0, %s484
      %s488 = sphi 0, %s487
      %s504 = sphi 0, %s488
    $region4: #{tpu_custom_call.1} parent=1 // loop_header_branch
      %42 = sbr.rel (%p40) target = $region8
    $region5: #{tpu_custom_call.1} parent=1 // loop_body
      %s44 = ssub.s32 %s39, 1
      %s45 = ssub.s32 %s39, 2
      %s46 = sadd.s32 %s39, 1
      %s47 = ssub.s32 %s39, %s46
      %p48 = scmp.eq.s32.totalorder %s47, 0
      %s50 = sadd.s32 %s49, 1
      %s51 = scalar_select %p48, %s49, %s50
      %p54 = pneg %p48
      %p55 = scmp.eq.s32.totalorder %s39, 1
      %p56 = por %p54, %p55
      %p57 = scmp.ne.s32.totalorder %s49, %s52
      %p58 = scmp.eq.s32.totalorder %s39, 0
      %p59 = por %p57, %p58
      %p60 = scmp.ne.s32.totalorder %s49, %s52
      %p61 = scmp.eq.s32.totalorder %s44, 1
      %p62 = por %p60, %p61
      %p63 = scmp.ne.s32.totalorder %s52, %s53
      %p64 = scmp.eq.s32.totalorder %s44, 0
      %p65 = por %p63, %p64
      %p66 = scmp.ne.s32.totalorder %s52, %s53
      %p67 = scmp.eq.s32.totalorder %s45, 1
      %p68 = por %p66, %p67
      %p70 = scmp.ne.s32.totalorder %s53, %s69
      %p71 = scmp.eq.s32.totalorder %s45, 0
      %p72 = por %p70, %p71
      %s73 = ssub.s32 %s39, %s46
      %p74 = scmp.eq.s32.totalorder %s73, 0
      %s76 = sadd.s32 %s75, 1
      %s77 = scalar_select %p74, %s75, %s76
      %p80 = pneg %p74
      %p81 = scmp.eq.s32.totalorder %s39, 1
      %p82 = por %p80, %p81
      %p83 = scmp.ne.s32.totalorder %s75, %s78
      %p84 = scmp.eq.s32.totalorder %s39, 0
      %p85 = por %p83, %p84
      %p86 = scmp.ne.s32.totalorder %s75, %s78
      %p87 = scmp.eq.s32.totalorder %s44, 1
      %p88 = por %p86, %p87
      %p89 = scmp.ne.s32.totalorder %s78, %s79
      %p90 = scmp.eq.s32.totalorder %s44, 0
      %p91 = por %p89, %p90
      %p92 = scmp.ne.s32.totalorder %s78, %s79
      %p93 = scmp.eq.s32.totalorder %s45, 1
      %p94 = por %p92, %p93
      %p96 = scmp.ne.s32.totalorder %s79, %s95
      %p97 = scmp.eq.s32.totalorder %s45, 0
      %p98 = por %p96, %p97
      %s99 = ssub.s32 %s39, %s46
      %p100 = scmp.eq.s32.totalorder %s99, 0
      %s102 = sadd.s32 %s101, 1
      %s103 = scalar_select %p100, %s101, %s102
      %p106 = pneg %p100
      %p107 = scmp.eq.s32.totalorder %s39, 1
      %p108 = por %p106, %p107
      %p109 = scmp.ne.s32.totalorder %s101, %s104
      %p110 = scmp.eq.s32.totalorder %s39, 0
      %p111 = por %p109, %p110
      %p112 = scmp.ne.s32.totalorder %s101, %s104
      %p113 = scmp.eq.s32.totalorder %s44, 1
      %p114 = por %p112, %p113
      %p115 = scmp.ne.s32.totalorder %s104, %s105
      %p116 = scmp.eq.s32.totalorder %s44, 0
      %p117 = por %p115, %p116
      %p118 = scmp.ne.s32.totalorder %s104, %s105
      %p119 = scmp.eq.s32.totalorder %s45, 1
      %p120 = por %p118, %p119
      %p122 = scmp.ne.s32.totalorder %s105, %s121
      %p123 = scmp.eq.s32.totalorder %s45, 0
      %p124 = por %p122, %p123
      %s126 = sadd.s32 %s125, 1
      %p129 = scmp.eq.s32.totalorder %s39, 1
      %p130 = scmp.ne.s32.totalorder %s125, %s127
      %p131 = scmp.eq.s32.totalorder %s39, 0
      %p132 = por %p130, %p131
      %p133 = scmp.ne.s32.totalorder %s125, %s127
      %p134 = scmp.eq.s32.totalorder %s44, 1
      %p135 = por %p133, %p134
      %p136 = scmp.ne.s32.totalorder %s127, %s128
      %p137 = scmp.eq.s32.totalorder %s44, 0
      %p138 = por %p136, %p137
      %p139 = scmp.ne.s32.totalorder %s127, %s128
      %p140 = scmp.eq.s32.totalorder %s45, 1
      %p141 = por %p139, %p140
      %p143 = scmp.ne.s32.totalorder %s128, %s142
      %p144 = scmp.eq.s32.totalorder %s45, 0
      %p145 = por %p143, %p144
      %s147 = sadd.s32 %s146, 1
      %p150 = scmp.eq.s32.totalorder %s39, 1
      %p151 = scmp.ne.s32.totalorder %s146, %s148
      %p152 = scmp.eq.s32.totalorder %s39, 0
      %p153 = por %p151, %p152
      %p154 = scmp.ne.s32.totalorder %s146, %s148
      %p155 = scmp.eq.s32.totalorder %s44, 1
      %p156 = por %p154, %p155
      %p157 = scmp.ne.s32.totalorder %s148, %s149
      %p158 = scmp.eq.s32.totalorder %s44, 0
      %p159 = por %p157, %p158
      %p160 = scmp.ne.s32.totalorder %s148, %s149
      %p161 = scmp.eq.s32.totalorder %s45, 1
      %p162 = por %p160, %p161
      %p164 = scmp.ne.s32.totalorder %s149, %s163
      %p165 = scmp.eq.s32.totalorder %s45, 0
      %p166 = por %p164, %p165
      %s168 = sadd.s32 %s167, 1
      %p171 = scmp.eq.s32.totalorder %s39, 1
      %p172 = scmp.ne.s32.totalorder %s167, %s169
      %p173 = scmp.eq.s32.totalorder %s39, 0
      %p174 = por %p172, %p173
      %p175 = scmp.ne.s32.totalorder %s167, %s169
      %p176 = scmp.eq.s32.totalorder %s44, 1
      %p177 = por %p175, %p176
      %p178 = scmp.ne.s32.totalorder %s169, %s170
      %p179 = scmp.eq.s32.totalorder %s44, 0
      %p180 = por %p178, %p179
      %p181 = scmp.ne.s32.totalorder %s169, %s170
      %p182 = scmp.eq.s32.totalorder %s45, 1
      %p183 = por %p181, %p182
      %p185 = scmp.ne.s32.totalorder %s170, %s184
      %p186 = scmp.eq.s32.totalorder %s45, 0
      %p187 = por %p185, %p186
      %s189 = sadd.s32 %s188, 1
      %p192 = scmp.eq.s32.totalorder %s39, 1
      %p193 = scmp.ne.s32.totalorder %s188, %s190
      %p194 = scmp.eq.s32.totalorder %s39, 0
      %p195 = por %p193, %p194
      %p196 = scmp.ne.s32.totalorder %s188, %s190
      %p197 = scmp.eq.s32.totalorder %s44, 1
      %p198 = por %p196, %p197
      %p199 = scmp.ne.s32.totalorder %s190, %s191
      %p200 = scmp.eq.s32.totalorder %s44, 0
      %p201 = por %p199, %p200
      %p202 = scmp.ne.s32.totalorder %s190, %s191
      %p203 = scmp.eq.s32.totalorder %s45, 1
      %p204 = por %p202, %p203
      %p206 = scmp.ne.s32.totalorder %s191, %s205
      %p207 = scmp.eq.s32.totalorder %s45, 0
      %p208 = por %p206, %p207
      %s210 = sadd.s32 %s209, 1
      %p213 = scmp.eq.s32.totalorder %s39, 1
      %p214 = scmp.ne.s32.totalorder %s209, %s211
      %p215 = scmp.eq.s32.totalorder %s39, 0
      %p216 = por %p214, %p215
      %p217 = scmp.ne.s32.totalorder %s209, %s211
      %p218 = scmp.eq.s32.totalorder %s44, 1
      %p219 = por %p217, %p218
      %p220 = scmp.ne.s32.totalorder %s211, %s212
      %p221 = scmp.eq.s32.totalorder %s44, 0
      %p222 = por %p220, %p221
      %p223 = scmp.ne.s32.totalorder %s211, %s212
      %p224 = scmp.eq.s32.totalorder %s45, 1
      %p225 = por %p223, %p224
      %p227 = scmp.ne.s32.totalorder %s212, %s226
      %p228 = scmp.eq.s32.totalorder %s45, 0
      %p229 = por %p227, %p228
      %s231 = sadd.s32 %s230, 1
      %p234 = scmp.eq.s32.totalorder %s39, 1
      %p235 = scmp.ne.s32.totalorder %s230, %s232
      %p236 = scmp.eq.s32.totalorder %s39, 0
      %p237 = por %p235, %p236
      %p238 = scmp.ne.s32.totalorder %s230, %s232
      %p239 = scmp.eq.s32.totalorder %s44, 1
      %p240 = por %p238, %p239
      %p241 = scmp.ne.s32.totalorder %s232, %s233
      %p242 = scmp.eq.s32.totalorder %s44, 0
      %p243 = por %p241, %p242
      %p244 = scmp.ne.s32.totalorder %s232, %s233
      %p245 = scmp.eq.s32.totalorder %s45, 1
      %p246 = por %p244, %p245
      %p248 = scmp.ne.s32.totalorder %s233, %s247
      %p249 = scmp.eq.s32.totalorder %s45, 0
      %p250 = por %p248, %p249
      %s252 = sadd.s32 %s251, 1
      %p255 = scmp.eq.s32.totalorder %s39, 1
      %p256 = scmp.ne.s32.totalorder %s251, %s253
      %p257 = scmp.eq.s32.totalorder %s39, 0
      %p258 = por %p256, %p257
      %p259 = scmp.ne.s32.totalorder %s251, %s253
      %p260 = scmp.eq.s32.totalorder %s44, 1
      %p261 = por %p259, %p260
      %p262 = scmp.ne.s32.totalorder %s253, %s254
      %p263 = scmp.eq.s32.totalorder %s44, 0
      %p264 = por %p262, %p263
      %p265 = scmp.ne.s32.totalorder %s253, %s254
      %p266 = scmp.eq.s32.totalorder %s45, 1
      %p267 = por %p265, %p266
      %p269 = scmp.ne.s32.totalorder %s254, %s268
      %p270 = scmp.eq.s32.totalorder %s45, 0
      %p271 = por %p269, %p270
      %s273 = sadd.s32 %s272, 1
      %p276 = scmp.eq.s32.totalorder %s39, 1
      %p277 = scmp.ne.s32.totalorder %s272, %s274
      %p278 = scmp.eq.s32.totalorder %s39, 0
      %p279 = por %p277, %p278
      %p280 = scmp.ne.s32.totalorder %s272, %s274
      %p281 = scmp.eq.s32.totalorder %s44, 1
      %p282 = por %p280, %p281
      %p283 = scmp.ne.s32.totalorder %s274, %s275
      %p284 = scmp.eq.s32.totalorder %s44, 0
      %p285 = por %p283, %p284
      %p286 = scmp.ne.s32.totalorder %s274, %s275
      %p287 = scmp.eq.s32.totalorder %s45, 1
      %p288 = por %p286, %p287
      %p290 = scmp.ne.s32.totalorder %s275, %s289
      %p291 = scmp.eq.s32.totalorder %s45, 0
      %p292 = por %p290, %p291
      %s294 = sadd.s32 %s293, 1
      %p297 = scmp.eq.s32.totalorder %s39, 1
      %p298 = scmp.ne.s32.totalorder %s293, %s295
      %p299 = scmp.eq.s32.totalorder %s39, 0
      %p300 = por %p298, %p299
      %p301 = scmp.ne.s32.totalorder %s293, %s295
      %p302 = scmp.eq.s32.totalorder %s44, 1
      %p303 = por %p301, %p302
      %p304 = scmp.ne.s32.totalorder %s295, %s296
      %p305 = scmp.eq.s32.totalorder %s44, 0
      %p306 = por %p304, %p305
      %p307 = scmp.ne.s32.totalorder %s295, %s296
      %p308 = scmp.eq.s32.totalorder %s45, 1
      %p309 = por %p307, %p308
      %p311 = scmp.ne.s32.totalorder %s296, %s310
      %p312 = scmp.eq.s32.totalorder %s45, 0
      %p313 = por %p311, %p312
      %s315 = sadd.s32 %s314, 1
      %p318 = scmp.eq.s32.totalorder %s39, 1
      %p319 = scmp.ne.s32.totalorder %s314, %s316
      %p320 = scmp.eq.s32.totalorder %s39, 0
      %p321 = por %p319, %p320
      %p322 = scmp.ne.s32.totalorder %s314, %s316
      %p323 = scmp.eq.s32.totalorder %s44, 1
      %p324 = por %p322, %p323
      %p325 = scmp.ne.s32.totalorder %s316, %s317
      %p326 = scmp.eq.s32.totalorder %s44, 0
      %p327 = por %p325, %p326
      %p328 = scmp.ne.s32.totalorder %s316, %s317
      %p329 = scmp.eq.s32.totalorder %s45, 1
      %p330 = por %p328, %p329
      %p332 = scmp.ne.s32.totalorder %s317, %s331
      %p333 = scmp.eq.s32.totalorder %s45, 0
      %p334 = por %p332, %p333
      %s336 = sadd.s32 %s335, 1
      %p339 = scmp.eq.s32.totalorder %s39, 1
      %p340 = scmp.ne.s32.totalorder %s335, %s337
      %p341 = scmp.eq.s32.totalorder %s39, 0
      %p342 = por %p340, %p341
      %p343 = scmp.ne.s32.totalorder %s335, %s337
      %p344 = scmp.eq.s32.totalorder %s44, 1
      %p345 = por %p343, %p344
      %p346 = scmp.ne.s32.totalorder %s337, %s338
      %p347 = scmp.eq.s32.totalorder %s44, 0
      %p348 = por %p346, %p347
      %p349 = scmp.ne.s32.totalorder %s337, %s338
      %p350 = scmp.eq.s32.totalorder %s45, 1
      %p351 = por %p349, %p350
      %p353 = scmp.ne.s32.totalorder %s338, %s352
      %p354 = scmp.eq.s32.totalorder %s45, 0
      %p355 = por %p353, %p354
      %s357 = sadd.s32 %s356, 1
      %p360 = scmp.eq.s32.totalorder %s39, 1
      %p361 = scmp.ne.s32.totalorder %s356, %s358
      %p362 = scmp.eq.s32.totalorder %s39, 0
      %p363 = por %p361, %p362
      %p364 = scmp.ne.s32.totalorder %s356, %s358
      %p365 = scmp.eq.s32.totalorder %s44, 1
      %p366 = por %p364, %p365
      %p367 = scmp.ne.s32.totalorder %s358, %s359
      %p368 = scmp.eq.s32.totalorder %s44, 0
      %p369 = por %p367, %p368
      %p370 = scmp.ne.s32.totalorder %s358, %s359
      %p371 = scmp.eq.s32.totalorder %s45, 1
      %p372 = por %p370, %p371
      %p374 = scmp.ne.s32.totalorder %s359, %s373
      %p375 = scmp.eq.s32.totalorder %s45, 0
      %p376 = por %p374, %p375
      %s378 = sadd.s32 %s377, 1
      %p381 = scmp.eq.s32.totalorder %s39, 1
      %p382 = scmp.ne.s32.totalorder %s377, %s379
      %p383 = scmp.eq.s32.totalorder %s39, 0
      %p384 = por %p382, %p383
      %p385 = scmp.ne.s32.totalorder %s377, %s379
      %p386 = scmp.eq.s32.totalorder %s44, 1
      %p387 = por %p385, %p386
      %p388 = scmp.ne.s32.totalorder %s379, %s380
      %p389 = scmp.eq.s32.totalorder %s44, 0
      %p390 = por %p388, %p389
      %p391 = scmp.ne.s32.totalorder %s379, %s380
      %p392 = scmp.eq.s32.totalorder %s45, 1
      %p393 = por %p391, %p392
      %p395 = scmp.ne.s32.totalorder %s380, %s394
      %p396 = scmp.eq.s32.totalorder %s45, 0
      %p397 = por %p395, %p396
      %s399 = sadd.s32 %s398, 1
      %p402 = scmp.eq.s32.totalorder %s39, 1
      %p403 = scmp.ne.s32.totalorder %s398, %s400
      %p404 = scmp.eq.s32.totalorder %s39, 0
      %p405 = por %p403, %p404
      %p406 = scmp.ne.s32.totalorder %s398, %s400
      %p407 = scmp.eq.s32.totalorder %s44, 1
      %p408 = por %p406, %p407
      %p409 = scmp.ne.s32.totalorder %s400, %s401
      %p410 = scmp.eq.s32.totalorder %s44, 0
      %p411 = por %p409, %p410
      %p412 = scmp.ne.s32.totalorder %s400, %s401
      %p413 = scmp.eq.s32.totalorder %s45, 1
      %p414 = por %p412, %p413
      %p416 = scmp.ne.s32.totalorder %s401, %s415
      %p417 = scmp.eq.s32.totalorder %s45, 0
      %p418 = por %p416, %p417
      %s420 = sadd.s32 %s419, 1
      %p423 = scmp.eq.s32.totalorder %s39, 1
      %p424 = scmp.ne.s32.totalorder %s419, %s421
      %p425 = scmp.eq.s32.totalorder %s39, 0
      %p426 = por %p424, %p425
      %p427 = scmp.ne.s32.totalorder %s419, %s421
      %p428 = scmp.eq.s32.totalorder %s44, 1
      %p429 = por %p427, %p428
      %p430 = scmp.ne.s32.totalorder %s421, %s422
      %p431 = scmp.eq.s32.totalorder %s44, 0
      %p432 = por %p430, %p431
      %p433 = scmp.ne.s32.totalorder %s421, %s422
      %p434 = scmp.eq.s32.totalorder %s45, 1
      %p435 = por %p433, %p434
      %p437 = scmp.ne.s32.totalorder %s422, %s436
      %p438 = scmp.eq.s32.totalorder %s45, 0
      %p439 = por %p437, %p438
      %s441 = sadd.s32 %s440, 1
      %p444 = scmp.eq.s32.totalorder %s39, 1
      %p445 = scmp.ne.s32.totalorder %s440, %s442
      %p446 = scmp.eq.s32.totalorder %s39, 0
      %p447 = por %p445, %p446
      %p448 = scmp.ne.s32.totalorder %s440, %s442
      %p449 = scmp.eq.s32.totalorder %s44, 1
      %p450 = por %p448, %p449
      %p451 = scmp.ne.s32.totalorder %s442, %s443
      %p452 = scmp.eq.s32.totalorder %s44, 0
      %p453 = por %p451, %p452
      %p454 = scmp.ne.s32.totalorder %s442, %s443
      %p455 = scmp.eq.s32.totalorder %s45, 1
      %p456 = por %p454, %p455
      %p458 = scmp.ne.s32.totalorder %s443, %s457
      %p459 = scmp.eq.s32.totalorder %s45, 0
      %p460 = por %p458, %p459
      %s462 = sadd.s32 %s461, 1
      %p465 = scmp.eq.s32.totalorder %s39, 1
      %p466 = scmp.ne.s32.totalorder %s461, %s463
      %p467 = scmp.eq.s32.totalorder %s39, 0
      %p468 = por %p466, %p467
      %p469 = scmp.ne.s32.totalorder %s461, %s463
      %p470 = scmp.eq.s32.totalorder %s44, 1
      %p471 = por %p469, %p470
      %p472 = scmp.ne.s32.totalorder %s463, %s464
      %p473 = scmp.eq.s32.totalorder %s44, 0
      %p474 = por %p472, %p473
      %p475 = scmp.ne.s32.totalorder %s463, %s464
      %p476 = scmp.eq.s32.totalorder %s45, 1
      %p477 = por %p475, %p476
      %p479 = scmp.ne.s32.totalorder %s464, %s478
      %p480 = scmp.eq.s32.totalorder %s45, 0
      %p481 = por %p479, %p480
      %s482 = ssub.s32 %s39, %s46
      %p483 = scmp.eq.s32.totalorder %s482, 0
      %s485 = sadd.s32 %s484, 1
      %s486 = scalar_select %p483, %s484, %s485
      %p489 = pneg %p483
      %p490 = scmp.eq.s32.totalorder %s39, 1
      %p491 = por %p489, %p490
      %p492 = scmp.ne.s32.totalorder %s484, %s487
      %p493 = scmp.eq.s32.totalorder %s39, 0
      %p494 = por %p492, %p493
      %p495 = scmp.ne.s32.totalorder %s484, %s487
      %p496 = scmp.eq.s32.totalorder %s44, 1
      %p497 = por %p495, %p496
      %p498 = scmp.ne.s32.totalorder %s487, %s488
      %p499 = scmp.eq.s32.totalorder %s44, 0
      %p500 = por %p498, %p499
      %p501 = scmp.ne.s32.totalorder %s487, %s488
      %p502 = scmp.eq.s32.totalorder %s45, 1
      %p503 = por %p501, %p502
      %p505 = scmp.ne.s32.totalorder %s488, %s504
      %p506 = scmp.eq.s32.totalorder %s45, 0
      %p507 = por %p505, %p506
      %p508 = scmp.le.s32.totalorder 1, %s39
      %p509 = scmp.lt.s32.totalorder %s39, 3
      %p510 = pnand %p508, %p509
      %p511 = pneg %p510
      // Predicated region
      $region9: #{tpu_custom_call.1} parent=5 // pred_check
        _
      $region10: #{tpu_custom_call.1} parent=5 // pred_check_branch
        %513 = sbr.rel (%p510) target = $region12
      $region11: #{tpu_custom_call.1} parent=5 // pred_region
        %s514 = ssub.s32 %s39, 1
        // Predicated region
        $region13: #{tpu_custom_call.1} parent=11 // pred_check
          %p515 = pneg %p138
        $region14: #{tpu_custom_call.1} parent=11 // pred_check_branch
          %517 = sbr.rel (%p515) target = $region16
        $region15: #{tpu_custom_call.1} parent=11 // pred_region
          %519 = vsyncadd [#allocation6], 0
          %s521 = sshll.u32 %s4, 4
          %s522 = int_to_ptr.vmem [resolvable:$true] %s521
          %524 = dma.vmem_to_smem %s522, 16, [#allocation4], [#allocation6]
        $region16: #{tpu_custom_call.1} parent=11 // pred_fallthru
          _
        // Predicated region
        $region17: #{tpu_custom_call.1} parent=11 // pred_check
          %p525 = pneg %p159
        $region18: #{tpu_custom_call.1} parent=11 // pred_check_branch
          %527 = sbr.rel (%p525) target = $region20
        $region19: #{tpu_custom_call.1} parent=11 // pred_region
          _
        $region20: #{tpu_custom_call.1} parent=11 // pred_fallthru
          _
        // Predicated region
        $region21: #{tpu_custom_call.1} parent=11 // pred_check
          %p528 = pneg %p180
        $region22: #{tpu_custom_call.1} parent=11 // pred_check_branch
          %530 = sbr.rel (%p528) target = $region24
        $region23: #{tpu_custom_call.1} parent=11 // pred_region
          _
        $region24: #{tpu_custom_call.1} parent=11 // pred_fallthru
          _
        // Predicated region
        $region25: #{tpu_custom_call.1} parent=11 // pred_check
          %p531 = pneg %p201
        $region26: #{tpu_custom_call.1} parent=11 // pred_check_branch
          %533 = sbr.rel (%p531) target = $region28
        $region27: #{tpu_custom_call.1} parent=11 // pred_region
          _
        $region28: #{tpu_custom_call.1} parent=11 // pred_fallthru
          _
        // Predicated region
        $region29: #{tpu_custom_call.1} parent=11 // pred_check
          %p534 = pneg %p222
        $region30: #{tpu_custom_call.1} parent=11 // pred_check_branch
          %536 = sbr.rel (%p534) target = $region32
        $region31: #{tpu_custom_call.1} parent=11 // pred_region
          _
        $region32: #{tpu_custom_call.1} parent=11 // pred_fallthru
          _
        // Predicated region
        $region33: #{tpu_custom_call.1} parent=11 // pred_check
          %p537 = pneg %p243
        $region34: #{tpu_custom_call.1} parent=11 // pred_check_branch
          %539 = sbr.rel (%p537) target = $region36
        $region35: #{tpu_custom_call.1} parent=11 // pred_region
          _
        $region36: #{tpu_custom_call.1} parent=11 // pred_fallthru
          _
        // Predicated region
        $region37: #{tpu_custom_call.1} parent=11 // pred_check
          %p540 = pneg %p264
        $region38: #{tpu_custom_call.1} parent=11 // pred_check_branch
          %542 = sbr.rel (%p540) target = $region40
        $region39: #{tpu_custom_call.1} parent=11 // pred_region
          _
        $region40: #{tpu_custom_call.1} parent=11 // pred_fallthru
          _
        // Predicated region
        $region41: #{tpu_custom_call.1} parent=11 // pred_check
          %p543 = pneg %p285
        $region42: #{tpu_custom_call.1} parent=11 // pred_check_branch
          %545 = sbr.rel (%p543) target = $region44
        $region43: #{tpu_custom_call.1} parent=11 // pred_region
          _
        $region44: #{tpu_custom_call.1} parent=11 // pred_fallthru
          _
        // Predicated region
        $region45: #{tpu_custom_call.1} parent=11 // pred_check
          %p546 = pneg %p306
        $region46: #{tpu_custom_call.1} parent=11 // pred_check_branch
          %548 = sbr.rel (%p546) target = $region48
        $region47: #{tpu_custom_call.1} parent=11 // pred_region
          _
        $region48: #{tpu_custom_call.1} parent=11 // pred_fallthru
          _
        // Predicated region
        $region49: #{tpu_custom_call.1} parent=11 // pred_check
          %p549 = pneg %p327
        $region50: #{tpu_custom_call.1} parent=11 // pred_check_branch
          %551 = sbr.rel (%p549) target = $region52
        $region51: #{tpu_custom_call.1} parent=11 // pred_region
          _
        $region52: #{tpu_custom_call.1} parent=11 // pred_fallthru
          _
        // Predicated region
        $region53: #{tpu_custom_call.1} parent=11 // pred_check
          %p552 = pneg %p348
        $region54: #{tpu_custom_call.1} parent=11 // pred_check_branch
          %554 = sbr.rel (%p552) target = $region56
        $region55: #{tpu_custom_call.1} parent=11 // pred_region
          _
        $region56: #{tpu_custom_call.1} parent=11 // pred_fallthru
          _
        // Predicated region
        $region57: #{tpu_custom_call.1} parent=11 // pred_check
          %p555 = pneg %p369
        $region58: #{tpu_custom_call.1} parent=11 // pred_check_branch
          %557 = sbr.rel (%p555) target = $region60
        $region59: #{tpu_custom_call.1} parent=11 // pred_region
          _
        $region60: #{tpu_custom_call.1} parent=11 // pred_fallthru
          _
        // Predicated region
        $region61: #{tpu_custom_call.1} parent=11 // pred_check
          %p558 = pneg %p390
        $region62: #{tpu_custom_call.1} parent=11 // pred_check_branch
          %560 = sbr.rel (%p558) target = $region64
        $region63: #{tpu_custom_call.1} parent=11 // pred_region
          _
        $region64: #{tpu_custom_call.1} parent=11 // pred_fallthru
          _
        // Predicated region
        $region65: #{tpu_custom_call.1} parent=11 // pred_check
          %p561 = pneg %p411
        $region66: #{tpu_custom_call.1} parent=11 // pred_check_branch
          %563 = sbr.rel (%p561) target = $region68
        $region67: #{tpu_custom_call.1} parent=11 // pred_region
          _
        $region68: #{tpu_custom_call.1} parent=11 // pred_fallthru
          _
        // Predicated region
        $region69: #{tpu_custom_call.1} parent=11 // pred_check
          %p564 = pneg %p432
        $region70: #{tpu_custom_call.1} parent=11 // pred_check_branch
          %566 = sbr.rel (%p564) target = $region72
        $region71: #{tpu_custom_call.1} parent=11 // pred_region
          _
        $region72: #{tpu_custom_call.1} parent=11 // pred_fallthru
          _
        // Predicated region
        $region73: #{tpu_custom_call.1} parent=11 // pred_check
          %p567 = pneg %p453
        $region74: #{tpu_custom_call.1} parent=11 // pred_check_branch
          %569 = sbr.rel (%p567) target = $region76
        $region75: #{tpu_custom_call.1} parent=11 // pred_region
          _
        $region76: #{tpu_custom_call.1} parent=11 // pred_fallthru
          _
        // Predicated region
        $region77: #{tpu_custom_call.1} parent=11 // pred_check
          %p570 = pneg %p474
        $region78: #{tpu_custom_call.1} parent=11 // pred_check_branch
          %572 = sbr.rel (%p570) target = $region80
        $region79: #{tpu_custom_call.1} parent=11 // pred_region
          _
        $region80: #{tpu_custom_call.1} parent=11 // pred_fallthru
          _
      $region12: #{tpu_custom_call.1} parent=5 // pred_fallthru
        _
      %p573 = scmp.lt.s32.totalorder %s39, 2
      // Predicated region
      $region81: #{tpu_custom_call.1} parent=5 // pred_check
        %p574 = pneg %p573
      $region82: #{tpu_custom_call.1} parent=5 // pred_check_branch
        %576 = sbr.rel (%p574) target = $region84
      $region83: #{tpu_custom_call.1} parent=5 // pred_region
        // Predicated region
        $region85: #{tpu_custom_call.1} parent=83 // pred_check
          %p577 = pneg %p59
        $region86: #{tpu_custom_call.1} parent=83 // pred_check_branch
          %579 = sbr.rel (%p577) target = $region88
        $region87: #{tpu_custom_call.1} parent=83 // pred_region
          %p580 = scmp.lt.s32.totalorder %s39, 1
          %s581 = scalar_select %p580, %s39, 1
          %s582 = smul.addr %s581, 2
          %s583 = smul.addr %s582, 8
          %s584 = scalar_lea.vmem %s1, %s583
        $region88: #{tpu_custom_call.1} parent=83 // pred_fallthru
          _
        // Predicated region
        $region89: #{tpu_custom_call.1} parent=83 // pred_check
          %p585 = pneg %p85
        $region90: #{tpu_custom_call.1} parent=83 // pred_check_branch
          %587 = sbr.rel (%p585) target = $region92
        $region91: #{tpu_custom_call.1} parent=83 // pred_region
          %p588 = scmp.lt.s32.totalorder %s39, 1
          %s589 = scalar_select %p588, %s39, 1
          %s590 = scalar_lea.vmem %s2, %s589
        $region92: #{tpu_custom_call.1} parent=83 // pred_fallthru
          _
        // Predicated region
        $region93: #{tpu_custom_call.1} parent=83 // pred_check
          %p591 = pneg %p111
        $region94: #{tpu_custom_call.1} parent=83 // pred_check_branch
          %593 = sbr.rel (%p591) target = $region96
        $region95: #{tpu_custom_call.1} parent=83 // pred_region
          %p594 = scmp.lt.s32.totalorder %s39, 1
          %s595 = scalar_select %p594, %s39, 1
          %s596 = smul.addr %s595, 2
          %s597 = scalar_lea.vmem %s3, %s596
        $region96: #{tpu_custom_call.1} parent=83 // pred_fallthru
          _
      $region84: #{tpu_custom_call.1} parent=5 // pred_fallthru
        _
      %p598 = scmp.le.s32.totalorder 1, %s39
      %p599 = scmp.lt.s32.totalorder %s39, 3
      %p600 = pnand %p598, %p599
      %p601 = pneg %p600
      // Predicated region
      $region97: #{tpu_custom_call.1} parent=5 // pred_check
        _
      $region98: #{tpu_custom_call.1} parent=5 // pred_check_branch
        %603 = sbr.rel (%p600) target = $region100
      $region99: #{tpu_custom_call.1} parent=5 // pred_region
        %s604 = ssub.s32 %s39, 1
        // Predicated region
        $region101: #{tpu_custom_call.1} parent=99 // pred_check
          %p605 = pneg %p138
        $region102: #{tpu_custom_call.1} parent=99 // pred_check_branch
          %607 = sbr.rel (%p605) target = $region104
        $region103: #{tpu_custom_call.1} parent=99 // pred_region
          %609 = dma.done [#allocation6], 16
        $region104: #{tpu_custom_call.1} parent=99 // pred_fallthru
          _
        %610 = sfence
        %p611 = scmp.lt.s32.totalorder %s44, 1
        %s612 = scalar_select %p611, %s44, 1
        %s613 = smul.addr %s612, 2
        %s614 = smul.addr %s613, 8
        %s615 = scalar_lea.vmem %s1, %s614
        %p616 = pneg %p65
        %p617 = pneg %p62
        %p618 = scmp.lt.s32.totalorder %s44, 1
        %s619 = scalar_select %p618, %s44, 1
        %s620 = scalar_lea.vmem %s2, %s619
        %p621 = pneg %p91
        %p622 = pneg %p88
        %p623 = scmp.lt.s32.totalorder %s44, 1
        %s624 = scalar_select %p623, %s44, 1
        %s625 = smul.addr %s624, 2
        %s626 = scalar_lea.vmem %s3, %s625
        %p627 = pneg %p117
        %p628 = pneg %p114
        %p629 = pneg %p138
        %p630 = pneg %p135
        %p631 = pneg %p159
        %p632 = pneg %p156
        %p633 = pneg %p180
        %p634 = pneg %p177
        %p635 = pneg %p201
        %p636 = pneg %p198
        %p637 = pneg %p222
        %p638 = pneg %p219
        %p639 = pneg %p243
        %p640 = pneg %p240
        %p641 = pneg %p264
        %p642 = pneg %p261
        %p643 = pneg %p285
        %p644 = pneg %p282
        %p645 = pneg %p306
        %p646 = pneg %p303
        %p647 = pneg %p327
        %p648 = pneg %p324
        %p649 = pneg %p348
        %p650 = pneg %p345
        %p651 = pneg %p369
        %p652 = pneg %p366
        %p653 = pneg %p390
        %p654 = pneg %p387
        %p655 = pneg %p411
        %p656 = pneg %p408
        %p657 = pneg %p432
        %p658 = pneg %p429
        %p659 = pneg %p453
        %p660 = pneg %p450
        %p661 = pneg %p474
        %p662 = pneg %p471
        %p663 = pneg %p500
        %p664 = pneg %p497
        %s665 = sand.u32 %s487, 1
        %s666 = scalar_lea.sflag [#allocation5], %s665
        %s667 = sand.u32 %s487, 1
        %s668 = scalar_lea.vmem [#allocation7], %s667
        %p669 = scmp.lt.s32.totalorder %s44, 1
        %s670 = scalar_select %p669, %s44, 1
        %s671 = smul.addr %s670, 2
        %s672 = smul.addr %s671, 8
        %s673 = scalar_lea.vmem %s1, %s672
        %p674 = scmp.lt.s32.totalorder %s44, 1
        %s675 = scalar_select %p674, %s44, 1
        %s676 = scalar_lea.vmem %s2, %s675
        %p677 = scmp.lt.s32.totalorder %s44, 1
        %s678 = scalar_select %p677, %s44, 1
        %s679 = smul.addr %s678, 2
        %s680 = scalar_lea.vmem %s3, %s679
        %s682 = smul.u32 %s44, 2
        %v683 = vld [vmem:[%s673] sm:$0xff]
        %v684 = vld [vmem:[%s673 + $0x8] sm:$0xff]
        %v685 = vlaneseq
        %v686 = vand.u32 %v685, 127
        %vm687 = vcmp.ge.s32.totalorder %v686, 0
        %vm688 = vcmp.lt.s32.totalorder %v686, 8
        %vm689 = vmand %vm687, %vm688
        %v690 = vsel %vm689, 1, 0
        %v691 = vcvt.s32.f32 %v690
        %v692 = vpack.c.bf16 %v691, %v691
        %vm693 = vcmp.ge.s32.totalorder %v686, 8
        %vm694 = vcmp.lt.s32.totalorder %v686, 16
        %vm695 = vmand %vm693, %vm694
        %v696 = vsel %vm695, 1, 0
        %v697 = vcvt.s32.f32 %v696
        %v698 = vpack.c.bf16 %v697, %v697
        %vm699 = vcmp.ge.s32.totalorder %v686, 16
        %vm700 = vcmp.lt.s32.totalorder %v686, 24
        %vm701 = vmand %vm699, %vm700
        %v702 = vsel %vm701, 1, 0
        %v703 = vcvt.s32.f32 %v702
        %v704 = vpack.c.bf16 %v703, %v703
        %vm705 = vcmp.ge.s32.totalorder %v686, 24
        %vm706 = vcmp.lt.s32.totalorder %v686, 32
        %vm707 = vmand %vm705, %vm706
        %v708 = vsel %vm707, 1, 0
        %v709 = vcvt.s32.f32 %v708
        %v710 = vpack.c.bf16 %v709, %v709
        %v711 = vlaneseq
        %v712 = vshrl.u32 %v711, 7
        %v713 = vadd.s32 %v712, 8
        %s714 = sld [smem:[#allocation3 + %s682]]
        %vm715 = vcmp.ge.s32.totalorder %v712, 0
        %vm716 = vcmp.ge.s32.totalorder %v713, 0
        %vm717 = vcmp.lt.s32.totalorder %v712, 8
        %vm718 = vcmp.lt.s32.totalorder %v713, 8
        %vm719 = vmand %vm715, %vm717
        %vm720 = vmand %vm716, %vm718
        %v721 = vstv %s714
        %vm722 = vcmp.lt.s32.totalorder %v686, %v721
        %vm723 = vmand %vm687, %vm722
        %vm724 = vmand %vm719, %vm723
        %vm725 = vmand %vm720, %vm723
        %s726 = sadd.s32 %s682, 1
        %s727 = sld [smem:[#allocation3 + %s726]]
        %vm728 = vcmp.ge.s32.totalorder %v712, 8
        %vm729 = vcmp.ge.s32.totalorder %v713, 8
        %vm730 = vcmp.lt.s32.totalorder %v712, 16
        %vm731 = vcmp.lt.s32.totalorder %v713, 16
        %vm732 = vmand %vm728, %vm730
        %vm733 = vmand %vm729, %vm731
        %s734 = sadd.s32 %s727, 8
        %v735 = vstv %s734
        %vm736 = vcmp.lt.s32.totalorder %v686, %v735
        %vm737 = vmand %vm693, %vm736
        %vm738 = vmand %vm732, %vm737
        %vm739 = vmand %vm733, %vm737
        %vm740 = vmor %vm724, %vm738
        %vm741 = vmor %vm725, %vm739
        %v742 = vsel %vm740, 0.0, -1e+30
        %v743 = vsel %vm741, 0.0, -1e+30
        %v744 = vpack.c.bf16 %v684, %v683
        %v745 = vld [vmem:[%s5] sm:$0xf]
        %v746 = vld [vmem:[%s5 + $0x4] sm:$0xf]
        %v747 = vld [vmem:[%s5 + $0x8] sm:$0xf]
        %v748 = vld [vmem:[%s5 + $0xc] sm:$0xf]
        %v749 = vld [vmem:[%s6] sm:$0x1]
        %v751 = vperm.slane %v749, 0
        %v757 = vunpack.c.l.b16 %v745
        %v758 = vunpack.c.l.b16 %v746
        %v759 = vunpack.c.l.b16 %v747
        %v760 = vunpack.c.l.b16 %v748
        %v761 = vpack.c.b16 %v758, %v757
        %v762 = vpack.c.b16 %v760, %v759
        %vm765 = vcmask 261120
        %v767 = vsel %vm765, %v744, 0
        %769 = vmatpush.bf16.msra.mxu0 0
        %770 = vmatpush.bf16.msra.mxu0 0
        %771 = vmatpush.bf16.msra.mxu0 0
        %772 = vmatpush.bf16.msra.mxu0 0
        %773 = vmatpush.bf16.msra.mxu0 0
        %774 = vmatpush.bf16.msra.mxu0 0
        %775 = vmatpush.bf16.msra.mxu0 %v762
        %776 = vmatpush.bf16.msra.mxu0 %v761
        %777 = vmatmul.bf16.gmra.mxu0 %v767
        %v778 = vpop.f32.mrf.mxu0
        %v779 = vadd.f32 %v751, %v778
        %v780 = vpop.f32.mrf.mxu0
        %v781 = vadd.f32 %v751, %v780
        %782 = vdwg.mxu0
        %v783 = vpack.c.bf16 %v779, %v779
        %v784 = vpack.c.bf16 %v781, %v781
        %v785 = vpack.c.bf16 %v781, %v779
        %v786 = vunpack.c.l.bf16 %v783
        %v787 = vunpack.c.l.bf16 %v784
        %v788 = vunpack.c.l.bf16 %v692
        %v789 = vmul.f32 %v786, %v788
        %v790 = vmul.f32 %v787, %v788
        %v791 = vpack.c.bf16 %v789, %v789
        %v792 = vpack.c.bf16 %v790, %v790
        %v793 = vunpack.c.l.bf16 %v698
        %v794 = vmul.f32 %v786, %v793
        %v795 = vmul.f32 %v787, %v793
        %v796 = vpack.c.bf16 %v794, %v794
        %v797 = vpack.c.bf16 %v795, %v795
        %v798 = vunpack.c.l.bf16 %v704
        %v799 = vmul.f32 %v786, %v798
        %v800 = vmul.f32 %v787, %v798
        %v801 = vpack.c.bf16 %v799, %v799
        %v802 = vpack.c.bf16 %v800, %v800
        %v803 = vunpack.c.l.bf16 %v710
        %v804 = vmul.f32 %v786, %v803
        %v805 = vmul.f32 %v787, %v803
        %v806 = vpack.c.bf16 %v804, %v804
        %v807 = vpack.c.bf16 %v805, %v805
        %v810 = vunpack.c.l.b16 %v791
        %v811 = vunpack.c.l.b16 %v792
        %v812 = vpack.c.b16 %v811, %v810
        %v815 = vunpack.c.l.b16 %v796
        %v816 = vunpack.c.l.b16 %v797
        %v817 = vpack.c.b16 %v816, %v815
        %v820 = vunpack.c.l.b16 %v801
        %v821 = vunpack.c.l.b16 %v802
        %v822 = vpack.c.b16 %v821, %v820
        %v825 = vunpack.c.l.b16 %v806
        %v826 = vunpack.c.l.b16 %v807
        %v827 = vpack.c.b16 %v826, %v825
        %829 = vrot.lane.b32.xlu0 %v785, 96
        %v830 = vpop.permute.xlu0 %829
        %v832 = vsel %vm765, %v812, 0
        %v835 = vsel %vm765, %v817, 0
        %v838 = vsel %vm765, %v822, 0
        %v841 = vsel %vm765, %v827, 0
        %v844 = vsel %vm765, %v830, 0
        %846 = vmatpush.bf16.xpose.msra.mxu0 0
        %847 = vmatpush.bf16.xpose.msra.mxu0 0
        %848 = vmatpush.bf16.xpose.msra.mxu0 0
        %849 = vmatpush.bf16.xpose.msra.mxu0 0
        %850 = vmatpush.bf16.xpose.msra.mxu0 0
        %851 = vmatpush.bf16.xpose.msra.mxu0 0
        %852 = vmatpush.bf16.xpose.msra.mxu0 0
        %853 = vmatpush.bf16.xpose.msra.mxu0 %v844
        %854 = vmatmul.bf16.gmra.mxu0 %v832
        %v855 = vpop.f32.mrf.mxu0
        %v856 = vadd.f32 0.0, %v855
        %v857 = vpop.f32.mrf.mxu0
        %v858 = vadd.f32 0.0, %v857
        %859 = vmatmul.bf16.gmra.mxu0 %v835
        %v860 = vpop.f32.mrf.mxu0
        %v861 = vadd.f32 0.0, %v860
        %v862 = vpop.f32.mrf.mxu0
        %v863 = vadd.f32 0.0, %v862
        %864 = vmatmul.bf16.gmra.mxu0 %v838
        %v865 = vpop.f32.mrf.mxu0
        %v866 = vadd.f32 0.0, %v865
        %v867 = vpop.f32.mrf.mxu0
        %v868 = vadd.f32 0.0, %v867
        %869 = vmatmul.bf16.gmra.mxu0 %v841
        %v870 = vpop.f32.mrf.mxu0
        %v871 = vadd.f32 0.0, %v870
        %v872 = vpop.f32.mrf.mxu0
        %v873 = vadd.f32 0.0, %v872
        %874 = vdwg.mxu0
        %v875 = vmul.f32 %v856, 0.35355338
        %v876 = vmul.f32 %v858, 0.35355338
        %v877 = vmul.f32 %v861, 0.35355338
        %v878 = vmul.f32 %v863, 0.35355338
        %v879 = vmul.f32 %v866, 0.35355338
        %v880 = vmul.f32 %v868, 0.35355338
        %v881 = vmul.f32 %v871, 0.35355338
        %v882 = vmul.f32 %v873, 0.35355338
        %v883 = vadd.f32 %v875, %v742
        %v884 = vadd.f32 %v876, %v743
        %v885 = vadd.f32 %v877, %v742
        %v886 = vadd.f32 %v878, %v743
        %v887 = vadd.f32 %v879, %v742
        %v888 = vadd.f32 %v880, %v743
        %v889 = vadd.f32 %v881, %v742
        %v890 = vadd.f32 %v882, %v743
        %vm891 = vcmask 130048
        %v892 = vsel %vm891, %v883, -inf
        %893 = vmax.xlane.f32.xlu0 %v892
        %v894 = vpop.xlane.xlu0 %893
        %v895 = vsel %vm891, %v884, -inf
        %896 = vmax.xlane.f32.xlu0 %v895
        %v897 = vpop.xlane.xlu0 %896
        %v898 = vsel %vm891, %v885, -inf
        %899 = vmax.xlane.f32.xlu0 %v898
        %v900 = vpop.xlane.xlu0 %899
        %v901 = vsel %vm891, %v886, -inf
        %902 = vmax.xlane.f32.xlu0 %v901
        %v903 = vpop.xlane.xlu0 %902
        %v904 = vsel %vm891, %v887, -inf
        %905 = vmax.xlane.f32.xlu0 %v904
        %v906 = vpop.xlane.xlu0 %905
        %v907 = vsel %vm891, %v888, -inf
        %908 = vmax.xlane.f32.xlu0 %v907
        %v909 = vpop.xlane.xlu0 %908
        %v910 = vsel %vm891, %v889, -inf
        %911 = vmax.xlane.f32.xlu0 %v910
        %v912 = vpop.xlane.xlu0 %911
        %v913 = vsel %vm891, %v890, -inf
        %914 = vmax.xlane.f32.xlu0 %v913
        %v915 = vpop.xlane.xlu0 %914
        %v916 = vsub.f32 %v883, %v894
        %v917 = vsub.f32 %v884, %v897
        %v918 = vsub.f32 %v885, %v900
        %v919 = vsub.f32 %v886, %v903
        %v920 = vsub.f32 %v887, %v906
        %v921 = vsub.f32 %v888, %v909
        %v922 = vsub.f32 %v889, %v912
        %v923 = vsub.f32 %v890, %v915
        %v924 = vmul.f32 %v916, 1.442695
        %v925 = vpow.pop %v924
        %v926 = vmul.f32 %v917, 1.442695
        %v927 = vpow.pop %v926
        %v928 = vmul.f32 %v918, 1.442695
        %v929 = vpow.pop %v928
        %v930 = vmul.f32 %v919, 1.442695
        %v931 = vpow.pop %v930
        %v932 = vmul.f32 %v920, 1.442695
        %v933 = vpow.pop %v932
        %v934 = vmul.f32 %v921, 1.442695
        %v935 = vpow.pop %v934
        %v936 = vmul.f32 %v922, 1.442695
        %v937 = vpow.pop %v936
        %v938 = vmul.f32 %v923, 1.442695
        %v939 = vpow.pop %v938
        %v940 = vsel %vm891, %v925, 0.0
        %941 = vadd.xlane.f32.xlu0 %v940
        %v942 = vpop.xlane.xlu0 %941
        %v943 = vsel %vm891, %v927, 0.0
        %944 = vadd.xlane.f32.xlu0 %v943
        %v945 = vpop.xlane.xlu0 %944
        %v946 = vsel %vm891, %v929, 0.0
        %947 = vadd.xlane.f32.xlu0 %v946
        %v948 = vpop.xlane.xlu0 %947
        %v949 = vsel %vm891, %v931, 0.0
        %950 = vadd.xlane.f32.xlu0 %v949
        %v951 = vpop.xlane.xlu0 %950
        %v952 = vsel %vm891, %v933, 0.0
        %953 = vadd.xlane.f32.xlu0 %v952
        %v954 = vpop.xlane.xlu0 %953
        %v955 = vsel %vm891, %v935, 0.0
        %956 = vadd.xlane.f32.xlu0 %v955
        %v957 = vpop.xlane.xlu0 %956
        %v958 = vsel %vm891, %v937, 0.0
        %959 = vadd.xlane.f32.xlu0 %v958
        %v960 = vpop.xlane.xlu0 %959
        %v961 = vsel %vm891, %v939, 0.0
        %962 = vadd.xlane.f32.xlu0 %v961
        %v963 = vpop.xlane.xlu0 %962
        %v964 = vrcp.pop %v942
        %v965 = vrcp.pop %v945
        %v966 = vrcp.pop %v948
        %v967 = vrcp.pop %v951
        %v968 = vrcp.pop %v954
        %v969 = vrcp.pop %v957
        %v970 = vrcp.pop %v960
        %v971 = vrcp.pop %v963
        %v972 = vmul.f32 %v925, %v964
        %v973 = vmul.f32 %v927, %v965
        %v974 = vmul.f32 %v929, %v966
        %v975 = vmul.f32 %v931, %v967
        %v976 = vmul.f32 %v933, %v968
        %v977 = vmul.f32 %v935, %v969
        %v978 = vmul.f32 %v937, %v970
        %v979 = vmul.f32 %v939, %v971
        %v980 = vpack.c.bf16 %v973, %v972
        %v981 = vpack.c.bf16 %v975, %v974
        %v982 = vpack.c.bf16 %v977, %v976
        %v983 = vpack.c.bf16 %v979, %v978
        %984 = vrot.lane.b32.xlu0 %v785, 64
        %v985 = vpop.permute.xlu0 %984
        %v988 = vsel %vm891, %v980, 0
        %v991 = vsel %vm891, %v981, 0
        %v994 = vsel %vm891, %v982, 0
        %v997 = vsel %vm891, %v983, 0
        %999 = vmatpush.bf16.msra.mxu0 0
        %1000 = vmatpush.bf16.msra.mxu0 0
        %1001 = vmatpush.bf16.msra.mxu0 0
        %1002 = vmatpush.bf16.msra.mxu0 0
        %1003 = vmatpush.bf16.msra.mxu0 0
        %1004 = vmatpush.bf16.msra.mxu0 0
        %1005 = vmatpush.bf16.msra.mxu0 0
        %1006 = vmatpush.bf16.msra.mxu0 %v985
        %1007 = vmatmul.bf16.gmra.mxu0 %v988
        %v1008 = vpop.f32.mrf.mxu0
        %v1009 = vadd.f32 0.0, %v1008
        %v1010 = vpop.f32.mrf.mxu0
        %v1011 = vadd.f32 0.0, %v1010
        %1012 = vmatmul.bf16.gmra.mxu0 %v991
        %v1013 = vpop.f32.mrf.mxu0
        %v1014 = vadd.f32 0.0, %v1013
        %v1015 = vpop.f32.mrf.mxu0
        %v1016 = vadd.f32 0.0, %v1015
        %1017 = vmatmul.bf16.gmra.mxu0 %v994
        %v1018 = vpop.f32.mrf.mxu0
        %v1019 = vadd.f32 0.0, %v1018
        %v1020 = vpop.f32.mrf.mxu0
        %v1021 = vadd.f32 0.0, %v1020
        %1022 = vmatmul.bf16.gmra.mxu0 %v997
        %v1023 = vpop.f32.mrf.mxu0
        %v1024 = vadd.f32 0.0, %v1023
        %v1025 = vpop.f32.mrf.mxu0
        %v1026 = vadd.f32 0.0, %v1025
        %1027 = vdwg.mxu0
        %v1028 = vmul.f32 %v1009, %v788
        %v1029 = vmul.f32 %v1011, %v788
        %v1030 = vmul.f32 %v1014, %v793
        %v1031 = vmul.f32 %v1016, %v793
        %v1032 = vadd.f32 %v1028, %v1030
        %v1033 = vadd.f32 %v1029, %v1031
        %v1034 = vmul.f32 %v1019, %v798
        %v1035 = vmul.f32 %v1021, %v798
        %v1036 = vadd.f32 %v1032, %v1034
        %v1037 = vadd.f32 %v1033, %v1035
        %v1038 = vmul.f32 %v1024, %v803
        %v1039 = vmul.f32 %v1026, %v803
        %v1040 = vadd.f32 %v1036, %v1038
        %v1041 = vadd.f32 %v1037, %v1039
        %v1042 = vpack.c.bf16 %v1041, %v1040
        %v1043 = vld [vmem:[%s7] sm:$0xf]
        %v1044 = vld [vmem:[%s7 + $0x4] sm:$0xf]
        %v1045 = vld [vmem:[%s7 + $0x8] sm:$0xf]
        %v1046 = vld [vmem:[%s7 + $0xc] sm:$0xf]
        %v1047 = vld [vmem:[%s8] sm:$0x1]
        %v1049 = vperm.slane %v1047, 0
        %v1055 = vunpack.c.l.b16 %v1043
        %v1056 = vunpack.c.l.b16 %v1044
        %v1057 = vunpack.c.l.b16 %v1045
        %v1058 = vunpack.c.l.b16 %v1046
        %v1059 = vpack.c.b16 %v1056, %v1055
        %v1060 = vpack.c.b16 %v1058, %v1057
        %v1064 = vsel %vm765, %v1042, 0
        %1066 = vmatpush.bf16.msra.mxu0 0
        %1067 = vmatpush.bf16.msra.mxu0 0
        %1068 = vmatpush.bf16.msra.mxu0 0
        %1069 = vmatpush.bf16.msra.mxu0 0
        %1070 = vmatpush.bf16.msra.mxu0 0
        %1071 = vmatpush.bf16.msra.mxu0 0
        %1072 = vmatpush.bf16.msra.mxu0 %v1060
        %1073 = vmatpush.bf16.msra.mxu0 %v1059
        %1074 = vmatmul.bf16.gmra.mxu0 %v1064
        %v1075 = vpop.f32.mrf.mxu0
        %v1076 = vadd.f32 %v1049, %v1075
        %v1077 = vpop.f32.mrf.mxu0
        %v1078 = vadd.f32 %v1049, %v1077
        %1079 = vdwg.mxu0
        %v1080 = vadd.f32 %v683, %v1076
        %v1081 = vadd.f32 %v684, %v1078
        %v1082 = vld [vmem:[%s13] sm:$0x1]
        %v1083 = vld [vmem:[%s14] sm:$0x1]
        %v1084 = vsel %vm765, %v1080, 0.0
        %1085 = vadd.xlane.f32.xlu0 %v1084
        %v1086 = vpop.xlane.xlu0 %1085
        %v1087 = vsel %vm765, %v1081, 0.0
        %1088 = vadd.xlane.f32.xlu0 %v1087
        %v1089 = vpop.xlane.xlu0 %1088
        %v1090 = vrcp.pop 32.0
        %v1091 = vmul.f32 32.0, %v1090
        %v1092 = vsub.f32 1.0, %v1091
        %v1093 = vmul.f32 %v1090, %v1092
        %v1094 = vadd.f32 %v1090, %v1093
        %vm1095 = vweird.f32 %v1090
        %v1096 = vsel %vm1095, %v1090, %v1094
        %v1097 = vmul.f32 %v1086, %v1096
        %v1098 = vmul.f32 %v1089, %v1096
        %v1099 = vsub.f32 %v1080, %v1097
        %v1100 = vsub.f32 %v1081, %v1098
        %v1101 = vmul.f32 %v1099, %v1099
        %v1102 = vmul.f32 %v1100, %v1100
        %v1103 = vsel %vm765, %v1101, 0.0
        %1104 = vadd.xlane.f32.xlu0 %v1103
        %v1105 = vpop.xlane.xlu0 %1104
        %v1106 = vsel %vm765, %v1102, 0.0
        %1107 = vadd.xlane.f32.xlu0 %v1106
        %v1108 = vpop.xlane.xlu0 %1107
        %v1109 = vmul.f32 %v1105, %v1096
        %v1110 = vmul.f32 %v1108, %v1096
        %v1111 = vadd.f32 %v1109, 1e-05
        %v1112 = vadd.f32 %v1110, 1e-05
        %v1113 = vrsqrt.pop %v1111
        %v1114 = vmul.f32 %v1113, %v1111
        %v1115 = vmul.f32 %v1114, %v1113
        %v1116 = vmul.f32 0.5, %v1115
        %v1117 = vsub.f32 1.5, %v1116
        %v1118 = vmul.f32 %v1113, %v1117
        %vm1119 = vweird.f32 %v1111
        %vm1120 = vweird.f32 %v1113
        %vm1121 = vmor %vm1119, %vm1120
        %v1122 = vsel %vm1121, %v1113, %v1118
        %v1123 = vrsqrt.pop %v1112
        %v1124 = vmul.f32 %v1123, %v1112
        %v1125 = vmul.f32 %v1124, %v1123
        %v1126 = vmul.f32 0.5, %v1125
        %v1127 = vsub.f32 1.5, %v1126
        %v1128 = vmul.f32 %v1123, %v1127
        %vm1129 = vweird.f32 %v1112
        %vm1130 = vweird.f32 %v1123
        %vm1131 = vmor %vm1129, %vm1130
        %v1132 = vsel %vm1131, %v1123, %v1128
        %v1133 = vmul.f32 %v1099, %v1122
        %v1134 = vmul.f32 %v1100, %v1132
        %v1136 = vperm.slane %v1082, 0
        %v1138 = vmul.f32 %v1133, %v1136
        %v1139 = vmul.f32 %v1134, %v1136
        %v1141 = vperm.slane %v1083, 0
        %v1143 = vadd.f32 %v1138, %v1141
        %v1144 = vadd.f32 %v1139, %v1141
        %v1145 = vpack.c.bf16 %v1144, %v1143
        %v1146 = vld [vmem:[%s9] sm:$0xff]
        %v1147 = vld [vmem:[%s9 + $0x8] sm:$0xff]
        %v1148 = vld [vmem:[%s9 + $0x10] sm:$0xff]
        %v1149 = vld [vmem:[%s9 + $0x18] sm:$0xff]
        %v1150 = vld [vmem:[%s9 + $0x20] sm:$0xff]
        %v1151 = vld [vmem:[%s9 + $0x28] sm:$0xff]
        %v1152 = vld [vmem:[%s9 + $0x30] sm:$0xff]
        %v1153 = vld [vmem:[%s9 + $0x38] sm:$0xff]
        %v1154 = vld [vmem:[%s9 + $0x40] sm:$0xff]
        %v1155 = vld [vmem:[%s9 + $0x48] sm:$0xff]
        %v1156 = vld [vmem:[%s9 + $0x50] sm:$0xff]
        %v1157 = vld [vmem:[%s9 + $0x58] sm:$0xff]
        %v1158 = vld [vmem:[%s9 + $0x60] sm:$0xff]
        %v1159 = vld [vmem:[%s9 + $0x68] sm:$0xff]
        %v1160 = vld [vmem:[%s9 + $0x70] sm:$0xff]
        %v1161 = vld [vmem:[%s9 + $0x78] sm:$0xff]
        %v1162 = vld [vmem:[%s9 + $0x80] sm:$0xff]
        %v1163 = vld [vmem:[%s9 + $0x88] sm:$0xff]
        %v1164 = vld [vmem:[%s9 + $0x90] sm:$0xff]
        %v1165 = vld [vmem:[%s9 + $0x98] sm:$0xff]
        %v1166 = vld [vmem:[%s9 + $0xa0] sm:$0xff]
        %v1167 = vld [vmem:[%s9 + $0xa8] sm:$0xff]
        %v1168 = vld [vmem:[%s9 + $0xb0] sm:$0xff]
        %v1169 = vld [vmem:[%s9 + $0xb8] sm:$0xff]
        %v1170 = vld [vmem:[%s9 + $0xc0] sm:$0xff]
        %v1171 = vld [vmem:[%s9 + $0xc8] sm:$0xff]
        %v1172 = vld [vmem:[%s9 + $0xd0] sm:$0xff]
        %v1173 = vld [vmem:[%s9 + $0xd8] sm:$0xff]
        %v1174 = vld [vmem:[%s9 + $0xe0] sm:$0xff]
        %v1175 = vld [vmem:[%s9 + $0xe8] sm:$0xff]
        %v1176 = vld [vmem:[%s9 + $0xf0] sm:$0xff]
        %v1177 = vld [vmem:[%s9 + $0xf8] sm:$0xff]
        %v1178 = vld [vmem:[%s10] sm:$0xff]
        %v1179 = vld [vmem:[%s10 + $0x8] sm:$0xff]
        %v1182 = vperm.slane %v1178, 0
        %v1183 = vperm.slane %v1178, 1
        %v1184 = vperm.slane %v1178, 2
        %v1185 = vperm.slane %v1178, 3
        %v1186 = vperm.slane %v1178, 4
        %v1187 = vperm.slane %v1178, 5
        %v1188 = vperm.slane %v1178, 6
        %v1189 = vperm.slane %v1178, 7
        %v1190 = vperm.slane %v1179, 0
        %v1191 = vperm.slane %v1179, 1
        %v1192 = vperm.slane %v1179, 2
        %v1193 = vperm.slane %v1179, 3
        %v1194 = vperm.slane %v1179, 4
        %v1195 = vperm.slane %v1179, 5
        %v1196 = vperm.slane %v1179, 6
        %v1197 = vperm.slane %v1179, 7
        %v1246 = vunpack.c.l.b16 %v1146
        %v1247 = vunpack.c.h.b16 %v1146
        %v1248 = vunpack.c.l.b16 %v1147
        %v1249 = vunpack.c.h.b16 %v1147
        %v1250 = vunpack.c.l.b16 %v1148
        %v1251 = vunpack.c.h.b16 %v1148
        %v1252 = vunpack.c.l.b16 %v1149
        %v1253 = vunpack.c.h.b16 %v1149
        %v1254 = vunpack.c.l.b16 %v1150
        %v1255 = vunpack.c.h.b16 %v1150
        %v1256 = vunpack.c.l.b16 %v1151
        %v1257 = vunpack.c.h.b16 %v1151
        %v1258 = vunpack.c.l.b16 %v1152
        %v1259 = vunpack.c.h.b16 %v1152
        %v1260 = vunpack.c.l.b16 %v1153
        %v1261 = vunpack.c.h.b16 %v1153
        %v1262 = vunpack.c.l.b16 %v1154
        %v1263 = vunpack.c.h.b16 %v1154
        %v1264 = vunpack.c.l.b16 %v1155
        %v1265 = vunpack.c.h.b16 %v1155
        %v1266 = vunpack.c.l.b16 %v1156
        %v1267 = vunpack.c.h.b16 %v1156
        %v1268 = vunpack.c.l.b16 %v1157
        %v1269 = vunpack.c.h.b16 %v1157
        %v1270 = vunpack.c.l.b16 %v1158
        %v1271 = vunpack.c.h.b16 %v1158
        %v1272 = vunpack.c.l.b16 %v1159
        %v1273 = vunpack.c.h.b16 %v1159
        %v1274 = vunpack.c.l.b16 %v1160
        %v1275 = vunpack.c.h.b16 %v1160
        %v1276 = vunpack.c.l.b16 %v1161
        %v1277 = vunpack.c.h.b16 %v1161
        %v1278 = vunpack.c.l.b16 %v1162
        %v1279 = vunpack.c.h.b16 %v1162
        %v1280 = vunpack.c.l.b16 %v1163
        %v1281 = vunpack.c.h.b16 %v1163
        %v1282 = vunpack.c.l.b16 %v1164
        %v1283 = vunpack.c.h.b16 %v1164
        %v1284 = vunpack.c.l.b16 %v1165
        %v1285 = vunpack.c.h.b16 %v1165
        %v1286 = vunpack.c.l.b16 %v1166
        %v1287 = vunpack.c.h.b16 %v1166
        %v1288 = vunpack.c.l.b16 %v1167
        %v1289 = vunpack.c.h.b16 %v1167
        %v1290 = vunpack.c.l.b16 %v1168
        %v1291 = vunpack.c.h.b16 %v1168
        %v1292 = vunpack.c.l.b16 %v1169
        %v1293 = vunpack.c.h.b16 %v1169
        %v1294 = vunpack.c.l.b16 %v1170
        %v1295 = vunpack.c.h.b16 %v1170
        %v1296 = vunpack.c.l.b16 %v1171
        %v1297 = vunpack.c.h.b16 %v1171
        %v1298 = vunpack.c.l.b16 %v1172
        %v1299 = vunpack.c.h.b16 %v1172
        %v1300 = vunpack.c.l.b16 %v1173
        %v1301 = vunpack.c.h.b16 %v1173
        %v1302 = vunpack.c.l.b16 %v1174
        %v1303 = vunpack.c.h.b16 %v1174
        %v1304 = vunpack.c.l.b16 %v1175
        %v1305 = vunpack.c.h.b16 %v1175
        %v1306 = vunpack.c.l.b16 %v1176
        %v1307 = vunpack.c.h.b16 %v1176
        %v1308 = vunpack.c.l.b16 %v1177
        %v1309 = vunpack.c.h.b16 %v1177
        %v1310 = vpack.c.b16 %v1262, %v1246
        %v1311 = vpack.c.b16 %v1263, %v1247
        %v1312 = vpack.c.b16 %v1264, %v1248
        %v1313 = vpack.c.b16 %v1265, %v1249
        %v1314 = vpack.c.b16 %v1266, %v1250
        %v1315 = vpack.c.b16 %v1267, %v1251
        %v1316 = vpack.c.b16 %v1268, %v1252
        %v1317 = vpack.c.b16 %v1269, %v1253
        %v1318 = vpack.c.b16 %v1270, %v1254
        %v1319 = vpack.c.b16 %v1271, %v1255
        %v1320 = vpack.c.b16 %v1272, %v1256
        %v1321 = vpack.c.b16 %v1273, %v1257
        %v1322 = vpack.c.b16 %v1274, %v1258
        %v1323 = vpack.c.b16 %v1275, %v1259
        %v1324 = vpack.c.b16 %v1276, %v1260
        %v1325 = vpack.c.b16 %v1277, %v1261
        %v1326 = vpack.c.b16 %v1294, %v1278
        %v1327 = vpack.c.b16 %v1295, %v1279
        %v1328 = vpack.c.b16 %v1296, %v1280
        %v1329 = vpack.c.b16 %v1297, %v1281
        %v1330 = vpack.c.b16 %v1298, %v1282
        %v1331 = vpack.c.b16 %v1299, %v1283
        %v1332 = vpack.c.b16 %v1300, %v1284
        %v1333 = vpack.c.b16 %v1301, %v1285
        %v1334 = vpack.c.b16 %v1302, %v1286
        %v1335 = vpack.c.b16 %v1303, %v1287
        %v1336 = vpack.c.b16 %v1304, %v1288
        %v1337 = vpack.c.b16 %v1305, %v1289
        %v1338 = vpack.c.b16 %v1306, %v1290
        %v1339 = vpack.c.b16 %v1307, %v1291
        %v1340 = vpack.c.b16 %v1308, %v1292
        %v1341 = vpack.c.b16 %v1309, %v1293
        %v1375 = vsel %vm765, %v1145, 0
        %1377 = vmatpush.bf16.msra.mxu0 0
        %1378 = vmatpush.bf16.msra.mxu0 0
        %1379 = vmatpush.bf16.msra.mxu0 0
        %1380 = vmatpush.bf16.msra.mxu0 0
        %1381 = vmatpush.bf16.msra.mxu0 0
        %1382 = vmatpush.bf16.msra.mxu0 0
        %1383 = vmatpush.bf16.msra.mxu0 %v1326
        %1384 = vmatpush.bf16.msra.mxu0 %v1310
        %1385 = vmatmul.bf16.gmra.mxu0 %v1375
        %v1386 = vpop.f32.mrf.mxu0
        %v1387 = vadd.f32 %v1182, %v1386
        %v1388 = vpop.f32.mrf.mxu0
        %v1389 = vadd.f32 %v1182, %v1388
        %1390 = vdwg.mxu0
        %1391 = vmatpush.bf16.msra.mxu0 0
        %1392 = vmatpush.bf16.msra.mxu0 0
        %1393 = vmatpush.bf16.msra.mxu0 0
        %1394 = vmatpush.bf16.msra.mxu0 0
        %1395 = vmatpush.bf16.msra.mxu0 0
        %1396 = vmatpush.bf16.msra.mxu0 0
        %1397 = vmatpush.bf16.msra.mxu0 %v1327
        %1398 = vmatpush.bf16.msra.mxu0 %v1311
        %1399 = vmatmul.bf16.gmra.mxu0 %v1375
        %v1400 = vpop.f32.mrf.mxu0
        %v1401 = vadd.f32 %v1183, %v1400
        %v1402 = vpop.f32.mrf.mxu0
        %v1403 = vadd.f32 %v1183, %v1402
        %1404 = vdwg.mxu0
        %1405 = vmatpush.bf16.msra.mxu0 0
        %1406 = vmatpush.bf16.msra.mxu0 0
        %1407 = vmatpush.bf16.msra.mxu0 0
        %1408 = vmatpush.bf16.msra.mxu0 0
        %1409 = vmatpush.bf16.msra.mxu0 0
        %1410 = vmatpush.bf16.msra.mxu0 0
        %1411 = vmatpush.bf16.msra.mxu0 %v1328
        %1412 = vmatpush.bf16.msra.mxu0 %v1312
        %1413 = vmatmul.bf16.gmra.mxu0 %v1375
        %v1414 = vpop.f32.mrf.mxu0
        %v1415 = vadd.f32 %v1184, %v1414
        %v1416 = vpop.f32.mrf.mxu0
        %v1417 = vadd.f32 %v1184, %v1416
        %1418 = vdwg.mxu0
        %1419 = vmatpush.bf16.msra.mxu0 0
        %1420 = vmatpush.bf16.msra.mxu0 0
        %1421 = vmatpush.bf16.msra.mxu0 0
        %1422 = vmatpush.bf16.msra.mxu0 0
        %1423 = vmatpush.bf16.msra.mxu0 0
        %1424 = vmatpush.bf16.msra.mxu0 0
        %1425 = vmatpush.bf16.msra.mxu0 %v1329
        %1426 = vmatpush.bf16.msra.mxu0 %v1313
        %1427 = vmatmul.bf16.gmra.mxu0 %v1375
        %v1428 = vpop.f32.mrf.mxu0
        %v1429 = vadd.f32 %v1185, %v1428
        %v1430 = vpop.f32.mrf.mxu0
        %v1431 = vadd.f32 %v1185, %v1430
        %1432 = vdwg.mxu0
        %1433 = vmatpush.bf16.msra.mxu0 0
        %1434 = vmatpush.bf16.msra.mxu0 0
        %1435 = vmatpush.bf16.msra.mxu0 0
        %1436 = vmatpush.bf16.msra.mxu0 0
        %1437 = vmatpush.bf16.msra.mxu0 0
        %1438 = vmatpush.bf16.msra.mxu0 0
        %1439 = vmatpush.bf16.msra.mxu0 %v1330
        %1440 = vmatpush.bf16.msra.mxu0 %v1314
        %1441 = vmatmul.bf16.gmra.mxu0 %v1375
        %v1442 = vpop.f32.mrf.mxu0
        %v1443 = vadd.f32 %v1186, %v1442
        %v1444 = vpop.f32.mrf.mxu0
        %v1445 = vadd.f32 %v1186, %v1444
        %1446 = vdwg.mxu0
        %1447 = vmatpush.bf16.msra.mxu0 0
        %1448 = vmatpush.bf16.msra.mxu0 0
        %1449 = vmatpush.bf16.msra.mxu0 0
        %1450 = vmatpush.bf16.msra.mxu0 0
        %1451 = vmatpush.bf16.msra.mxu0 0
        %1452 = vmatpush.bf16.msra.mxu0 0
        %1453 = vmatpush.bf16.msra.mxu0 %v1331
        %1454 = vmatpush.bf16.msra.mxu0 %v1315
        %1455 = vmatmul.bf16.gmra.mxu0 %v1375
        %v1456 = vpop.f32.mrf.mxu0
        %v1457 = vadd.f32 %v1187, %v1456
        %v1458 = vpop.f32.mrf.mxu0
        %v1459 = vadd.f32 %v1187, %v1458
        %1460 = vdwg.mxu0
        %1461 = vmatpush.bf16.msra.mxu0 0
        %1462 = vmatpush.bf16.msra.mxu0 0
        %1463 = vmatpush.bf16.msra.mxu0 0
        %1464 = vmatpush.bf16.msra.mxu0 0
        %1465 = vmatpush.bf16.msra.mxu0 0
        %1466 = vmatpush.bf16.msra.mxu0 0
        %1467 = vmatpush.bf16.msra.mxu0 %v1332
        %1468 = vmatpush.bf16.msra.mxu0 %v1316
        %1469 = vmatmul.bf16.gmra.mxu0 %v1375
        %v1470 = vpop.f32.mrf.mxu0
        %v1471 = vadd.f32 %v1188, %v1470
        %v1472 = vpop.f32.mrf.mxu0
        %v1473 = vadd.f32 %v1188, %v1472
        %1474 = vdwg.mxu0
        %1475 = vmatpush.bf16.msra.mxu0 0
        %1476 = vmatpush.bf16.msra.mxu0 0
        %1477 = vmatpush.bf16.msra.mxu0 0
        %1478 = vmatpush.bf16.msra.mxu0 0
        %1479 = vmatpush.bf16.msra.mxu0 0
        %1480 = vmatpush.bf16.msra.mxu0 0
        %1481 = vmatpush.bf16.msra.mxu0 %v1333
        %1482 = vmatpush.bf16.msra.mxu0 %v1317
        %1483 = vmatmul.bf16.gmra.mxu0 %v1375
        %v1484 = vpop.f32.mrf.mxu0
        %v1485 = vadd.f32 %v1189, %v1484
        %v1486 = vpop.f32.mrf.mxu0
        %v1487 = vadd.f32 %v1189, %v1486
        %1488 = vdwg.mxu0
        %1489 = vmatpush.bf16.msra.mxu0 0
        %1490 = vmatpush.bf16.msra.mxu0 0
        %1491 = vmatpush.bf16.msra.mxu0 0
        %1492 = vmatpush.bf16.msra.mxu0 0
        %1493 = vmatpush.bf16.msra.mxu0 0
        %1494 = vmatpush.bf16.msra.mxu0 0
        %1495 = vmatpush.bf16.msra.mxu0 %v1334
        %1496 = vmatpush.bf16.msra.mxu0 %v1318
        %1497 = vmatmul.bf16.gmra.mxu0 %v1375
        %v1498 = vpop.f32.mrf.mxu0
        %v1499 = vadd.f32 %v1190, %v1498
        %v1500 = vpop.f32.mrf.mxu0
        %v1501 = vadd.f32 %v1190, %v1500
        %1502 = vdwg.mxu0
        %1503 = vmatpush.bf16.msra.mxu0 0
        %1504 = vmatpush.bf16.msra.mxu0 0
        %1505 = vmatpush.bf16.msra.mxu0 0
        %1506 = vmatpush.bf16.msra.mxu0 0
        %1507 = vmatpush.bf16.msra.mxu0 0
        %1508 = vmatpush.bf16.msra.mxu0 0
        %1509 = vmatpush.bf16.msra.mxu0 %v1335
        %1510 = vmatpush.bf16.msra.mxu0 %v1319
        %1511 = vmatmul.bf16.gmra.mxu0 %v1375
        %v1512 = vpop.f32.mrf.mxu0
        %v1513 = vadd.f32 %v1191, %v1512
        %v1514 = vpop.f32.mrf.mxu0
        %v1515 = vadd.f32 %v1191, %v1514
        %1516 = vdwg.mxu0
        %1517 = vmatpush.bf16.msra.mxu0 0
        %1518 = vmatpush.bf16.msra.mxu0 0
        %1519 = vmatpush.bf16.msra.mxu0 0
        %1520 = vmatpush.bf16.msra.mxu0 0
        %1521 = vmatpush.bf16.msra.mxu0 0
        %1522 = vmatpush.bf16.msra.mxu0 0
        %1523 = vmatpush.bf16.msra.mxu0 %v1336
        %1524 = vmatpush.bf16.msra.mxu0 %v1320
        %1525 = vmatmul.bf16.gmra.mxu0 %v1375
        %v1526 = vpop.f32.mrf.mxu0
        %v1527 = vadd.f32 %v1192, %v1526
        %v1528 = vpop.f32.mrf.mxu0
        %v1529 = vadd.f32 %v1192, %v1528
        %1530 = vdwg.mxu0
        %1531 = vmatpush.bf16.msra.mxu0 0
        %1532 = vmatpush.bf16.msra.mxu0 0
        %1533 = vmatpush.bf16.msra.mxu0 0
        %1534 = vmatpush.bf16.msra.mxu0 0
        %1535 = vmatpush.bf16.msra.mxu0 0
        %1536 = vmatpush.bf16.msra.mxu0 0
        %1537 = vmatpush.bf16.msra.mxu0 %v1337
        %1538 = vmatpush.bf16.msra.mxu0 %v1321
        %1539 = vmatmul.bf16.gmra.mxu0 %v1375
        %v1540 = vpop.f32.mrf.mxu0
        %v1541 = vadd.f32 %v1193, %v1540
        %v1542 = vpop.f32.mrf.mxu0
        %v1543 = vadd.f32 %v1193, %v1542
        %1544 = vdwg.mxu0
        %1545 = vmatpush.bf16.msra.mxu0 0
        %1546 = vmatpush.bf16.msra.mxu0 0
        %1547 = vmatpush.bf16.msra.mxu0 0
        %1548 = vmatpush.bf16.msra.mxu0 0
        %1549 = vmatpush.bf16.msra.mxu0 0
        %1550 = vmatpush.bf16.msra.mxu0 0
        %1551 = vmatpush.bf16.msra.mxu0 %v1338
        %1552 = vmatpush.bf16.msra.mxu0 %v1322
        %1553 = vmatmul.bf16.gmra.mxu0 %v1375
        %v1554 = vpop.f32.mrf.mxu0
        %v1555 = vadd.f32 %v1194, %v1554
        %v1556 = vpop.f32.mrf.mxu0
        %v1557 = vadd.f32 %v1194, %v1556
        %1558 = vdwg.mxu0
        %1559 = vmatpush.bf16.msra.mxu0 0
        %1560 = vmatpush.bf16.msra.mxu0 0
        %1561 = vmatpush.bf16.msra.mxu0 0
        %1562 = vmatpush.bf16.msra.mxu0 0
        %1563 = vmatpush.bf16.msra.mxu0 0
        %1564 = vmatpush.bf16.msra.mxu0 0
        %1565 = vmatpush.bf16.msra.mxu0 %v1339
        %1566 = vmatpush.bf16.msra.mxu0 %v1323
        %1567 = vmatmul.bf16.gmra.mxu0 %v1375
        %v1568 = vpop.f32.mrf.mxu0
        %v1569 = vadd.f32 %v1195, %v1568
        %v1570 = vpop.f32.mrf.mxu0
        %v1571 = vadd.f32 %v1195, %v1570
        %1572 = vdwg.mxu0
        %1573 = vmatpush.bf16.msra.mxu0 0
        %1574 = vmatpush.bf16.msra.mxu0 0
        %1575 = vmatpush.bf16.msra.mxu0 0
        %1576 = vmatpush.bf16.msra.mxu0 0
        %1577 = vmatpush.bf16.msra.mxu0 0
        %1578 = vmatpush.bf16.msra.mxu0 0
        %1579 = vmatpush.bf16.msra.mxu0 %v1340
        %1580 = vmatpush.bf16.msra.mxu0 %v1324
        %1581 = vmatmul.bf16.gmra.mxu0 %v1375
        %v1582 = vpop.f32.mrf.mxu0
        %v1583 = vadd.f32 %v1196, %v1582
        %v1584 = vpop.f32.mrf.mxu0
        %v1585 = vadd.f32 %v1196, %v1584
        %1586 = vdwg.mxu0
        %1587 = vmatpush.bf16.msra.mxu0 0
        %1588 = vmatpush.bf16.msra.mxu0 0
        %1589 = vmatpush.bf16.msra.mxu0 0
        %1590 = vmatpush.bf16.msra.mxu0 0
        %1591 = vmatpush.bf16.msra.mxu0 0
        %1592 = vmatpush.bf16.msra.mxu0 0
        %1593 = vmatpush.bf16.msra.mxu0 %v1341
        %1594 = vmatpush.bf16.msra.mxu0 %v1325
        %1595 = vmatmul.bf16.gmra.mxu0 %v1375
        %v1596 = vpop.f32.mrf.mxu0
        %v1597 = vadd.f32 %v1197, %v1596
        %v1598 = vpop.f32.mrf.mxu0
        %v1599 = vadd.f32 %v1197, %v1598
        %1600 = vdwg.mxu0
        %v1601 = vmax.f32 %v1387, 0.0
        %v1602 = vmax.f32 %v1401, 0.0
        %v1603 = vmax.f32 %v1415, 0.0
        %v1604 = vmax.f32 %v1429, 0.0
        %v1605 = vmax.f32 %v1443, 0.0
        %v1606 = vmax.f32 %v1457, 0.0
        %v1607 = vmax.f32 %v1471, 0.0
        %v1608 = vmax.f32 %v1485, 0.0
        %v1609 = vmax.f32 %v1499, 0.0
        %v1610 = vmax.f32 %v1513, 0.0
        %v1611 = vmax.f32 %v1527, 0.0
        %v1612 = vmax.f32 %v1541, 0.0
        %v1613 = vmax.f32 %v1555, 0.0
        %v1614 = vmax.f32 %v1569, 0.0
        %v1615 = vmax.f32 %v1583, 0.0
        %v1616 = vmax.f32 %v1597, 0.0
        %v1617 = vmax.f32 %v1389, 0.0
        %v1618 = vmax.f32 %v1403, 0.0
        %v1619 = vmax.f32 %v1417, 0.0
        %v1620 = vmax.f32 %v1431, 0.0
        %v1621 = vmax.f32 %v1445, 0.0
        %v1622 = vmax.f32 %v1459, 0.0
        %v1623 = vmax.f32 %v1473, 0.0
        %v1624 = vmax.f32 %v1487, 0.0
        %v1625 = vmax.f32 %v1501, 0.0
        %v1626 = vmax.f32 %v1515, 0.0
        %v1627 = vmax.f32 %v1529, 0.0
        %v1628 = vmax.f32 %v1543, 0.0
        %v1629 = vmax.f32 %v1557, 0.0
        %v1630 = vmax.f32 %v1571, 0.0
        %v1631 = vmax.f32 %v1585, 0.0
        %v1632 = vmax.f32 %v1599, 0.0
        %v1633 = vpack.c.bf16 %v1617, %v1601
        %v1634 = vpack.c.bf16 %v1618, %v1602
        %v1635 = vpack.c.bf16 %v1619, %v1603
        %v1636 = vpack.c.bf16 %v1620, %v1604
        %v1637 = vpack.c.bf16 %v1621, %v1605
        %v1638 = vpack.c.bf16 %v1622, %v1606
        %v1639 = vpack.c.bf16 %v1623, %v1607
        %v1640 = vpack.c.bf16 %v1624, %v1608
        %v1641 = vpack.c.bf16 %v1625, %v1609
        %v1642 = vpack.c.bf16 %v1626, %v1610
        %v1643 = vpack.c.bf16 %v1627, %v1611
        %v1644 = vpack.c.bf16 %v1628, %v1612
        %v1645 = vpack.c.bf16 %v1629, %v1613
        %v1646 = vpack.c.bf16 %v1630, %v1614
        %v1647 = vpack.c.bf16 %v1631, %v1615
        %v1648 = vpack.c.bf16 %v1632, %v1616
        %v1649 = vld [vmem:[%s11] sm:$0xf]
        %v1650 = vld [vmem:[%s11 + $0x4] sm:$0xf]
        %v1651 = vld [vmem:[%s11 + $0x8] sm:$0xf]
        %v1652 = vld [vmem:[%s11 + $0xc] sm:$0xf]
        %v1653 = vld [vmem:[%s11 + $0x10] sm:$0xf]
        %v1654 = vld [vmem:[%s11 + $0x14] sm:$0xf]
        %v1655 = vld [vmem:[%s11 + $0x18] sm:$0xf]
        %v1656 = vld [vmem:[%s11 + $0x1c] sm:$0xf]
        %v1657 = vld [vmem:[%s11 + $0x20] sm:$0xf]
        %v1658 = vld [vmem:[%s11 + $0x24] sm:$0xf]
        %v1659 = vld [vmem:[%s11 + $0x28] sm:$0xf]
        %v1660 = vld [vmem:[%s11 + $0x2c] sm:$0xf]
        %v1661 = vld [vmem:[%s11 + $0x30] sm:$0xf]
        %v1662 = vld [vmem:[%s11 + $0x34] sm:$0xf]
        %v1663 = vld [vmem:[%s11 + $0x38] sm:$0xf]
        %v1664 = vld [vmem:[%s11 + $0x3c] sm:$0xf]
        %v1665 = vld [vmem:[%s11 + $0x40] sm:$0xf]
        %v1666 = vld [vmem:[%s11 + $0x44] sm:$0xf]
        %v1667 = vld [vmem:[%s11 + $0x48] sm:$0xf]
        %v1668 = vld [vmem:[%s11 + $0x4c] sm:$0xf]
        %v1669 = vld [vmem:[%s11 + $0x50] sm:$0xf]
        %v1670 = vld [vmem:[%s11 + $0x54] sm:$0xf]
        %v1671 = vld [vmem:[%s11 + $0x58] sm:$0xf]
        %v1672 = vld [vmem:[%s11 + $0x5c] sm:$0xf]
        %v1673 = vld [vmem:[%s11 + $0x60] sm:$0xf]
        %v1674 = vld [vmem:[%s11 + $0x64] sm:$0xf]
        %v1675 = vld [vmem:[%s11 + $0x68] sm:$0xf]
        %v1676 = vld [vmem:[%s11 + $0x6c] sm:$0xf]
        %v1677 = vld [vmem:[%s11 + $0x70] sm:$0xf]
        %v1678 = vld [vmem:[%s11 + $0x74] sm:$0xf]
        %v1679 = vld [vmem:[%s11 + $0x78] sm:$0xf]
        %v1680 = vld [vmem:[%s11 + $0x7c] sm:$0xf]
        %v1681 = vld [vmem:[%s11 + $0x80] sm:$0xf]
        %v1682 = vld [vmem:[%s11 + $0x84] sm:$0xf]
        %v1683 = vld [vmem:[%s11 + $0x88] sm:$0xf]
        %v1684 = vld [vmem:[%s11 + $0x8c] sm:$0xf]
        %v1685 = vld [vmem:[%s11 + $0x90] sm:$0xf]
        %v1686 = vld [vmem:[%s11 + $0x94] sm:$0xf]
        %v1687 = vld [vmem:[%s11 + $0x98] sm:$0xf]
        %v1688 = vld [vmem:[%s11 + $0x9c] sm:$0xf]
        %v1689 = vld [vmem:[%s11 + $0xa0] sm:$0xf]
        %v1690 = vld [vmem:[%s11 + $0xa4] sm:$0xf]
        %v1691 = vld [vmem:[%s11 + $0xa8] sm:$0xf]
        %v1692 = vld [vmem:[%s11 + $0xac] sm:$0xf]
        %v1693 = vld [vmem:[%s11 + $0xb0] sm:$0xf]
        %v1694 = vld [vmem:[%s11 + $0xb4] sm:$0xf]
        %v1695 = vld [vmem:[%s11 + $0xb8] sm:$0xf]
        %v1696 = vld [vmem:[%s11 + $0xbc] sm:$0xf]
        %v1697 = vld [vmem:[%s11 + $0xc0] sm:$0xf]
        %v1698 = vld [vmem:[%s11 + $0xc4] sm:$0xf]
        %v1699 = vld [vmem:[%s11 + $0xc8] sm:$0xf]
        %v1700 = vld [vmem:[%s11 + $0xcc] sm:$0xf]
        %v1701 = vld [vmem:[%s11 + $0xd0] sm:$0xf]
        %v1702 = vld [vmem:[%s11 + $0xd4] sm:$0xf]
        %v1703 = vld [vmem:[%s11 + $0xd8] sm:$0xf]
        %v1704 = vld [vmem:[%s11 + $0xdc] sm:$0xf]
        %v1705 = vld [vmem:[%s11 + $0xe0] sm:$0xf]
        %v1706 = vld [vmem:[%s11 + $0xe4] sm:$0xf]
        %v1707 = vld [vmem:[%s11 + $0xe8] sm:$0xf]
        %v1708 = vld [vmem:[%s11 + $0xec] sm:$0xf]
        %v1709 = vld [vmem:[%s11 + $0xf0] sm:$0xf]
        %v1710 = vld [vmem:[%s11 + $0xf4] sm:$0xf]
        %v1711 = vld [vmem:[%s11 + $0xf8] sm:$0xf]
        %v1712 = vld [vmem:[%s11 + $0xfc] sm:$0xf]
        %v1713 = vld [vmem:[%s11 + $0x100] sm:$0xf]
        %v1714 = vld [vmem:[%s11 + $0x104] sm:$0xf]
        %v1715 = vld [vmem:[%s11 + $0x108] sm:$0xf]
        %v1716 = vld [vmem:[%s11 + $0x10c] sm:$0xf]
        %v1717 = vld [vmem:[%s11 + $0x110] sm:$0xf]
        %v1718 = vld [vmem:[%s11 + $0x114] sm:$0xf]
        %v1719 = vld [vmem:[%s11 + $0x118] sm:$0xf]
        %v1720 = vld [vmem:[%s11 + $0x11c] sm:$0xf]
        %v1721 = vld [vmem:[%s11 + $0x120] sm:$0xf]
        %v1722 = vld [vmem:[%s11 + $0x124] sm:$0xf]
        %v1723 = vld [vmem:[%s11 + $0x128] sm:$0xf]
        %v1724 = vld [vmem:[%s11 + $0x12c] sm:$0xf]
        %v1725 = vld [vmem:[%s11 + $0x130] sm:$0xf]
        %v1726 = vld [vmem:[%s11 + $0x134] sm:$0xf]
        %v1727 = vld [vmem:[%s11 + $0x138] sm:$0xf]
        %v1728 = vld [vmem:[%s11 + $0x13c] sm:$0xf]
        %v1729 = vld [vmem:[%s11 + $0x140] sm:$0xf]
        %v1730 = vld [vmem:[%s11 + $0x144] sm:$0xf]
        %v1731 = vld [vmem:[%s11 + $0x148] sm:$0xf]
        %v1732 = vld [vmem:[%s11 + $0x14c] sm:$0xf]
        %v1733 = vld [vmem:[%s11 + $0x150] sm:$0xf]
        %v1734 = vld [vmem:[%s11 + $0x154] sm:$0xf]
        %v1735 = vld [vmem:[%s11 + $0x158] sm:$0xf]
        %v1736 = vld [vmem:[%s11 + $0x15c] sm:$0xf]
        %v1737 = vld [vmem:[%s11 + $0x160] sm:$0xf]
        %v1738 = vld [vmem:[%s11 + $0x164] sm:$0xf]
        %v1739 = vld [vmem:[%s11 + $0x168] sm:$0xf]
        %v1740 = vld [vmem:[%s11 + $0x16c] sm:$0xf]
        %v1741 = vld [vmem:[%s11 + $0x170] sm:$0xf]
        %v1742 = vld [vmem:[%s11 + $0x174] sm:$0xf]
        %v1743 = vld [vmem:[%s11 + $0x178] sm:$0xf]
        %v1744 = vld [vmem:[%s11 + $0x17c] sm:$0xf]
        %v1745 = vld [vmem:[%s11 + $0x180] sm:$0xf]
        %v1746 = vld [vmem:[%s11 + $0x184] sm:$0xf]
        %v1747 = vld [vmem:[%s11 + $0x188] sm:$0xf]
        %v1748 = vld [vmem:[%s11 + $0x18c] sm:$0xf]
        %v1749 = vld [vmem:[%s11 + $0x190] sm:$0xf]
        %v1750 = vld [vmem:[%s11 + $0x194] sm:$0xf]
        %v1751 = vld [vmem:[%s11 + $0x198] sm:$0xf]
        %v1752 = vld [vmem:[%s11 + $0x19c] sm:$0xf]
        %v1753 = vld [vmem:[%s11 + $0x1a0] sm:$0xf]
        %v1754 = vld [vmem:[%s11 + $0x1a4] sm:$0xf]
        %v1755 = vld [vmem:[%s11 + $0x1a8] sm:$0xf]
        %v1756 = vld [vmem:[%s11 + $0x1ac] sm:$0xf]
        %v1757 = vld [vmem:[%s11 + $0x1b0] sm:$0xf]
        %v1758 = vld [vmem:[%s11 + $0x1b4] sm:$0xf]
        %v1759 = vld [vmem:[%s11 + $0x1b8] sm:$0xf]
        %v1760 = vld [vmem:[%s11 + $0x1bc] sm:$0xf]
        %v1761 = vld [vmem:[%s11 + $0x1c0] sm:$0xf]
        %v1762 = vld [vmem:[%s11 + $0x1c4] sm:$0xf]
        %v1763 = vld [vmem:[%s11 + $0x1c8] sm:$0xf]
        %v1764 = vld [vmem:[%s11 + $0x1cc] sm:$0xf]
        %v1765 = vld [vmem:[%s11 + $0x1d0] sm:$0xf]
        %v1766 = vld [vmem:[%s11 + $0x1d4] sm:$0xf]
        %v1767 = vld [vmem:[%s11 + $0x1d8] sm:$0xf]
        %v1768 = vld [vmem:[%s11 + $0x1dc] sm:$0xf]
        %v1769 = vld [vmem:[%s11 + $0x1e0] sm:$0xf]
        %v1770 = vld [vmem:[%s11 + $0x1e4] sm:$0xf]
        %v1771 = vld [vmem:[%s11 + $0x1e8] sm:$0xf]
        %v1772 = vld [vmem:[%s11 + $0x1ec] sm:$0xf]
        %v1773 = vld [vmem:[%s11 + $0x1f0] sm:$0xf]
        %v1774 = vld [vmem:[%s11 + $0x1f4] sm:$0xf]
        %v1775 = vld [vmem:[%s11 + $0x1f8] sm:$0xf]
        %v1776 = vld [vmem:[%s11 + $0x1fc] sm:$0xf]
        %v1777 = vld [vmem:[%s11 + $0x200] sm:$0xf]
        %v1778 = vld [vmem:[%s11 + $0x204] sm:$0xf]
        %v1779 = vld [vmem:[%s11 + $0x208] sm:$0xf]
        %v1780 = vld [vmem:[%s11 + $0x20c] sm:$0xf]
        %v1781 = vld [vmem:[%s11 + $0x210] sm:$0xf]
        %v1782 = vld [vmem:[%s11 + $0x214] sm:$0xf]
        %v1783 = vld [vmem:[%s11 + $0x218] sm:$0xf]
        %v1784 = vld [vmem:[%s11 + $0x21c] sm:$0xf]
        %v1785 = vld [vmem:[%s11 + $0x220] sm:$0xf]
        %v1786 = vld [vmem:[%s11 + $0x224] sm:$0xf]
        %v1787 = vld [vmem:[%s11 + $0x228] sm:$0xf]
        %v1788 = vld [vmem:[%s11 + $0x22c] sm:$0xf]
        %v1789 = vld [vmem:[%s11 + $0x230] sm:$0xf]
        %v1790 = vld [vmem:[%s11 + $0x234] sm:$0xf]
        %v1791 = vld [vmem:[%s11 + $0x238] sm:$0xf]
        %v1792 = vld [vmem:[%s11 + $0x23c] sm:$0xf]
        %v1793 = vld [vmem:[%s11 + $0x240] sm:$0xf]
        %v1794 = vld [vmem:[%s11 + $0x244] sm:$0xf]
        %v1795 = vld [vmem:[%s11 + $0x248] sm:$0xf]
        %v1796 = vld [vmem:[%s11 + $0x24c] sm:$0xf]
        %v1797 = vld [vmem:[%s11 + $0x250] sm:$0xf]
        %v1798 = vld [vmem:[%s11 + $0x254] sm:$0xf]
        %v1799 = vld [vmem:[%s11 + $0x258] sm:$0xf]
        %v1800 = vld [vmem:[%s11 + $0x25c] sm:$0xf]
        %v1801 = vld [vmem:[%s11 + $0x260] sm:$0xf]
        %v1802 = vld [vmem:[%s11 + $0x264] sm:$0xf]
        %v1803 = vld [vmem:[%s11 + $0x268] sm:$0xf]
        %v1804 = vld [vmem:[%s11 + $0x26c] sm:$0xf]
        %v1805 = vld [vmem:[%s11 + $0x270] sm:$0xf]
        %v1806 = vld [vmem:[%s11 + $0x274] sm:$0xf]
        %v1807 = vld [vmem:[%s11 + $0x278] sm:$0xf]
        %v1808 = vld [vmem:[%s11 + $0x27c] sm:$0xf]
        %v1809 = vld [vmem:[%s11 + $0x280] sm:$0xf]
        %v1810 = vld [vmem:[%s11 + $0x284] sm:$0xf]
        %v1811 = vld [vmem:[%s11 + $0x288] sm:$0xf]
        %v1812 = vld [vmem:[%s11 + $0x28c] sm:$0xf]
        %v1813 = vld [vmem:[%s11 + $0x290] sm:$0xf]
        %v1814 = vld [vmem:[%s11 + $0x294] sm:$0xf]
        %v1815 = vld [vmem:[%s11 + $0x298] sm:$0xf]
        %v1816 = vld [vmem:[%s11 + $0x29c] sm:$0xf]
        %v1817 = vld [vmem:[%s11 + $0x2a0] sm:$0xf]
        %v1818 = vld [vmem:[%s11 + $0x2a4] sm:$0xf]
        %v1819 = vld [vmem:[%s11 + $0x2a8] sm:$0xf]
        %v1820 = vld [vmem:[%s11 + $0x2ac] sm:$0xf]
        %v1821 = vld [vmem:[%s11 + $0x2b0] sm:$0xf]
        %v1822 = vld [vmem:[%s11 + $0x2b4] sm:$0xf]
        %v1823 = vld [vmem:[%s11 + $0x2b8] sm:$0xf]
        %v1824 = vld [vmem:[%s11 + $0x2bc] sm:$0xf]
        %v1825 = vld [vmem:[%s11 + $0x2c0] sm:$0xf]
        %v1826 = vld [vmem:[%s11 + $0x2c4] sm:$0xf]
        %v1827 = vld [vmem:[%s11 + $0x2c8] sm:$0xf]
        %v1828 = vld [vmem:[%s11 + $0x2cc] sm:$0xf]
        %v1829 = vld [vmem:[%s11 + $0x2d0] sm:$0xf]
        %v1830 = vld [vmem:[%s11 + $0x2d4] sm:$0xf]
        %v1831 = vld [vmem:[%s11 + $0x2d8] sm:$0xf]
        %v1832 = vld [vmem:[%s11 + $0x2dc] sm:$0xf]
        %v1833 = vld [vmem:[%s11 + $0x2e0] sm:$0xf]
        %v1834 = vld [vmem:[%s11 + $0x2e4] sm:$0xf]
        %v1835 = vld [vmem:[%s11 + $0x2e8] sm:$0xf]
        %v1836 = vld [vmem:[%s11 + $0x2ec] sm:$0xf]
        %v1837 = vld [vmem:[%s11 + $0x2f0] sm:$0xf]
        %v1838 = vld [vmem:[%s11 + $0x2f4] sm:$0xf]
        %v1839 = vld [vmem:[%s11 + $0x2f8] sm:$0xf]
        %v1840 = vld [vmem:[%s11 + $0x2fc] sm:$0xf]
        %v1841 = vld [vmem:[%s11 + $0x300] sm:$0xf]
        %v1842 = vld [vmem:[%s11 + $0x304] sm:$0xf]
        %v1843 = vld [vmem:[%s11 + $0x308] sm:$0xf]
        %v1844 = vld [vmem:[%s11 + $0x30c] sm:$0xf]
        %v1845 = vld [vmem:[%s11 + $0x310] sm:$0xf]
        %v1846 = vld [vmem:[%s11 + $0x314] sm:$0xf]
        %v1847 = vld [vmem:[%s11 + $0x318] sm:$0xf]
        %v1848 = vld [vmem:[%s11 + $0x31c] sm:$0xf]
        %v1849 = vld [vmem:[%s11 + $0x320] sm:$0xf]
        %v1850 = vld [vmem:[%s11 + $0x324] sm:$0xf]
        %v1851 = vld [vmem:[%s11 + $0x328] sm:$0xf]
        %v1852 = vld [vmem:[%s11 + $0x32c] sm:$0xf]
        %v1853 = vld [vmem:[%s11 + $0x330] sm:$0xf]
        %v1854 = vld [vmem:[%s11 + $0x334] sm:$0xf]
        %v1855 = vld [vmem:[%s11 + $0x338] sm:$0xf]
        %v1856 = vld [vmem:[%s11 + $0x33c] sm:$0xf]
        %v1857 = vld [vmem:[%s11 + $0x340] sm:$0xf]
        %v1858 = vld [vmem:[%s11 + $0x344] sm:$0xf]
        %v1859 = vld [vmem:[%s11 + $0x348] sm:$0xf]
        %v1860 = vld [vmem:[%s11 + $0x34c] sm:$0xf]
        %v1861 = vld [vmem:[%s11 + $0x350] sm:$0xf]
        %v1862 = vld [vmem:[%s11 + $0x354] sm:$0xf]
        %v1863 = vld [vmem:[%s11 + $0x358] sm:$0xf]
        %v1864 = vld [vmem:[%s11 + $0x35c] sm:$0xf]
        %v1865 = vld [vmem:[%s11 + $0x360] sm:$0xf]
        %v1866 = vld [vmem:[%s11 + $0x364] sm:$0xf]
        %v1867 = vld [vmem:[%s11 + $0x368] sm:$0xf]
        %v1868 = vld [vmem:[%s11 + $0x36c] sm:$0xf]
        %v1869 = vld [vmem:[%s11 + $0x370] sm:$0xf]
        %v1870 = vld [vmem:[%s11 + $0x374] sm:$0xf]
        %v1871 = vld [vmem:[%s11 + $0x378] sm:$0xf]
        %v1872 = vld [vmem:[%s11 + $0x37c] sm:$0xf]
        %v1873 = vld [vmem:[%s11 + $0x380] sm:$0xf]
        %v1874 = vld [vmem:[%s11 + $0x384] sm:$0xf]
        %v1875 = vld [vmem:[%s11 + $0x388] sm:$0xf]
        %v1876 = vld [vmem:[%s11 + $0x38c] sm:$0xf]
        %v1877 = vld [vmem:[%s11 + $0x390] sm:$0xf]
        %v1878 = vld [vmem:[%s11 + $0x394] sm:$0xf]
        %v1879 = vld [vmem:[%s11 + $0x398] sm:$0xf]
        %v1880 = vld [vmem:[%s11 + $0x39c] sm:$0xf]
        %v1881 = vld [vmem:[%s11 + $0x3a0] sm:$0xf]
        %v1882 = vld [vmem:[%s11 + $0x3a4] sm:$0xf]
        %v1883 = vld [vmem:[%s11 + $0x3a8] sm:$0xf]
        %v1884 = vld [vmem:[%s11 + $0x3ac] sm:$0xf]
        %v1885 = vld [vmem:[%s11 + $0x3b0] sm:$0xf]
        %v1886 = vld [vmem:[%s11 + $0x3b4] sm:$0xf]
        %v1887 = vld [vmem:[%s11 + $0x3b8] sm:$0xf]
        %v1888 = vld [vmem:[%s11 + $0x3bc] sm:$0xf]
        %v1889 = vld [vmem:[%s11 + $0x3c0] sm:$0xf]
        %v1890 = vld [vmem:[%s11 + $0x3c4] sm:$0xf]
        %v1891 = vld [vmem:[%s11 + $0x3c8] sm:$0xf]
        %v1892 = vld [vmem:[%s11 + $0x3cc] sm:$0xf]
        %v1893 = vld [vmem:[%s11 + $0x3d0] sm:$0xf]
        %v1894 = vld [vmem:[%s11 + $0x3d4] sm:$0xf]
        %v1895 = vld [vmem:[%s11 + $0x3d8] sm:$0xf]
        %v1896 = vld [vmem:[%s11 + $0x3dc] sm:$0xf]
        %v1897 = vld [vmem:[%s11 + $0x3e0] sm:$0xf]
        %v1898 = vld [vmem:[%s11 + $0x3e4] sm:$0xf]
        %v1899 = vld [vmem:[%s11 + $0x3e8] sm:$0xf]
        %v1900 = vld [vmem:[%s11 + $0x3ec] sm:$0xf]
        %v1901 = vld [vmem:[%s11 + $0x3f0] sm:$0xf]
        %v1902 = vld [vmem:[%s11 + $0x3f4] sm:$0xf]
        %v1903 = vld [vmem:[%s11 + $0x3f8] sm:$0xf]
        %v1904 = vld [vmem:[%s11 + $0x3fc] sm:$0xf]
        %v1905 = vld [vmem:[%s12] sm:$0x1]
        %v1907 = vperm.slane %v1905, 0
        %v2165 = vunpack.c.l.b16 %v1649
        %v2166 = vunpack.c.l.b16 %v1650
        %v2167 = vunpack.c.l.b16 %v1651
        %v2168 = vunpack.c.l.b16 %v1652
        %v2169 = vunpack.c.l.b16 %v1653
        %v2170 = vunpack.c.l.b16 %v1654
        %v2171 = vunpack.c.l.b16 %v1655
        %v2172 = vunpack.c.l.b16 %v1656
        %v2173 = vunpack.c.l.b16 %v1657
        %v2174 = vunpack.c.l.b16 %v1658
        %v2175 = vunpack.c.l.b16 %v1659
        %v2176 = vunpack.c.l.b16 %v1660
        %v2177 = vunpack.c.l.b16 %v1661
        %v2178 = vunpack.c.l.b16 %v1662
        %v2179 = vunpack.c.l.b16 %v1663
        %v2180 = vunpack.c.l.b16 %v1664
        %v2181 = vunpack.c.l.b16 %v1665
        %v2182 = vunpack.c.l.b16 %v1666
        %v2183 = vunpack.c.l.b16 %v1667
        %v2184 = vunpack.c.l.b16 %v1668
        %v2185 = vunpack.c.l.b16 %v1669
        %v2186 = vunpack.c.l.b16 %v1670
        %v2187 = vunpack.c.l.b16 %v1671
        %v2188 = vunpack.c.l.b16 %v1672
        %v2189 = vunpack.c.l.b16 %v1673
        %v2190 = vunpack.c.l.b16 %v1674
        %v2191 = vunpack.c.l.b16 %v1675
        %v2192 = vunpack.c.l.b16 %v1676
        %v2193 = vunpack.c.l.b16 %v1677
        %v2194 = vunpack.c.l.b16 %v1678
        %v2195 = vunpack.c.l.b16 %v1679
        %v2196 = vunpack.c.l.b16 %v1680
        %v2197 = vunpack.c.l.b16 %v1681
        %v2198 = vunpack.c.l.b16 %v1682
        %v2199 = vunpack.c.l.b16 %v1683
        %v2200 = vunpack.c.l.b16 %v1684
        %v2201 = vunpack.c.l.b16 %v1685
        %v2202 = vunpack.c.l.b16 %v1686
        %v2203 = vunpack.c.l.b16 %v1687
        %v2204 = vunpack.c.l.b16 %v1688
        %v2205 = vunpack.c.l.b16 %v1689
        %v2206 = vunpack.c.l.b16 %v1690
        %v2207 = vunpack.c.l.b16 %v1691
        %v2208 = vunpack.c.l.b16 %v1692
        %v2209 = vunpack.c.l.b16 %v1693
        %v2210 = vunpack.c.l.b16 %v1694
        %v2211 = vunpack.c.l.b16 %v1695
        %v2212 = vunpack.c.l.b16 %v1696
        %v2213 = vunpack.c.l.b16 %v1697
        %v2214 = vunpack.c.l.b16 %v1698
        %v2215 = vunpack.c.l.b16 %v1699
        %v2216 = vunpack.c.l.b16 %v1700
        %v2217 = vunpack.c.l.b16 %v1701
        %v2218 = vunpack.c.l.b16 %v1702
        %v2219 = vunpack.c.l.b16 %v1703
        %v2220 = vunpack.c.l.b16 %v1704
        %v2221 = vunpack.c.l.b16 %v1705
        %v2222 = vunpack.c.l.b16 %v1706
        %v2223 = vunpack.c.l.b16 %v1707
        %v2224 = vunpack.c.l.b16 %v1708
        %v2225 = vunpack.c.l.b16 %v1709
        %v2226 = vunpack.c.l.b16 %v1710
        %v2227 = vunpack.c.l.b16 %v1711
        %v2228 = vunpack.c.l.b16 %v1712
        %v2229 = vunpack.c.l.b16 %v1713
        %v2230 = vunpack.c.l.b16 %v1714
        %v2231 = vunpack.c.l.b16 %v1715
        %v2232 = vunpack.c.l.b16 %v1716
        %v2233 = vunpack.c.l.b16 %v1717
        %v2234 = vunpack.c.l.b16 %v1718
        %v2235 = vunpack.c.l.b16 %v1719
        %v2236 = vunpack.c.l.b16 %v1720
        %v2237 = vunpack.c.l.b16 %v1721
        %v2238 = vunpack.c.l.b16 %v1722
        %v2239 = vunpack.c.l.b16 %v1723
        %v2240 = vunpack.c.l.b16 %v1724
        %v2241 = vunpack.c.l.b16 %v1725
        %v2242 = vunpack.c.l.b16 %v1726
        %v2243 = vunpack.c.l.b16 %v1727
        %v2244 = vunpack.c.l.b16 %v1728
        %v2245 = vunpack.c.l.b16 %v1729
        %v2246 = vunpack.c.l.b16 %v1730
        %v2247 = vunpack.c.l.b16 %v1731
        %v2248 = vunpack.c.l.b16 %v1732
        %v2249 = vunpack.c.l.b16 %v1733
        %v2250 = vunpack.c.l.b16 %v1734
        %v2251 = vunpack.c.l.b16 %v1735
        %v2252 = vunpack.c.l.b16 %v1736
        %v2253 = vunpack.c.l.b16 %v1737
        %v2254 = vunpack.c.l.b16 %v1738
        %v2255 = vunpack.c.l.b16 %v1739
        %v2256 = vunpack.c.l.b16 %v1740
        %v2257 = vunpack.c.l.b16 %v1741
        %v2258 = vunpack.c.l.b16 %v1742
        %v2259 = vunpack.c.l.b16 %v1743
        %v2260 = vunpack.c.l.b16 %v1744
        %v2261 = vunpack.c.l.b16 %v1745
        %v2262 = vunpack.c.l.b16 %v1746
        %v2263 = vunpack.c.l.b16 %v1747
        %v2264 = vunpack.c.l.b16 %v1748
        %v2265 = vunpack.c.l.b16 %v1749
        %v2266 = vunpack.c.l.b16 %v1750
        %v2267 = vunpack.c.l.b16 %v1751
        %v2268 = vunpack.c.l.b16 %v1752
        %v2269 = vunpack.c.l.b16 %v1753
        %v2270 = vunpack.c.l.b16 %v1754
        %v2271 = vunpack.c.l.b16 %v1755
        %v2272 = vunpack.c.l.b16 %v1756
        %v2273 = vunpack.c.l.b16 %v1757
        %v2274 = vunpack.c.l.b16 %v1758
        %v2275 = vunpack.c.l.b16 %v1759
        %v2276 = vunpack.c.l.b16 %v1760
        %v2277 = vunpack.c.l.b16 %v1761
        %v2278 = vunpack.c.l.b16 %v1762
        %v2279 = vunpack.c.l.b16 %v1763
        %v2280 = vunpack.c.l.b16 %v1764
        %v2281 = vunpack.c.l.b16 %v1765
        %v2282 = vunpack.c.l.b16 %v1766
        %v2283 = vunpack.c.l.b16 %v1767
        %v2284 = vunpack.c.l.b16 %v1768
        %v2285 = vunpack.c.l.b16 %v1769
        %v2286 = vunpack.c.l.b16 %v1770
        %v2287 = vunpack.c.l.b16 %v1771
        %v2288 = vunpack.c.l.b16 %v1772
        %v2289 = vunpack.c.l.b16 %v1773
        %v2290 = vunpack.c.l.b16 %v1774
        %v2291 = vunpack.c.l.b16 %v1775
        %v2292 = vunpack.c.l.b16 %v1776
        %v2293 = vunpack.c.l.b16 %v1777
        %v2294 = vunpack.c.l.b16 %v1778
        %v2295 = vunpack.c.l.b16 %v1779
        %v2296 = vunpack.c.l.b16 %v1780
        %v2297 = vunpack.c.l.b16 %v1781
        %v2298 = vunpack.c.l.b16 %v1782
        %v2299 = vunpack.c.l.b16 %v1783
        %v2300 = vunpack.c.l.b16 %v1784
        %v2301 = vunpack.c.l.b16 %v1785
        %v2302 = vunpack.c.l.b16 %v1786
        %v2303 = vunpack.c.l.b16 %v1787
        %v2304 = vunpack.c.l.b16 %v1788
        %v2305 = vunpack.c.l.b16 %v1789
        %v2306 = vunpack.c.l.b16 %v1790
        %v2307 = vunpack.c.l.b16 %v1791
        %v2308 = vunpack.c.l.b16 %v1792
        %v2309 = vunpack.c.l.b16 %v1793
        %v2310 = vunpack.c.l.b16 %v1794
        %v2311 = vunpack.c.l.b16 %v1795
        %v2312 = vunpack.c.l.b16 %v1796
        %v2313 = vunpack.c.l.b16 %v1797
        %v2314 = vunpack.c.l.b16 %v1798
        %v2315 = vunpack.c.l.b16 %v1799
        %v2316 = vunpack.c.l.b16 %v1800
        %v2317 = vunpack.c.l.b16 %v1801
        %v2318 = vunpack.c.l.b16 %v1802
        %v2319 = vunpack.c.l.b16 %v1803
        %v2320 = vunpack.c.l.b16 %v1804
        %v2321 = vunpack.c.l.b16 %v1805
        %v2322 = vunpack.c.l.b16 %v1806
        %v2323 = vunpack.c.l.b16 %v1807
        %v2324 = vunpack.c.l.b16 %v1808
        %v2325 = vunpack.c.l.b16 %v1809
        %v2326 = vunpack.c.l.b16 %v1810
        %v2327 = vunpack.c.l.b16 %v1811
        %v2328 = vunpack.c.l.b16 %v1812
        %v2329 = vunpack.c.l.b16 %v1813
        %v2330 = vunpack.c.l.b16 %v1814
        %v2331 = vunpack.c.l.b16 %v1815
        %v2332 = vunpack.c.l.b16 %v1816
        %v2333 = vunpack.c.l.b16 %v1817
        %v2334 = vunpack.c.l.b16 %v1818
        %v2335 = vunpack.c.l.b16 %v1819
        %v2336 = vunpack.c.l.b16 %v1820
        %v2337 = vunpack.c.l.b16 %v1821
        %v2338 = vunpack.c.l.b16 %v1822
        %v2339 = vunpack.c.l.b16 %v1823
        %v2340 = vunpack.c.l.b16 %v1824
        %v2341 = vunpack.c.l.b16 %v1825
        %v2342 = vunpack.c.l.b16 %v1826
        %v2343 = vunpack.c.l.b16 %v1827
        %v2344 = vunpack.c.l.b16 %v1828
        %v2345 = vunpack.c.l.b16 %v1829
        %v2346 = vunpack.c.l.b16 %v1830
        %v2347 = vunpack.c.l.b16 %v1831
        %v2348 = vunpack.c.l.b16 %v1832
        %v2349 = vunpack.c.l.b16 %v1833
        %v2350 = vunpack.c.l.b16 %v1834
        %v2351 = vunpack.c.l.b16 %v1835
        %v2352 = vunpack.c.l.b16 %v1836
        %v2353 = vunpack.c.l.b16 %v1837
        %v2354 = vunpack.c.l.b16 %v1838
        %v2355 = vunpack.c.l.b16 %v1839
        %v2356 = vunpack.c.l.b16 %v1840
        %v2357 = vunpack.c.l.b16 %v1841
        %v2358 = vunpack.c.l.b16 %v1842
        %v2359 = vunpack.c.l.b16 %v1843
        %v2360 = vunpack.c.l.b16 %v1844
        %v2361 = vunpack.c.l.b16 %v1845
        %v2362 = vunpack.c.l.b16 %v1846
        %v2363 = vunpack.c.l.b16 %v1847
        %v2364 = vunpack.c.l.b16 %v1848
        %v2365 = vunpack.c.l.b16 %v1849
        %v2366 = vunpack.c.l.b16 %v1850
        %v2367 = vunpack.c.l.b16 %v1851
        %v2368 = vunpack.c.l.b16 %v1852
        %v2369 = vunpack.c.l.b16 %v1853
        %v2370 = vunpack.c.l.b16 %v1854
        %v2371 = vunpack.c.l.b16 %v1855
        %v2372 = vunpack.c.l.b16 %v1856
        %v2373 = vunpack.c.l.b16 %v1857
        %v2374 = vunpack.c.l.b16 %v1858
        %v2375 = vunpack.c.l.b16 %v1859
        %v2376 = vunpack.c.l.b16 %v1860
        %v2377 = vunpack.c.l.b16 %v1861
        %v2378 = vunpack.c.l.b16 %v1862
        %v2379 = vunpack.c.l.b16 %v1863
        %v2380 = vunpack.c.l.b16 %v1864
        %v2381 = vunpack.c.l.b16 %v1865
        %v2382 = vunpack.c.l.b16 %v1866
        %v2383 = vunpack.c.l.b16 %v1867
        %v2384 = vunpack.c.l.b16 %v1868
        %v2385 = vunpack.c.l.b16 %v1869
        %v2386 = vunpack.c.l.b16 %v1870
        %v2387 = vunpack.c.l.b16 %v1871
        %v2388 = vunpack.c.l.b16 %v1872
        %v2389 = vunpack.c.l.b16 %v1873
        %v2390 = vunpack.c.l.b16 %v1874
        %v2391 = vunpack.c.l.b16 %v1875
        %v2392 = vunpack.c.l.b16 %v1876
        %v2393 = vunpack.c.l.b16 %v1877
        %v2394 = vunpack.c.l.b16 %v1878
        %v2395 = vunpack.c.l.b16 %v1879
        %v2396 = vunpack.c.l.b16 %v1880
        %v2397 = vunpack.c.l.b16 %v1881
        %v2398 = vunpack.c.l.b16 %v1882
        %v2399 = vunpack.c.l.b16 %v1883
        %v2400 = vunpack.c.l.b16 %v1884
        %v2401 = vunpack.c.l.b16 %v1885
        %v2402 = vunpack.c.l.b16 %v1886
        %v2403 = vunpack.c.l.b16 %v1887
        %v2404 = vunpack.c.l.b16 %v1888
        %v2405 = vunpack.c.l.b16 %v1889
        %v2406 = vunpack.c.l.b16 %v1890
        %v2407 = vunpack.c.l.b16 %v1891
        %v2408 = vunpack.c.l.b16 %v1892
        %v2409 = vunpack.c.l.b16 %v1893
        %v2410 = vunpack.c.l.b16 %v1894
        %v2411 = vunpack.c.l.b16 %v1895
        %v2412 = vunpack.c.l.b16 %v1896
        %v2413 = vunpack.c.l.b16 %v1897
        %v2414 = vunpack.c.l.b16 %v1898
        %v2415 = vunpack.c.l.b16 %v1899
        %v2416 = vunpack.c.l.b16 %v1900
        %v2417 = vunpack.c.l.b16 %v1901
        %v2418 = vunpack.c.l.b16 %v1902
        %v2419 = vunpack.c.l.b16 %v1903
        %v2420 = vunpack.c.l.b16 %v1904
        %v2421 = vpack.c.b16 %v2166, %v2165
        %v2422 = vpack.c.b16 %v2168, %v2167
        %v2423 = vpack.c.b16 %v2170, %v2169
        %v2424 = vpack.c.b16 %v2172, %v2171
        %v2425 = vpack.c.b16 %v2174, %v2173
        %v2426 = vpack.c.b16 %v2176, %v2175
        %v2427 = vpack.c.b16 %v2178, %v2177
        %v2428 = vpack.c.b16 %v2180, %v2179
        %v2429 = vpack.c.b16 %v2182, %v2181
        %v2430 = vpack.c.b16 %v2184, %v2183
        %v2431 = vpack.c.b16 %v2186, %v2185
        %v2432 = vpack.c.b16 %v2188, %v2187
        %v2433 = vpack.c.b16 %v2190, %v2189
        %v2434 = vpack.c.b16 %v2192, %v2191
        %v2435 = vpack.c.b16 %v2194, %v2193
        %v2436 = vpack.c.b16 %v2196, %v2195
        %v2437 = vpack.c.b16 %v2198, %v2197
        %v2438 = vpack.c.b16 %v2200, %v2199
        %v2439 = vpack.c.b16 %v2202, %v2201
        %v2440 = vpack.c.b16 %v2204, %v2203
        %v2441 = vpack.c.b16 %v2206, %v2205
        %v2442 = vpack.c.b16 %v2208, %v2207
        %v2443 = vpack.c.b16 %v2210, %v2209
        %v2444 = vpack.c.b16 %v2212, %v2211
        %v2445 = vpack.c.b16 %v2214, %v2213
        %v2446 = vpack.c.b16 %v2216, %v2215
        %v2447 = vpack.c.b16 %v2218, %v2217
        %v2448 = vpack.c.b16 %v2220, %v2219
        %v2449 = vpack.c.b16 %v2222, %v2221
        %v2450 = vpack.c.b16 %v2224, %v2223
        %v2451 = vpack.c.b16 %v2226, %v2225
        %v2452 = vpack.c.b16 %v2228, %v2227
        %v2453 = vpack.c.b16 %v2230, %v2229
        %v2454 = vpack.c.b16 %v2232, %v2231
        %v2455 = vpack.c.b16 %v2234, %v2233
        %v2456 = vpack.c.b16 %v2236, %v2235
        %v2457 = vpack.c.b16 %v2238, %v2237
        %v2458 = vpack.c.b16 %v2240, %v2239
        %v2459 = vpack.c.b16 %v2242, %v2241
        %v2460 = vpack.c.b16 %v2244, %v2243
        %v2461 = vpack.c.b16 %v2246, %v2245
        %v2462 = vpack.c.b16 %v2248, %v2247
        %v2463 = vpack.c.b16 %v2250, %v2249
        %v2464 = vpack.c.b16 %v2252, %v2251
        %v2465 = vpack.c.b16 %v2254, %v2253
        %v2466 = vpack.c.b16 %v2256, %v2255
        %v2467 = vpack.c.b16 %v2258, %v2257
        %v2468 = vpack.c.b16 %v2260, %v2259
        %v2469 = vpack.c.b16 %v2262, %v2261
        %v2470 = vpack.c.b16 %v2264, %v2263
        %v2471 = vpack.c.b16 %v2266, %v2265
        %v2472 = vpack.c.b16 %v2268, %v2267
        %v2473 = vpack.c.b16 %v2270, %v2269
        %v2474 = vpack.c.b16 %v2272, %v2271
        %v2475 = vpack.c.b16 %v2274, %v2273
        %v2476 = vpack.c.b16 %v2276, %v2275
        %v2477 = vpack.c.b16 %v2278, %v2277
        %v2478 = vpack.c.b16 %v2280, %v2279
        %v2479 = vpack.c.b16 %v2282, %v2281
        %v2480 = vpack.c.b16 %v2284, %v2283
        %v2481 = vpack.c.b16 %v2286, %v2285
        %v2482 = vpack.c.b16 %v2288, %v2287
        %v2483 = vpack.c.b16 %v2290, %v2289
        %v2484 = vpack.c.b16 %v2292, %v2291
        %v2485 = vpack.c.b16 %v2294, %v2293
        %v2486 = vpack.c.b16 %v2296, %v2295
        %v2487 = vpack.c.b16 %v2298, %v2297
        %v2488 = vpack.c.b16 %v2300, %v2299
        %v2489 = vpack.c.b16 %v2302, %v2301
        %v2490 = vpack.c.b16 %v2304, %v2303
        %v2491 = vpack.c.b16 %v2306, %v2305
        %v2492 = vpack.c.b16 %v2308, %v2307
        %v2493 = vpack.c.b16 %v2310, %v2309
        %v2494 = vpack.c.b16 %v2312, %v2311
        %v2495 = vpack.c.b16 %v2314, %v2313
        %v2496 = vpack.c.b16 %v2316, %v2315
        %v2497 = vpack.c.b16 %v2318, %v2317
        %v2498 = vpack.c.b16 %v2320, %v2319
        %v2499 = vpack.c.b16 %v2322, %v2321
        %v2500 = vpack.c.b16 %v2324, %v2323
        %v2501 = vpack.c.b16 %v2326, %v2325
        %v2502 = vpack.c.b16 %v2328, %v2327
        %v2503 = vpack.c.b16 %v2330, %v2329
        %v2504 = vpack.c.b16 %v2332, %v2331
        %v2505 = vpack.c.b16 %v2334, %v2333
        %v2506 = vpack.c.b16 %v2336, %v2335
        %v2507 = vpack.c.b16 %v2338, %v2337
        %v2508 = vpack.c.b16 %v2340, %v2339
        %v2509 = vpack.c.b16 %v2342, %v2341
        %v2510 = vpack.c.b16 %v2344, %v2343
        %v2511 = vpack.c.b16 %v2346, %v2345
        %v2512 = vpack.c.b16 %v2348, %v2347
        %v2513 = vpack.c.b16 %v2350, %v2349
        %v2514 = vpack.c.b16 %v2352, %v2351
        %v2515 = vpack.c.b16 %v2354, %v2353
        %v2516 = vpack.c.b16 %v2356, %v2355
        %v2517 = vpack.c.b16 %v2358, %v2357
        %v2518 = vpack.c.b16 %v2360, %v2359
        %v2519 = vpack.c.b16 %v2362, %v2361
        %v2520 = vpack.c.b16 %v2364, %v2363
        %v2521 = vpack.c.b16 %v2366, %v2365
        %v2522 = vpack.c.b16 %v2368, %v2367
        %v2523 = vpack.c.b16 %v2370, %v2369
        %v2524 = vpack.c.b16 %v2372, %v2371
        %v2525 = vpack.c.b16 %v2374, %v2373
        %v2526 = vpack.c.b16 %v2376, %v2375
        %v2527 = vpack.c.b16 %v2378, %v2377
        %v2528 = vpack.c.b16 %v2380, %v2379
        %v2529 = vpack.c.b16 %v2382, %v2381
        %v2530 = vpack.c.b16 %v2384, %v2383
        %v2531 = vpack.c.b16 %v2386, %v2385
        %v2532 = vpack.c.b16 %v2388, %v2387
        %v2533 = vpack.c.b16 %v2390, %v2389
        %v2534 = vpack.c.b16 %v2392, %v2391
        %v2535 = vpack.c.b16 %v2394, %v2393
        %v2536 = vpack.c.b16 %v2396, %v2395
        %v2537 = vpack.c.b16 %v2398, %v2397
        %v2538 = vpack.c.b16 %v2400, %v2399
        %v2539 = vpack.c.b16 %v2402, %v2401
        %v2540 = vpack.c.b16 %v2404, %v2403
        %v2541 = vpack.c.b16 %v2406, %v2405
        %v2542 = vpack.c.b16 %v2408, %v2407
        %v2543 = vpack.c.b16 %v2410, %v2409
        %v2544 = vpack.c.b16 %v2412, %v2411
        %v2545 = vpack.c.b16 %v2414, %v2413
        %v2546 = vpack.c.b16 %v2416, %v2415
        %v2547 = vpack.c.b16 %v2418, %v2417
        %v2548 = vpack.c.b16 %v2420, %v2419
        %2677 = vmatpush.bf16.msra.mxu0 %v2428
        %2678 = vmatpush.bf16.msra.mxu0 %v2427
        %2679 = vmatpush.bf16.msra.mxu0 %v2426
        %2680 = vmatpush.bf16.msra.mxu0 %v2425
        %2681 = vmatpush.bf16.msra.mxu0 %v2424
        %2682 = vmatpush.bf16.msra.mxu0 %v2423
        %2683 = vmatpush.bf16.msra.mxu0 %v2422
        %2684 = vmatpush.bf16.msra.mxu0 %v2421
        %2685 = vmatmul.bf16.gmra.mxu0 %v1633
        %v2686 = vpop.f32.mrf.mxu0
        %v2687 = vadd.f32 %v1907, %v2686
        %v2688 = vpop.f32.mrf.mxu0
        %v2689 = vadd.f32 %v1907, %v2688
        %2690 = vdwg.mxu0
        %2691 = vmatpush.bf16.msra.mxu0 %v2436
        %2692 = vmatpush.bf16.msra.mxu0 %v2435
        %2693 = vmatpush.bf16.msra.mxu0 %v2434
        %2694 = vmatpush.bf16.msra.mxu0 %v2433
        %2695 = vmatpush.bf16.msra.mxu0 %v2432
        %2696 = vmatpush.bf16.msra.mxu0 %v2431
        %2697 = vmatpush.bf16.msra.mxu0 %v2430
        %2698 = vmatpush.bf16.msra.mxu0 %v2429
        %2699 = vmatmul.bf16.gmra.mxu0 %v1634
        %v2700 = vpop.f32.mrf.mxu0
        %v2701 = vadd.f32 %v2687, %v2700
        %v2702 = vpop.f32.mrf.mxu0
        %v2703 = vadd.f32 %v2689, %v2702
        %2704 = vdwg.mxu0
        %2705 = vmatpush.bf16.msra.mxu0 %v2444
        %2706 = vmatpush.bf16.msra.mxu0 %v2443
        %2707 = vmatpush.bf16.msra.mxu0 %v2442
        %2708 = vmatpush.bf16.msra.mxu0 %v2441
        %2709 = vmatpush.bf16.msra.mxu0 %v2440
        %2710 = vmatpush.bf16.msra.mxu0 %v2439
        %2711 = vmatpush.bf16.msra.mxu0 %v2438
        %2712 = vmatpush.bf16.msra.mxu0 %v2437
        %2713 = vmatmul.bf16.gmra.mxu0 %v1635
        %v2714 = vpop.f32.mrf.mxu0
        %v2715 = vadd.f32 %v2701, %v2714
        %v2716 = vpop.f32.mrf.mxu0
        %v2717 = vadd.f32 %v2703, %v2716
        %2718 = vdwg.mxu0
        %2719 = vmatpush.bf16.msra.mxu0 %v2452
        %2720 = vmatpush.bf16.msra.mxu0 %v2451
        %2721 = vmatpush.bf16.msra.mxu0 %v2450
        %2722 = vmatpush.bf16.msra.mxu0 %v2449
        %2723 = vmatpush.bf16.msra.mxu0 %v2448
        %2724 = vmatpush.bf16.msra.mxu0 %v2447
        %2725 = vmatpush.bf16.msra.mxu0 %v2446
        %2726 = vmatpush.bf16.msra.mxu0 %v2445
        %2727 = vmatmul.bf16.gmra.mxu0 %v1636
        %v2728 = vpop.f32.mrf.mxu0
        %v2729 = vadd.f32 %v2715, %v2728
        %v2730 = vpop.f32.mrf.mxu0
        %v2731 = vadd.f32 %v2717, %v2730
        %2732 = vdwg.mxu0
        %2733 = vmatpush.bf16.msra.mxu0 %v2460
        %2734 = vmatpush.bf16.msra.mxu0 %v2459
        %2735 = vmatpush.bf16.msra.mxu0 %v2458
        %2736 = vmatpush.bf16.msra.mxu0 %v2457
        %2737 = vmatpush.bf16.msra.mxu0 %v2456
        %2738 = vmatpush.bf16.msra.mxu0 %v2455
        %2739 = vmatpush.bf16.msra.mxu0 %v2454
        %2740 = vmatpush.bf16.msra.mxu0 %v2453
        %2741 = vmatmul.bf16.gmra.mxu0 %v1637
        %v2742 = vpop.f32.mrf.mxu0
        %v2743 = vadd.f32 %v2729, %v2742
        %v2744 = vpop.f32.mrf.mxu0
        %v2745 = vadd.f32 %v2731, %v2744
        %2746 = vdwg.mxu0
        %2747 = vmatpush.bf16.msra.mxu0 %v2468
        %2748 = vmatpush.bf16.msra.mxu0 %v2467
        %2749 = vmatpush.bf16.msra.mxu0 %v2466
        %2750 = vmatpush.bf16.msra.mxu0 %v2465
        %2751 = vmatpush.bf16.msra.mxu0 %v2464
        %2752 = vmatpush.bf16.msra.mxu0 %v2463
        %2753 = vmatpush.bf16.msra.mxu0 %v2462
        %2754 = vmatpush.bf16.msra.mxu0 %v2461
        %2755 = vmatmul.bf16.gmra.mxu0 %v1638
        %v2756 = vpop.f32.mrf.mxu0
        %v2757 = vadd.f32 %v2743, %v2756
        %v2758 = vpop.f32.mrf.mxu0
        %v2759 = vadd.f32 %v2745, %v2758
        %2760 = vdwg.mxu0
        %2761 = vmatpush.bf16.msra.mxu0 %v2476
        %2762 = vmatpush.bf16.msra.mxu0 %v2475
        %2763 = vmatpush.bf16.msra.mxu0 %v2474
        %2764 = vmatpush.bf16.msra.mxu0 %v2473
        %2765 = vmatpush.bf16.msra.mxu0 %v2472
        %2766 = vmatpush.bf16.msra.mxu0 %v2471
        %2767 = vmatpush.bf16.msra.mxu0 %v2470
        %2768 = vmatpush.bf16.msra.mxu0 %v2469
        %2769 = vmatmul.bf16.gmra.mxu0 %v1639
        %v2770 = vpop.f32.mrf.mxu0
        %v2771 = vadd.f32 %v2757, %v2770
        %v2772 = vpop.f32.mrf.mxu0
        %v2773 = vadd.f32 %v2759, %v2772
        %2774 = vdwg.mxu0
        %2775 = vmatpush.bf16.msra.mxu0 %v2484
        %2776 = vmatpush.bf16.msra.mxu0 %v2483
        %2777 = vmatpush.bf16.msra.mxu0 %v2482
        %2778 = vmatpush.bf16.msra.mxu0 %v2481
        %2779 = vmatpush.bf16.msra.mxu0 %v2480
        %2780 = vmatpush.bf16.msra.mxu0 %v2479
        %2781 = vmatpush.bf16.msra.mxu0 %v2478
        %2782 = vmatpush.bf16.msra.mxu0 %v2477
        %2783 = vmatmul.bf16.gmra.mxu0 %v1640
        %v2784 = vpop.f32.mrf.mxu0
        %v2785 = vadd.f32 %v2771, %v2784
        %v2786 = vpop.f32.mrf.mxu0
        %v2787 = vadd.f32 %v2773, %v2786
        %2788 = vdwg.mxu0
        %2789 = vmatpush.bf16.msra.mxu0 %v2492
        %2790 = vmatpush.bf16.msra.mxu0 %v2491
        %2791 = vmatpush.bf16.msra.mxu0 %v2490
        %2792 = vmatpush.bf16.msra.mxu0 %v2489
        %2793 = vmatpush.bf16.msra.mxu0 %v2488
        %2794 = vmatpush.bf16.msra.mxu0 %v2487
        %2795 = vmatpush.bf16.msra.mxu0 %v2486
        %2796 = vmatpush.bf16.msra.mxu0 %v2485
        %2797 = vmatmul.bf16.gmra.mxu0 %v1641
        %v2798 = vpop.f32.mrf.mxu0
        %v2799 = vadd.f32 %v2785, %v2798
        %v2800 = vpop.f32.mrf.mxu0
        %v2801 = vadd.f32 %v2787, %v2800
        %2802 = vdwg.mxu0
        %2803 = vmatpush.bf16.msra.mxu0 %v2500
        %2804 = vmatpush.bf16.msra.mxu0 %v2499
        %2805 = vmatpush.bf16.msra.mxu0 %v2498
        %2806 = vmatpush.bf16.msra.mxu0 %v2497
        %2807 = vmatpush.bf16.msra.mxu0 %v2496
        %2808 = vmatpush.bf16.msra.mxu0 %v2495
        %2809 = vmatpush.bf16.msra.mxu0 %v2494
        %2810 = vmatpush.bf16.msra.mxu0 %v2493
        %2811 = vmatmul.bf16.gmra.mxu0 %v1642
        %v2812 = vpop.f32.mrf.mxu0
        %v2813 = vadd.f32 %v2799, %v2812
        %v2814 = vpop.f32.mrf.mxu0
        %v2815 = vadd.f32 %v2801, %v2814
        %2816 = vdwg.mxu0
        %2817 = vmatpush.bf16.msra.mxu0 %v2508
        %2818 = vmatpush.bf16.msra.mxu0 %v2507
        %2819 = vmatpush.bf16.msra.mxu0 %v2506
        %2820 = vmatpush.bf16.msra.mxu0 %v2505
        %2821 = vmatpush.bf16.msra.mxu0 %v2504
        %2822 = vmatpush.bf16.msra.mxu0 %v2503
        %2823 = vmatpush.bf16.msra.mxu0 %v2502
        %2824 = vmatpush.bf16.msra.mxu0 %v2501
        %2825 = vmatmul.bf16.gmra.mxu0 %v1643
        %v2826 = vpop.f32.mrf.mxu0
        %v2827 = vadd.f32 %v2813, %v2826
        %v2828 = vpop.f32.mrf.mxu0
        %v2829 = vadd.f32 %v2815, %v2828
        %2830 = vdwg.mxu0
        %2831 = vmatpush.bf16.msra.mxu0 %v2516
        %2832 = vmatpush.bf16.msra.mxu0 %v2515
        %2833 = vmatpush.bf16.msra.mxu0 %v2514
        %2834 = vmatpush.bf16.msra.mxu0 %v2513
        %2835 = vmatpush.bf16.msra.mxu0 %v2512
        %2836 = vmatpush.bf16.msra.mxu0 %v2511
        %2837 = vmatpush.bf16.msra.mxu0 %v2510
        %2838 = vmatpush.bf16.msra.mxu0 %v2509
        %2839 = vmatmul.bf16.gmra.mxu0 %v1644
        %v2840 = vpop.f32.mrf.mxu0
        %v2841 = vadd.f32 %v2827, %v2840
        %v2842 = vpop.f32.mrf.mxu0
        %v2843 = vadd.f32 %v2829, %v2842
        %2844 = vdwg.mxu0
        %2845 = vmatpush.bf16.msra.mxu0 %v2524
        %2846 = vmatpush.bf16.msra.mxu0 %v2523
        %2847 = vmatpush.bf16.msra.mxu0 %v2522
        %2848 = vmatpush.bf16.msra.mxu0 %v2521
        %2849 = vmatpush.bf16.msra.mxu0 %v2520
        %2850 = vmatpush.bf16.msra.mxu0 %v2519
        %2851 = vmatpush.bf16.msra.mxu0 %v2518
        %2852 = vmatpush.bf16.msra.mxu0 %v2517
        %2853 = vmatmul.bf16.gmra.mxu0 %v1645
        %v2854 = vpop.f32.mrf.mxu0
        %v2855 = vadd.f32 %v2841, %v2854
        %v2856 = vpop.f32.mrf.mxu0
        %v2857 = vadd.f32 %v2843, %v2856
        %2858 = vdwg.mxu0
        %2859 = vmatpush.bf16.msra.mxu0 %v2532
        %2860 = vmatpush.bf16.msra.mxu0 %v2531
        %2861 = vmatpush.bf16.msra.mxu0 %v2530
        %2862 = vmatpush.bf16.msra.mxu0 %v2529
        %2863 = vmatpush.bf16.msra.mxu0 %v2528
        %2864 = vmatpush.bf16.msra.mxu0 %v2527
        %2865 = vmatpush.bf16.msra.mxu0 %v2526
        %2866 = vmatpush.bf16.msra.mxu0 %v2525
        %2867 = vmatmul.bf16.gmra.mxu0 %v1646
        %v2868 = vpop.f32.mrf.mxu0
        %v2869 = vadd.f32 %v2855, %v2868
        %v2870 = vpop.f32.mrf.mxu0
        %v2871 = vadd.f32 %v2857, %v2870
        %2872 = vdwg.mxu0
        %2873 = vmatpush.bf16.msra.mxu0 %v2540
        %2874 = vmatpush.bf16.msra.mxu0 %v2539
        %2875 = vmatpush.bf16.msra.mxu0 %v2538
        %2876 = vmatpush.bf16.msra.mxu0 %v2537
        %2877 = vmatpush.bf16.msra.mxu0 %v2536
        %2878 = vmatpush.bf16.msra.mxu0 %v2535
        %2879 = vmatpush.bf16.msra.mxu0 %v2534
        %2880 = vmatpush.bf16.msra.mxu0 %v2533
        %2881 = vmatmul.bf16.gmra.mxu0 %v1647
        %v2882 = vpop.f32.mrf.mxu0
        %v2883 = vadd.f32 %v2869, %v2882
        %v2884 = vpop.f32.mrf.mxu0
        %v2885 = vadd.f32 %v2871, %v2884
        %2886 = vdwg.mxu0
        %2887 = vmatpush.bf16.msra.mxu0 %v2548
        %2888 = vmatpush.bf16.msra.mxu0 %v2547
        %2889 = vmatpush.bf16.msra.mxu0 %v2546
        %2890 = vmatpush.bf16.msra.mxu0 %v2545
        %2891 = vmatpush.bf16.msra.mxu0 %v2544
        %2892 = vmatpush.bf16.msra.mxu0 %v2543
        %2893 = vmatpush.bf16.msra.mxu0 %v2542
        %2894 = vmatpush.bf16.msra.mxu0 %v2541
        %2895 = vmatmul.bf16.gmra.mxu0 %v1648
        %v2896 = vpop.f32.mrf.mxu0
        %v2897 = vadd.f32 %v2883, %v2896
        %v2898 = vpop.f32.mrf.mxu0
        %v2899 = vadd.f32 %v2885, %v2898
        %2900 = vdwg.mxu0
        %v2901 = vadd.f32 %v1143, %v2897
        %v2902 = vadd.f32 %v1144, %v2899
        %v2903 = vld [vmem:[%s15] sm:$0x1]
        %v2904 = vld [vmem:[%s16] sm:$0x1]
        %v2905 = vsel %vm765, %v2901, 0.0
        %2906 = vadd.xlane.f32.xlu0 %v2905
        %v2907 = vpop.xlane.xlu0 %2906
        %v2908 = vsel %vm765, %v2902, 0.0
        %2909 = vadd.xlane.f32.xlu0 %v2908
        %v2910 = vpop.xlane.xlu0 %2909
        %v2911 = vmul.f32 %v2907, %v1096
        %v2912 = vmul.f32 %v2910, %v1096
        %v2913 = vsub.f32 %v2901, %v2911
        %v2914 = vsub.f32 %v2902, %v2912
        %v2915 = vmul.f32 %v2913, %v2913
        %v2916 = vmul.f32 %v2914, %v2914
        %v2917 = vsel %vm765, %v2915, 0.0
        %2918 = vadd.xlane.f32.xlu0 %v2917
        %v2919 = vpop.xlane.xlu0 %2918
        %v2920 = vsel %vm765, %v2916, 0.0
        %2921 = vadd.xlane.f32.xlu0 %v2920
        %v2922 = vpop.xlane.xlu0 %2921
        %v2923 = vmul.f32 %v2919, %v1096
        %v2924 = vmul.f32 %v2922, %v1096
        %v2925 = vadd.f32 %v2923, 1e-05
        %v2926 = vadd.f32 %v2924, 1e-05
        %v2927 = vrsqrt.pop %v2925
        %v2928 = vmul.f32 %v2927, %v2925
        %v2929 = vmul.f32 %v2928, %v2927
        %v2930 = vmul.f32 0.5, %v2929
        %v2931 = vsub.f32 1.5, %v2930
        %v2932 = vmul.f32 %v2927, %v2931
        %vm2933 = vweird.f32 %v2925
        %vm2934 = vweird.f32 %v2927
        %vm2935 = vmor %vm2933, %vm2934
        %v2936 = vsel %vm2935, %v2927, %v2932
        %v2937 = vrsqrt.pop %v2926
        %v2938 = vmul.f32 %v2937, %v2926
        %v2939 = vmul.f32 %v2938, %v2937
        %v2940 = vmul.f32 0.5, %v2939
        %v2941 = vsub.f32 1.5, %v2940
        %v2942 = vmul.f32 %v2937, %v2941
        %vm2943 = vweird.f32 %v2926
        %vm2944 = vweird.f32 %v2937
        %vm2945 = vmor %vm2943, %vm2944
        %v2946 = vsel %vm2945, %v2937, %v2942
        %v2947 = vmul.f32 %v2913, %v2936
        %v2948 = vmul.f32 %v2914, %v2946
        %v2950 = vperm.slane %v2903, 0
        %v2952 = vmul.f32 %v2947, %v2950
        %v2953 = vmul.f32 %v2948, %v2950
        %v2955 = vperm.slane %v2904, 0
        %v2957 = vadd.f32 %v2952, %v2955
        %v2958 = vadd.f32 %v2953, %v2955
        %v2959 = vpack.c.bf16 %v2958, %v2957
        %s2960 = scalar_lea.vmem %s5, 16
        %v2961 = vld [vmem:[%s2960] sm:$0xf]
        %v2962 = vld [vmem:[%s2960 + $0x4] sm:$0xf]
        %v2963 = vld [vmem:[%s2960 + $0x8] sm:$0xf]
        %v2964 = vld [vmem:[%s2960 + $0xc] sm:$0xf]
        %s2965 = scalar_lea.vmem %s6, 1
        %v2966 = vld [vmem:[%s2965] sm:$0x1]
        %v2968 = vperm.slane %v2966, 0
        %v2974 = vunpack.c.l.b16 %v2961
        %v2975 = vunpack.c.l.b16 %v2962
        %v2976 = vunpack.c.l.b16 %v2963
        %v2977 = vunpack.c.l.b16 %v2964
        %v2978 = vpack.c.b16 %v2975, %v2974
        %v2979 = vpack.c.b16 %v2977, %v2976
        %v2983 = vsel %vm765, %v2959, 0
        %2985 = vmatpush.bf16.msra.mxu0 0
        %2986 = vmatpush.bf16.msra.mxu0 0
        %2987 = vmatpush.bf16.msra.mxu0 0
        %2988 = vmatpush.bf16.msra.mxu0 0
        %2989 = vmatpush.bf16.msra.mxu0 0
        %2990 = vmatpush.bf16.msra.mxu0 0
        %2991 = vmatpush.bf16.msra.mxu0 %v2979
        %2992 = vmatpush.bf16.msra.mxu0 %v2978
        %2993 = vmatmul.bf16.gmra.mxu0 %v2983
        %v2994 = vpop.f32.mrf.mxu0
        %v2995 = vadd.f32 %v2968, %v2994
        %v2996 = vpop.f32.mrf.mxu0
        %v2997 = vadd.f32 %v2968, %v2996
        %2998 = vdwg.mxu0
        %v2999 = vpack.c.bf16 %v2995, %v2995
        %v3000 = vpack.c.bf16 %v2997, %v2997
        %v3001 = vpack.c.bf16 %v2997, %v2995
        %v3002 = vunpack.c.l.bf16 %v2999
        %v3003 = vunpack.c.l.bf16 %v3000
        %v3004 = vmul.f32 %v3002, %v788
        %v3005 = vmul.f32 %v3003, %v788
        %v3006 = vpack.c.bf16 %v3004, %v3004
        %v3007 = vpack.c.bf16 %v3005, %v3005
        %v3008 = vmul.f32 %v3002, %v793
        %v3009 = vmul.f32 %v3003, %v793
        %v3010 = vpack.c.bf16 %v3008, %v3008
        %v3011 = vpack.c.bf16 %v3009, %v3009
        %v3012 = vmul.f32 %v3002, %v798
        %v3013 = vmul.f32 %v3003, %v798
        %v3014 = vpack.c.bf16 %v3012, %v3012
        %v3015 = vpack.c.bf16 %v3013, %v3013
        %v3016 = vmul.f32 %v3002, %v803
        %v3017 = vmul.f32 %v3003, %v803
        %v3018 = vpack.c.bf16 %v3016, %v3016
        %v3019 = vpack.c.bf16 %v3017, %v3017
        %v3022 = vunpack.c.l.b16 %v3006
        %v3023 = vunpack.c.l.b16 %v3007
        %v3024 = vpack.c.b16 %v3023, %v3022
        %v3027 = vunpack.c.l.b16 %v3010
        %v3028 = vunpack.c.l.b16 %v3011
        %v3029 = vpack.c.b16 %v3028, %v3027
        %v3032 = vunpack.c.l.b16 %v3014
        %v3033 = vunpack.c.l.b16 %v3015
        %v3034 = vpack.c.b16 %v3033, %v3032
        %v3037 = vunpack.c.l.b16 %v3018
        %v3038 = vunpack.c.l.b16 %v3019
        %v3039 = vpack.c.b16 %v3038, %v3037
        %3041 = vrot.lane.b32.xlu0 %v3001, 96
        %v3042 = vpop.permute.xlu0 %3041
        %v3044 = vsel %vm765, %v3024, 0
        %v3047 = vsel %vm765, %v3029, 0
        %v3050 = vsel %vm765, %v3034, 0
        %v3053 = vsel %vm765, %v3039, 0
        %v3056 = vsel %vm765, %v3042, 0
        %3058 = vmatpush.bf16.xpose.msra.mxu0 0
        %3059 = vmatpush.bf16.xpose.msra.mxu0 0
        %3060 = vmatpush.bf16.xpose.msra.mxu0 0
        %3061 = vmatpush.bf16.xpose.msra.mxu0 0
        %3062 = vmatpush.bf16.xpose.msra.mxu0 0
        %3063 = vmatpush.bf16.xpose.msra.mxu0 0
        %3064 = vmatpush.bf16.xpose.msra.mxu0 0
        %3065 = vmatpush.bf16.xpose.msra.mxu0 %v3056
        %3066 = vmatmul.bf16.gmra.mxu0 %v3044
        %v3067 = vpop.f32.mrf.mxu0
        %v3068 = vadd.f32 0.0, %v3067
        %v3069 = vpop.f32.mrf.mxu0
        %v3070 = vadd.f32 0.0, %v3069
        %3071 = vmatmul.bf16.gmra.mxu0 %v3047
        %v3072 = vpop.f32.mrf.mxu0
        %v3073 = vadd.f32 0.0, %v3072
        %v3074 = vpop.f32.mrf.mxu0
        %v3075 = vadd.f32 0.0, %v3074
        %3076 = vmatmul.bf16.gmra.mxu0 %v3050
        %v3077 = vpop.f32.mrf.mxu0
        %v3078 = vadd.f32 0.0, %v3077
        %v3079 = vpop.f32.mrf.mxu0
        %v3080 = vadd.f32 0.0, %v3079
        %3081 = vmatmul.bf16.gmra.mxu0 %v3053
        %v3082 = vpop.f32.mrf.mxu0
        %v3083 = vadd.f32 0.0, %v3082
        %v3084 = vpop.f32.mrf.mxu0
        %v3085 = vadd.f32 0.0, %v3084
        %3086 = vdwg.mxu0
        %v3087 = vmul.f32 %v3068, 0.35355338
        %v3088 = vmul.f32 %v3070, 0.35355338
        %v3089 = vmul.f32 %v3073, 0.35355338
        %v3090 = vmul.f32 %v3075, 0.35355338
        %v3091 = vmul.f32 %v3078, 0.35355338
        %v3092 = vmul.f32 %v3080, 0.35355338
        %v3093 = vmul.f32 %v3083, 0.35355338
        %v3094 = vmul.f32 %v3085, 0.35355338
        %v3095 = vadd.f32 %v3087, %v742
        %v3096 = vadd.f32 %v3088, %v743
        %v3097 = vadd.f32 %v3089, %v742
        %v3098 = vadd.f32 %v3090, %v743
        %v3099 = vadd.f32 %v3091, %v742
        %v3100 = vadd.f32 %v3092, %v743
        %v3101 = vadd.f32 %v3093, %v742
        %v3102 = vadd.f32 %v3094, %v743
        %v3103 = vsel %vm891, %v3095, -inf
        %3104 = vmax.xlane.f32.xlu0 %v3103
        %v3105 = vpop.xlane.xlu0 %3104
        %v3106 = vsel %vm891, %v3096, -inf
        %3107 = vmax.xlane.f32.xlu0 %v3106
        %v3108 = vpop.xlane.xlu0 %3107
        %v3109 = vsel %vm891, %v3097, -inf
        %3110 = vmax.xlane.f32.xlu0 %v3109
        %v3111 = vpop.xlane.xlu0 %3110
        %v3112 = vsel %vm891, %v3098, -inf
        %3113 = vmax.xlane.f32.xlu0 %v3112
        %v3114 = vpop.xlane.xlu0 %3113
        %v3115 = vsel %vm891, %v3099, -inf
        %3116 = vmax.xlane.f32.xlu0 %v3115
        %v3117 = vpop.xlane.xlu0 %3116
        %v3118 = vsel %vm891, %v3100, -inf
        %3119 = vmax.xlane.f32.xlu0 %v3118
        %v3120 = vpop.xlane.xlu0 %3119
        %v3121 = vsel %vm891, %v3101, -inf
        %3122 = vmax.xlane.f32.xlu0 %v3121
        %v3123 = vpop.xlane.xlu0 %3122
        %v3124 = vsel %vm891, %v3102, -inf
        %3125 = vmax.xlane.f32.xlu0 %v3124
        %v3126 = vpop.xlane.xlu0 %3125
        %v3127 = vsub.f32 %v3095, %v3105
        %v3128 = vsub.f32 %v3096, %v3108
        %v3129 = vsub.f32 %v3097, %v3111
        %v3130 = vsub.f32 %v3098, %v3114
        %v3131 = vsub.f32 %v3099, %v3117
        %v3132 = vsub.f32 %v3100, %v3120
        %v3133 = vsub.f32 %v3101, %v3123
        %v3134 = vsub.f32 %v3102, %v3126
        %v3135 = vmul.f32 %v3127, 1.442695
        %v3136 = vpow.pop %v3135
        %v3137 = vmul.f32 %v3128, 1.442695
        %v3138 = vpow.pop %v3137
        %v3139 = vmul.f32 %v3129, 1.442695
        %v3140 = vpow.pop %v3139
        %v3141 = vmul.f32 %v3130, 1.442695
        %v3142 = vpow.pop %v3141
        %v3143 = vmul.f32 %v3131, 1.442695
        %v3144 = vpow.pop %v3143
        %v3145 = vmul.f32 %v3132, 1.442695
        %v3146 = vpow.pop %v3145
        %v3147 = vmul.f32 %v3133, 1.442695
        %v3148 = vpow.pop %v3147
        %v3149 = vmul.f32 %v3134, 1.442695
        %v3150 = vpow.pop %v3149
        %v3151 = vsel %vm891, %v3136, 0.0
        %3152 = vadd.xlane.f32.xlu0 %v3151
        %v3153 = vpop.xlane.xlu0 %3152
        %v3154 = vsel %vm891, %v3138, 0.0
        %3155 = vadd.xlane.f32.xlu0 %v3154
        %v3156 = vpop.xlane.xlu0 %3155
        %v3157 = vsel %vm891, %v3140, 0.0
        %3158 = vadd.xlane.f32.xlu0 %v3157
        %v3159 = vpop.xlane.xlu0 %3158
        %v3160 = vsel %vm891, %v3142, 0.0
        %3161 = vadd.xlane.f32.xlu0 %v3160
        %v3162 = vpop.xlane.xlu0 %3161
        %v3163 = vsel %vm891, %v3144, 0.0
        %3164 = vadd.xlane.f32.xlu0 %v3163
        %v3165 = vpop.xlane.xlu0 %3164
        %v3166 = vsel %vm891, %v3146, 0.0
        %3167 = vadd.xlane.f32.xlu0 %v3166
        %v3168 = vpop.xlane.xlu0 %3167
        %v3169 = vsel %vm891, %v3148, 0.0
        %3170 = vadd.xlane.f32.xlu0 %v3169
        %v3171 = vpop.xlane.xlu0 %3170
        %v3172 = vsel %vm891, %v3150, 0.0
        %3173 = vadd.xlane.f32.xlu0 %v3172
        %v3174 = vpop.xlane.xlu0 %3173
        %v3175 = vrcp.pop %v3153
        %v3176 = vrcp.pop %v3156
        %v3177 = vrcp.pop %v3159
        %v3178 = vrcp.pop %v3162
        %v3179 = vrcp.pop %v3165
        %v3180 = vrcp.pop %v3168
        %v3181 = vrcp.pop %v3171
        %v3182 = vrcp.pop %v3174
        %v3183 = vmul.f32 %v3136, %v3175
        %v3184 = vmul.f32 %v3138, %v3176
        %v3185 = vmul.f32 %v3140, %v3177
        %v3186 = vmul.f32 %v3142, %v3178
        %v3187 = vmul.f32 %v3144, %v3179
        %v3188 = vmul.f32 %v3146, %v3180
        %v3189 = vmul.f32 %v3148, %v3181
        %v3190 = vmul.f32 %v3150, %v3182
        %v3191 = vpack.c.bf16 %v3184, %v3183
        %v3192 = vpack.c.bf16 %v3186, %v3185
        %v3193 = vpack.c.bf16 %v3188, %v3187
        %v3194 = vpack.c.bf16 %v3190, %v3189
        %3195 = vrot.lane.b32.xlu0 %v3001, 64
        %v3196 = vpop.permute.xlu0 %3195
        %v3199 = vsel %vm891, %v3191, 0
        %v3202 = vsel %vm891, %v3192, 0
        %v3205 = vsel %vm891, %v3193, 0
        %v3208 = vsel %vm891, %v3194, 0
        %3210 = vmatpush.bf16.msra.mxu0 0
        %3211 = vmatpush.bf16.msra.mxu0 0
        %3212 = vmatpush.bf16.msra.mxu0 0
        %3213 = vmatpush.bf16.msra.mxu0 0
        %3214 = vmatpush.bf16.msra.mxu0 0
        %3215 = vmatpush.bf16.msra.mxu0 0
        %3216 = vmatpush.bf16.msra.mxu0 0
        %3217 = vmatpush.bf16.msra.mxu0 %v3196
        %3218 = vmatmul.bf16.gmra.mxu0 %v3199
        %v3219 = vpop.f32.mrf.mxu0
        %v3220 = vadd.f32 0.0, %v3219
        %v3221 = vpop.f32.mrf.mxu0
        %v3222 = vadd.f32 0.0, %v3221
        %3223 = vmatmul.bf16.gmra.mxu0 %v3202
        %v3224 = vpop.f32.mrf.mxu0
        %v3225 = vadd.f32 0.0, %v3224
        %v3226 = vpop.f32.mrf.mxu0
        %v3227 = vadd.f32 0.0, %v3226
        %3228 = vmatmul.bf16.gmra.mxu0 %v3205
        %v3229 = vpop.f32.mrf.mxu0
        %v3230 = vadd.f32 0.0, %v3229
        %v3231 = vpop.f32.mrf.mxu0
        %v3232 = vadd.f32 0.0, %v3231
        %3233 = vmatmul.bf16.gmra.mxu0 %v3208
        %v3234 = vpop.f32.mrf.mxu0
        %v3235 = vadd.f32 0.0, %v3234
        %v3236 = vpop.f32.mrf.mxu0
        %v3237 = vadd.f32 0.0, %v3236
        %3238 = vdwg.mxu0
        %v3239 = vmul.f32 %v3220, %v788
        %v3240 = vmul.f32 %v3222, %v788
        %v3241 = vmul.f32 %v3225, %v793
        %v3242 = vmul.f32 %v3227, %v793
        %v3243 = vadd.f32 %v3239, %v3241
        %v3244 = vadd.f32 %v3240, %v3242
        %v3245 = vmul.f32 %v3230, %v798
        %v3246 = vmul.f32 %v3232, %v798
        %v3247 = vadd.f32 %v3243, %v3245
        %v3248 = vadd.f32 %v3244, %v3246
        %v3249 = vmul.f32 %v3235, %v803
        %v3250 = vmul.f32 %v3237, %v803
        %v3251 = vadd.f32 %v3247, %v3249
        %v3252 = vadd.f32 %v3248, %v3250
        %v3253 = vpack.c.bf16 %v3252, %v3251
        %s3254 = scalar_lea.vmem %s7, 16
        %v3255 = vld [vmem:[%s3254] sm:$0xf]
        %v3256 = vld [vmem:[%s3254 + $0x4] sm:$0xf]
        %v3257 = vld [vmem:[%s3254 + $0x8] sm:$0xf]
        %v3258 = vld [vmem:[%s3254 + $0xc] sm:$0xf]
        %s3259 = scalar_lea.vmem %s8, 1
        %v3260 = vld [vmem:[%s3259] sm:$0x1]
        %v3262 = vperm.slane %v3260, 0
        %v3268 = vunpack.c.l.b16 %v3255
        %v3269 = vunpack.c.l.b16 %v3256
        %v3270 = vunpack.c.l.b16 %v3257
        %v3271 = vunpack.c.l.b16 %v3258
        %v3272 = vpack.c.b16 %v3269, %v3268
        %v3273 = vpack.c.b16 %v3271, %v3270
        %v3277 = vsel %vm765, %v3253, 0
        %3279 = vmatpush.bf16.msra.mxu0 0
        %3280 = vmatpush.bf16.msra.mxu0 0
        %3281 = vmatpush.bf16.msra.mxu0 0
        %3282 = vmatpush.bf16.msra.mxu0 0
        %3283 = vmatpush.bf16.msra.mxu0 0
        %3284 = vmatpush.bf16.msra.mxu0 0
        %3285 = vmatpush.bf16.msra.mxu0 %v3273
        %3286 = vmatpush.bf16.msra.mxu0 %v3272
        %3287 = vmatmul.bf16.gmra.mxu0 %v3277
        %v3288 = vpop.f32.mrf.mxu0
        %v3289 = vadd.f32 %v3262, %v3288
        %v3290 = vpop.f32.mrf.mxu0
        %v3291 = vadd.f32 %v3262, %v3290
        %3292 = vdwg.mxu0
        %v3293 = vadd.f32 %v2957, %v3289
        %v3294 = vadd.f32 %v2958, %v3291
        %s3295 = scalar_lea.vmem %s13, 1
        %v3296 = vld [vmem:[%s3295] sm:$0x1]
        %s3297 = scalar_lea.vmem %s14, 1
        %v3298 = vld [vmem:[%s3297] sm:$0x1]
        %v3299 = vsel %vm765, %v3293, 0.0
        %3300 = vadd.xlane.f32.xlu0 %v3299
        %v3301 = vpop.xlane.xlu0 %3300
        %v3302 = vsel %vm765, %v3294, 0.0
        %3303 = vadd.xlane.f32.xlu0 %v3302
        %v3304 = vpop.xlane.xlu0 %3303
        %v3305 = vmul.f32 %v3301, %v1096
        %v3306 = vmul.f32 %v3304, %v1096
        %v3307 = vsub.f32 %v3293, %v3305
        %v3308 = vsub.f32 %v3294, %v3306
        %v3309 = vmul.f32 %v3307, %v3307
        %v3310 = vmul.f32 %v3308, %v3308
        %v3311 = vsel %vm765, %v3309, 0.0
        %3312 = vadd.xlane.f32.xlu0 %v3311
        %v3313 = vpop.xlane.xlu0 %3312
        %v3314 = vsel %vm765, %v3310, 0.0
        %3315 = vadd.xlane.f32.xlu0 %v3314
        %v3316 = vpop.xlane.xlu0 %3315
        %v3317 = vmul.f32 %v3313, %v1096
        %v3318 = vmul.f32 %v3316, %v1096
        %v3319 = vadd.f32 %v3317, 1e-05
        %v3320 = vadd.f32 %v3318, 1e-05
        %v3321 = vrsqrt.pop %v3319
        %v3322 = vmul.f32 %v3321, %v3319
        %v3323 = vmul.f32 %v3322, %v3321
        %v3324 = vmul.f32 0.5, %v3323
        %v3325 = vsub.f32 1.5, %v3324
        %v3326 = vmul.f32 %v3321, %v3325
        %vm3327 = vweird.f32 %v3319
        %vm3328 = vweird.f32 %v3321
        %vm3329 = vmor %vm3327, %vm3328
        %v3330 = vsel %vm3329, %v3321, %v3326
        %v3331 = vrsqrt.pop %v3320
        %v3332 = vmul.f32 %v3331, %v3320
        %v3333 = vmul.f32 %v3332, %v3331
        %v3334 = vmul.f32 0.5, %v3333
        %v3335 = vsub.f32 1.5, %v3334
        %v3336 = vmul.f32 %v3331, %v3335
        %vm3337 = vweird.f32 %v3320
        %vm3338 = vweird.f32 %v3331
        %vm3339 = vmor %vm3337, %vm3338
        %v3340 = vsel %vm3339, %v3331, %v3336
        %v3341 = vmul.f32 %v3307, %v3330
        %v3342 = vmul.f32 %v3308, %v3340
        %v3344 = vperm.slane %v3296, 0
        %v3346 = vmul.f32 %v3341, %v3344
        %v3347 = vmul.f32 %v3342, %v3344
        %v3349 = vperm.slane %v3298, 0
        %v3351 = vadd.f32 %v3346, %v3349
        %v3352 = vadd.f32 %v3347, %v3349
        %v3353 = vpack.c.bf16 %v3352, %v3351
        %s3354 = scalar_lea.vmem %s9, 256
        %v3355 = vld [vmem:[%s3354] sm:$0xff]
        %v3356 = vld [vmem:[%s3354 + $0x8] sm:$0xff]
        %v3357 = vld [vmem:[%s3354 + $0x10] sm:$0xff]
        %v3358 = vld [vmem:[%s3354 + $0x18] sm:$0xff]
        %v3359 = vld [vmem:[%s3354 + $0x20] sm:$0xff]
        %v3360 = vld [vmem:[%s3354 + $0x28] sm:$0xff]
        %v3361 = vld [vmem:[%s3354 + $0x30] sm:$0xff]
        %v3362 = vld [vmem:[%s3354 + $0x38] sm:$0xff]
        %v3363 = vld [vmem:[%s3354 + $0x40] sm:$0xff]
        %v3364 = vld [vmem:[%s3354 + $0x48] sm:$0xff]
        %v3365 = vld [vmem:[%s3354 + $0x50] sm:$0xff]
        %v3366 = vld [vmem:[%s3354 + $0x58] sm:$0xff]
        %v3367 = vld [vmem:[%s3354 + $0x60] sm:$0xff]
        %v3368 = vld [vmem:[%s3354 + $0x68] sm:$0xff]
        %v3369 = vld [vmem:[%s3354 + $0x70] sm:$0xff]
        %v3370 = vld [vmem:[%s3354 + $0x78] sm:$0xff]
        %v3371 = vld [vmem:[%s3354 + $0x80] sm:$0xff]
        %v3372 = vld [vmem:[%s3354 + $0x88] sm:$0xff]
        %v3373 = vld [vmem:[%s3354 + $0x90] sm:$0xff]
        %v3374 = vld [vmem:[%s3354 + $0x98] sm:$0xff]
        %v3375 = vld [vmem:[%s3354 + $0xa0] sm:$0xff]
        %v3376 = vld [vmem:[%s3354 + $0xa8] sm:$0xff]
        %v3377 = vld [vmem:[%s3354 + $0xb0] sm:$0xff]
        %v3378 = vld [vmem:[%s3354 + $0xb8] sm:$0xff]
        %v3379 = vld [vmem:[%s3354 + $0xc0] sm:$0xff]
        %v3380 = vld [vmem:[%s3354 + $0xc8] sm:$0xff]
        %v3381 = vld [vmem:[%s3354 + $0xd0] sm:$0xff]
        %v3382 = vld [vmem:[%s3354 + $0xd8] sm:$0xff]
        %v3383 = vld [vmem:[%s3354 + $0xe0] sm:$0xff]
        %v3384 = vld [vmem:[%s3354 + $0xe8] sm:$0xff]
        %v3385 = vld [vmem:[%s3354 + $0xf0] sm:$0xff]
        %v3386 = vld [vmem:[%s3354 + $0xf8] sm:$0xff]
        %s3387 = scalar_lea.vmem %s10, 16
        %v3388 = vld [vmem:[%s3387] sm:$0xff]
        %v3389 = vld [vmem:[%s3387 + $0x8] sm:$0xff]
        %v3392 = vperm.slane %v3388, 0
        %v3393 = vperm.slane %v3388, 1
        %v3394 = vperm.slane %v3388, 2
        %v3395 = vperm.slane %v3388, 3
        %v3396 = vperm.slane %v3388, 4
        %v3397 = vperm.slane %v3388, 5
        %v3398 = vperm.slane %v3388, 6
        %v3399 = vperm.slane %v3388, 7
        %v3400 = vperm.slane %v3389, 0
        %v3401 = vperm.slane %v3389, 1
        %v3402 = vperm.slane %v3389, 2
        %v3403 = vperm.slane %v3389, 3
        %v3404 = vperm.slane %v3389, 4
        %v3405 = vperm.slane %v3389, 5
        %v3406 = vperm.slane %v3389, 6
        %v3407 = vperm.slane %v3389, 7
        %v3456 = vunpack.c.l.b16 %v3355
        %v3457 = vunpack.c.h.b16 %v3355
        %v3458 = vunpack.c.l.b16 %v3356
        %v3459 = vunpack.c.h.b16 %v3356
        %v3460 = vunpack.c.l.b16 %v3357
        %v3461 = vunpack.c.h.b16 %v3357
        %v3462 = vunpack.c.l.b16 %v3358
        %v3463 = vunpack.c.h.b16 %v3358
        %v3464 = vunpack.c.l.b16 %v3359
        %v3465 = vunpack.c.h.b16 %v3359
        %v3466 = vunpack.c.l.b16 %v3360
        %v3467 = vunpack.c.h.b16 %v3360
        %v3468 = vunpack.c.l.b16 %v3361
        %v3469 = vunpack.c.h.b16 %v3361
        %v3470 = vunpack.c.l.b16 %v3362
        %v3471 = vunpack.c.h.b16 %v3362
        %v3472 = vunpack.c.l.b16 %v3363
        %v3473 = vunpack.c.h.b16 %v3363
        %v3474 = vunpack.c.l.b16 %v3364
        %v3475 = vunpack.c.h.b16 %v3364
        %v3476 = vunpack.c.l.b16 %v3365
        %v3477 = vunpack.c.h.b16 %v3365
        %v3478 = vunpack.c.l.b16 %v3366
        %v3479 = vunpack.c.h.b16 %v3366
        %v3480 = vunpack.c.l.b16 %v3367
        %v3481 = vunpack.c.h.b16 %v3367
        %v3482 = vunpack.c.l.b16 %v3368
        %v3483 = vunpack.c.h.b16 %v3368
        %v3484 = vunpack.c.l.b16 %v3369
        %v3485 = vunpack.c.h.b16 %v3369
        %v3486 = vunpack.c.l.b16 %v3370
        %v3487 = vunpack.c.h.b16 %v3370
        %v3488 = vunpack.c.l.b16 %v3371
        %v3489 = vunpack.c.h.b16 %v3371
        %v3490 = vunpack.c.l.b16 %v3372
        %v3491 = vunpack.c.h.b16 %v3372
        %v3492 = vunpack.c.l.b16 %v3373
        %v3493 = vunpack.c.h.b16 %v3373
        %v3494 = vunpack.c.l.b16 %v3374
        %v3495 = vunpack.c.h.b16 %v3374
        %v3496 = vunpack.c.l.b16 %v3375
        %v3497 = vunpack.c.h.b16 %v3375
        %v3498 = vunpack.c.l.b16 %v3376
        %v3499 = vunpack.c.h.b16 %v3376
        %v3500 = vunpack.c.l.b16 %v3377
        %v3501 = vunpack.c.h.b16 %v3377
        %v3502 = vunpack.c.l.b16 %v3378
        %v3503 = vunpack.c.h.b16 %v3378
        %v3504 = vunpack.c.l.b16 %v3379
        %v3505 = vunpack.c.h.b16 %v3379
        %v3506 = vunpack.c.l.b16 %v3380
        %v3507 = vunpack.c.h.b16 %v3380
        %v3508 = vunpack.c.l.b16 %v3381
        %v3509 = vunpack.c.h.b16 %v3381
        %v3510 = vunpack.c.l.b16 %v3382
        %v3511 = vunpack.c.h.b16 %v3382
        %v3512 = vunpack.c.l.b16 %v3383
        %v3513 = vunpack.c.h.b16 %v3383
        %v3514 = vunpack.c.l.b16 %v3384
        %v3515 = vunpack.c.h.b16 %v3384
        %v3516 = vunpack.c.l.b16 %v3385
        %v3517 = vunpack.c.h.b16 %v3385
        %v3518 = vunpack.c.l.b16 %v3386
        %v3519 = vunpack.c.h.b16 %v3386
        %v3520 = vpack.c.b16 %v3472, %v3456
        %v3521 = vpack.c.b16 %v3473, %v3457
        %v3522 = vpack.c.b16 %v3474, %v3458
        %v3523 = vpack.c.b16 %v3475, %v3459
        %v3524 = vpack.c.b16 %v3476, %v3460
        %v3525 = vpack.c.b16 %v3477, %v3461
        %v3526 = vpack.c.b16 %v3478, %v3462
        %v3527 = vpack.c.b16 %v3479, %v3463
        %v3528 = vpack.c.b16 %v3480, %v3464
        %v3529 = vpack.c.b16 %v3481, %v3465
        %v3530 = vpack.c.b16 %v3482, %v3466
        %v3531 = vpack.c.b16 %v3483, %v3467
        %v3532 = vpack.c.b16 %v3484, %v3468
        %v3533 = vpack.c.b16 %v3485, %v3469
        %v3534 = vpack.c.b16 %v3486, %v3470
        %v3535 = vpack.c.b16 %v3487, %v3471
        %v3536 = vpack.c.b16 %v3504, %v3488
        %v3537 = vpack.c.b16 %v3505, %v3489
        %v3538 = vpack.c.b16 %v3506, %v3490
        %v3539 = vpack.c.b16 %v3507, %v3491
        %v3540 = vpack.c.b16 %v3508, %v3492
        %v3541 = vpack.c.b16 %v3509, %v3493
        %v3542 = vpack.c.b16 %v3510, %v3494
        %v3543 = vpack.c.b16 %v3511, %v3495
        %v3544 = vpack.c.b16 %v3512, %v3496
        %v3545 = vpack.c.b16 %v3513, %v3497
        %v3546 = vpack.c.b16 %v3514, %v3498
        %v3547 = vpack.c.b16 %v3515, %v3499
        %v3548 = vpack.c.b16 %v3516, %v3500
        %v3549 = vpack.c.b16 %v3517, %v3501
        %v3550 = vpack.c.b16 %v3518, %v3502
        %v3551 = vpack.c.b16 %v3519, %v3503
        %v3585 = vsel %vm765, %v3353, 0
        %3587 = vmatpush.bf16.msra.mxu0 0
        %3588 = vmatpush.bf16.msra.mxu0 0
        %3589 = vmatpush.bf16.msra.mxu0 0
        %3590 = vmatpush.bf16.msra.mxu0 0
        %3591 = vmatpush.bf16.msra.mxu0 0
        %3592 = vmatpush.bf16.msra.mxu0 0
        %3593 = vmatpush.bf16.msra.mxu0 %v3536
        %3594 = vmatpush.bf16.msra.mxu0 %v3520
        %3595 = vmatmul.bf16.gmra.mxu0 %v3585
        %v3596 = vpop.f32.mrf.mxu0
        %v3597 = vadd.f32 %v3392, %v3596
        %v3598 = vpop.f32.mrf.mxu0
        %v3599 = vadd.f32 %v3392, %v3598
        %3600 = vdwg.mxu0
        %3601 = vmatpush.bf16.msra.mxu0 0
        %3602 = vmatpush.bf16.msra.mxu0 0
        %3603 = vmatpush.bf16.msra.mxu0 0
        %3604 = vmatpush.bf16.msra.mxu0 0
        %3605 = vmatpush.bf16.msra.mxu0 0
        %3606 = vmatpush.bf16.msra.mxu0 0
        %3607 = vmatpush.bf16.msra.mxu0 %v3537
        %3608 = vmatpush.bf16.msra.mxu0 %v3521
        %3609 = vmatmul.bf16.gmra.mxu0 %v3585
        %v3610 = vpop.f32.mrf.mxu0
        %v3611 = vadd.f32 %v3393, %v3610
        %v3612 = vpop.f32.mrf.mxu0
        %v3613 = vadd.f32 %v3393, %v3612
        %3614 = vdwg.mxu0
        %3615 = vmatpush.bf16.msra.mxu0 0
        %3616 = vmatpush.bf16.msra.mxu0 0
        %3617 = vmatpush.bf16.msra.mxu0 0
        %3618 = vmatpush.bf16.msra.mxu0 0
        %3619 = vmatpush.bf16.msra.mxu0 0
        %3620 = vmatpush.bf16.msra.mxu0 0
        %3621 = vmatpush.bf16.msra.mxu0 %v3538
        %3622 = vmatpush.bf16.msra.mxu0 %v3522
        %3623 = vmatmul.bf16.gmra.mxu0 %v3585
        %v3624 = vpop.f32.mrf.mxu0
        %v3625 = vadd.f32 %v3394, %v3624
        %v3626 = vpop.f32.mrf.mxu0
        %v3627 = vadd.f32 %v3394, %v3626
        %3628 = vdwg.mxu0
        %3629 = vmatpush.bf16.msra.mxu0 0
        %3630 = vmatpush.bf16.msra.mxu0 0
        %3631 = vmatpush.bf16.msra.mxu0 0
        %3632 = vmatpush.bf16.msra.mxu0 0
        %3633 = vmatpush.bf16.msra.mxu0 0
        %3634 = vmatpush.bf16.msra.mxu0 0
        %3635 = vmatpush.bf16.msra.mxu0 %v3539
        %3636 = vmatpush.bf16.msra.mxu0 %v3523
        %3637 = vmatmul.bf16.gmra.mxu0 %v3585
        %v3638 = vpop.f32.mrf.mxu0
        %v3639 = vadd.f32 %v3395, %v3638
        %v3640 = vpop.f32.mrf.mxu0
        %v3641 = vadd.f32 %v3395, %v3640
        %3642 = vdwg.mxu0
        %3643 = vmatpush.bf16.msra.mxu0 0
        %3644 = vmatpush.bf16.msra.mxu0 0
        %3645 = vmatpush.bf16.msra.mxu0 0
        %3646 = vmatpush.bf16.msra.mxu0 0
        %3647 = vmatpush.bf16.msra.mxu0 0
        %3648 = vmatpush.bf16.msra.mxu0 0
        %3649 = vmatpush.bf16.msra.mxu0 %v3540
        %3650 = vmatpush.bf16.msra.mxu0 %v3524
        %3651 = vmatmul.bf16.gmra.mxu0 %v3585
        %v3652 = vpop.f32.mrf.mxu0
        %v3653 = vadd.f32 %v3396, %v3652
        %v3654 = vpop.f32.mrf.mxu0
        %v3655 = vadd.f32 %v3396, %v3654
        %3656 = vdwg.mxu0
        %3657 = vmatpush.bf16.msra.mxu0 0
        %3658 = vmatpush.bf16.msra.mxu0 0
        %3659 = vmatpush.bf16.msra.mxu0 0
        %3660 = vmatpush.bf16.msra.mxu0 0
        %3661 = vmatpush.bf16.msra.mxu0 0
        %3662 = vmatpush.bf16.msra.mxu0 0
        %3663 = vmatpush.bf16.msra.mxu0 %v3541
        %3664 = vmatpush.bf16.msra.mxu0 %v3525
        %3665 = vmatmul.bf16.gmra.mxu0 %v3585
        %v3666 = vpop.f32.mrf.mxu0
        %v3667 = vadd.f32 %v3397, %v3666
        %v3668 = vpop.f32.mrf.mxu0
        %v3669 = vadd.f32 %v3397, %v3668
        %3670 = vdwg.mxu0
        %3671 = vmatpush.bf16.msra.mxu0 0
        %3672 = vmatpush.bf16.msra.mxu0 0
        %3673 = vmatpush.bf16.msra.mxu0 0
        %3674 = vmatpush.bf16.msra.mxu0 0
        %3675 = vmatpush.bf16.msra.mxu0 0
        %3676 = vmatpush.bf16.msra.mxu0 0
        %3677 = vmatpush.bf16.msra.mxu0 %v3542
        %3678 = vmatpush.bf16.msra.mxu0 %v3526
        %3679 = vmatmul.bf16.gmra.mxu0 %v3585
        %v3680 = vpop.f32.mrf.mxu0
        %v3681 = vadd.f32 %v3398, %v3680
        %v3682 = vpop.f32.mrf.mxu0
        %v3683 = vadd.f32 %v3398, %v3682
        %3684 = vdwg.mxu0
        %3685 = vmatpush.bf16.msra.mxu0 0
        %3686 = vmatpush.bf16.msra.mxu0 0
        %3687 = vmatpush.bf16.msra.mxu0 0
        %3688 = vmatpush.bf16.msra.mxu0 0
        %3689 = vmatpush.bf16.msra.mxu0 0
        %3690 = vmatpush.bf16.msra.mxu0 0
        %3691 = vmatpush.bf16.msra.mxu0 %v3543
        %3692 = vmatpush.bf16.msra.mxu0 %v3527
        %3693 = vmatmul.bf16.gmra.mxu0 %v3585
        %v3694 = vpop.f32.mrf.mxu0
        %v3695 = vadd.f32 %v3399, %v3694
        %v3696 = vpop.f32.mrf.mxu0
        %v3697 = vadd.f32 %v3399, %v3696
        %3698 = vdwg.mxu0
        %3699 = vmatpush.bf16.msra.mxu0 0
        %3700 = vmatpush.bf16.msra.mxu0 0
        %3701 = vmatpush.bf16.msra.mxu0 0
        %3702 = vmatpush.bf16.msra.mxu0 0
        %3703 = vmatpush.bf16.msra.mxu0 0
        %3704 = vmatpush.bf16.msra.mxu0 0
        %3705 = vmatpush.bf16.msra.mxu0 %v3544
        %3706 = vmatpush.bf16.msra.mxu0 %v3528
        %3707 = vmatmul.bf16.gmra.mxu0 %v3585
        %v3708 = vpop.f32.mrf.mxu0
        %v3709 = vadd.f32 %v3400, %v3708
        %v3710 = vpop.f32.mrf.mxu0
        %v3711 = vadd.f32 %v3400, %v3710
        %3712 = vdwg.mxu0
        %3713 = vmatpush.bf16.msra.mxu0 0
        %3714 = vmatpush.bf16.msra.mxu0 0
        %3715 = vmatpush.bf16.msra.mxu0 0
        %3716 = vmatpush.bf16.msra.mxu0 0
        %3717 = vmatpush.bf16.msra.mxu0 0
        %3718 = vmatpush.bf16.msra.mxu0 0
        %3719 = vmatpush.bf16.msra.mxu0 %v3545
        %3720 = vmatpush.bf16.msra.mxu0 %v3529
        %3721 = vmatmul.bf16.gmra.mxu0 %v3585
        %v3722 = vpop.f32.mrf.mxu0
        %v3723 = vadd.f32 %v3401, %v3722
        %v3724 = vpop.f32.mrf.mxu0
        %v3725 = vadd.f32 %v3401, %v3724
        %3726 = vdwg.mxu0
        %3727 = vmatpush.bf16.msra.mxu0 0
        %3728 = vmatpush.bf16.msra.mxu0 0
        %3729 = vmatpush.bf16.msra.mxu0 0
        %3730 = vmatpush.bf16.msra.mxu0 0
        %3731 = vmatpush.bf16.msra.mxu0 0
        %3732 = vmatpush.bf16.msra.mxu0 0
        %3733 = vmatpush.bf16.msra.mxu0 %v3546
        %3734 = vmatpush.bf16.msra.mxu0 %v3530
        %3735 = vmatmul.bf16.gmra.mxu0 %v3585
        %v3736 = vpop.f32.mrf.mxu0
        %v3737 = vadd.f32 %v3402, %v3736
        %v3738 = vpop.f32.mrf.mxu0
        %v3739 = vadd.f32 %v3402, %v3738
        %3740 = vdwg.mxu0
        %3741 = vmatpush.bf16.msra.mxu0 0
        %3742 = vmatpush.bf16.msra.mxu0 0
        %3743 = vmatpush.bf16.msra.mxu0 0
        %3744 = vmatpush.bf16.msra.mxu0 0
        %3745 = vmatpush.bf16.msra.mxu0 0
        %3746 = vmatpush.bf16.msra.mxu0 0
        %3747 = vmatpush.bf16.msra.mxu0 %v3547
        %3748 = vmatpush.bf16.msra.mxu0 %v3531
        %3749 = vmatmul.bf16.gmra.mxu0 %v3585
        %v3750 = vpop.f32.mrf.mxu0
        %v3751 = vadd.f32 %v3403, %v3750
        %v3752 = vpop.f32.mrf.mxu0
        %v3753 = vadd.f32 %v3403, %v3752
        %3754 = vdwg.mxu0
        %3755 = vmatpush.bf16.msra.mxu0 0
        %3756 = vmatpush.bf16.msra.mxu0 0
        %3757 = vmatpush.bf16.msra.mxu0 0
        %3758 = vmatpush.bf16.msra.mxu0 0
        %3759 = vmatpush.bf16.msra.mxu0 0
        %3760 = vmatpush.bf16.msra.mxu0 0
        %3761 = vmatpush.bf16.msra.mxu0 %v3548
        %3762 = vmatpush.bf16.msra.mxu0 %v3532
        %3763 = vmatmul.bf16.gmra.mxu0 %v3585
        %v3764 = vpop.f32.mrf.mxu0
        %v3765 = vadd.f32 %v3404, %v3764
        %v3766 = vpop.f32.mrf.mxu0
        %v3767 = vadd.f32 %v3404, %v3766
        %3768 = vdwg.mxu0
        %3769 = vmatpush.bf16.msra.mxu0 0
        %3770 = vmatpush.bf16.msra.mxu0 0
        %3771 = vmatpush.bf16.msra.mxu0 0
        %3772 = vmatpush.bf16.msra.mxu0 0
        %3773 = vmatpush.bf16.msra.mxu0 0
        %3774 = vmatpush.bf16.msra.mxu0 0
        %3775 = vmatpush.bf16.msra.mxu0 %v3549
        %3776 = vmatpush.bf16.msra.mxu0 %v3533
        %3777 = vmatmul.bf16.gmra.mxu0 %v3585
        %v3778 = vpop.f32.mrf.mxu0
        %v3779 = vadd.f32 %v3405, %v3778
        %v3780 = vpop.f32.mrf.mxu0
        %v3781 = vadd.f32 %v3405, %v3780
        %3782 = vdwg.mxu0
        %3783 = vmatpush.bf16.msra.mxu0 0
        %3784 = vmatpush.bf16.msra.mxu0 0
        %3785 = vmatpush.bf16.msra.mxu0 0
        %3786 = vmatpush.bf16.msra.mxu0 0
        %3787 = vmatpush.bf16.msra.mxu0 0
        %3788 = vmatpush.bf16.msra.mxu0 0
        %3789 = vmatpush.bf16.msra.mxu0 %v3550
        %3790 = vmatpush.bf16.msra.mxu0 %v3534
        %3791 = vmatmul.bf16.gmra.mxu0 %v3585
        %v3792 = vpop.f32.mrf.mxu0
        %v3793 = vadd.f32 %v3406, %v3792
        %v3794 = vpop.f32.mrf.mxu0
        %v3795 = vadd.f32 %v3406, %v3794
        %3796 = vdwg.mxu0
        %3797 = vmatpush.bf16.msra.mxu0 0
        %3798 = vmatpush.bf16.msra.mxu0 0
        %3799 = vmatpush.bf16.msra.mxu0 0
        %3800 = vmatpush.bf16.msra.mxu0 0
        %3801 = vmatpush.bf16.msra.mxu0 0
        %3802 = vmatpush.bf16.msra.mxu0 0
        %3803 = vmatpush.bf16.msra.mxu0 %v3551
        %3804 = vmatpush.bf16.msra.mxu0 %v3535
        %3805 = vmatmul.bf16.gmra.mxu0 %v3585
        %v3806 = vpop.f32.mrf.mxu0
        %v3807 = vadd.f32 %v3407, %v3806
        %v3808 = vpop.f32.mrf.mxu0
        %v3809 = vadd.f32 %v3407, %v3808
        %3810 = vdwg.mxu0
        %v3811 = vmax.f32 %v3597, 0.0
        %v3812 = vmax.f32 %v3611, 0.0
        %v3813 = vmax.f32 %v3625, 0.0
        %v3814 = vmax.f32 %v3639, 0.0
        %v3815 = vmax.f32 %v3653, 0.0
        %v3816 = vmax.f32 %v3667, 0.0
        %v3817 = vmax.f32 %v3681, 0.0
        %v3818 = vmax.f32 %v3695, 0.0
        %v3819 = vmax.f32 %v3709, 0.0
        %v3820 = vmax.f32 %v3723, 0.0
        %v3821 = vmax.f32 %v3737, 0.0
        %v3822 = vmax.f32 %v3751, 0.0
        %v3823 = vmax.f32 %v3765, 0.0
        %v3824 = vmax.f32 %v3779, 0.0
        %v3825 = vmax.f32 %v3793, 0.0
        %v3826 = vmax.f32 %v3807, 0.0
        %v3827 = vmax.f32 %v3599, 0.0
        %v3828 = vmax.f32 %v3613, 0.0
        %v3829 = vmax.f32 %v3627, 0.0
        %v3830 = vmax.f32 %v3641, 0.0
        %v3831 = vmax.f32 %v3655, 0.0
        %v3832 = vmax.f32 %v3669, 0.0
        %v3833 = vmax.f32 %v3683, 0.0
        %v3834 = vmax.f32 %v3697, 0.0
        %v3835 = vmax.f32 %v3711, 0.0
        %v3836 = vmax.f32 %v3725, 0.0
        %v3837 = vmax.f32 %v3739, 0.0
        %v3838 = vmax.f32 %v3753, 0.0
        %v3839 = vmax.f32 %v3767, 0.0
        %v3840 = vmax.f32 %v3781, 0.0
        %v3841 = vmax.f32 %v3795, 0.0
        %v3842 = vmax.f32 %v3809, 0.0
        %v3843 = vpack.c.bf16 %v3827, %v3811
        %v3844 = vpack.c.bf16 %v3828, %v3812
        %v3845 = vpack.c.bf16 %v3829, %v3813
        %v3846 = vpack.c.bf16 %v3830, %v3814
        %v3847 = vpack.c.bf16 %v3831, %v3815
        %v3848 = vpack.c.bf16 %v3832, %v3816
        %v3849 = vpack.c.bf16 %v3833, %v3817
        %v3850 = vpack.c.bf16 %v3834, %v3818
        %v3851 = vpack.c.bf16 %v3835, %v3819
        %v3852 = vpack.c.bf16 %v3836, %v3820
        %v3853 = vpack.c.bf16 %v3837, %v3821
        %v3854 = vpack.c.bf16 %v3838, %v3822
        %v3855 = vpack.c.bf16 %v3839, %v3823
        %v3856 = vpack.c.bf16 %v3840, %v3824
        %v3857 = vpack.c.bf16 %v3841, %v3825
        %v3858 = vpack.c.bf16 %v3842, %v3826
        %s3859 = scalar_lea.vmem %s11, 1024
        %v3860 = vld [vmem:[%s3859] sm:$0xf]
        %v3861 = vld [vmem:[%s3859 + $0x4] sm:$0xf]
        %v3862 = vld [vmem:[%s3859 + $0x8] sm:$0xf]
        %v3863 = vld [vmem:[%s3859 + $0xc] sm:$0xf]
        %v3864 = vld [vmem:[%s3859 + $0x10] sm:$0xf]
        %v3865 = vld [vmem:[%s3859 + $0x14] sm:$0xf]
        %v3866 = vld [vmem:[%s3859 + $0x18] sm:$0xf]
        %v3867 = vld [vmem:[%s3859 + $0x1c] sm:$0xf]
        %v3868 = vld [vmem:[%s3859 + $0x20] sm:$0xf]
        %v3869 = vld [vmem:[%s3859 + $0x24] sm:$0xf]
        %v3870 = vld [vmem:[%s3859 + $0x28] sm:$0xf]
        %v3871 = vld [vmem:[%s3859 + $0x2c] sm:$0xf]
        %v3872 = vld [vmem:[%s3859 + $0x30] sm:$0xf]
        %v3873 = vld [vmem:[%s3859 + $0x34] sm:$0xf]
        %v3874 = vld [vmem:[%s3859 + $0x38] sm:$0xf]
        %v3875 = vld [vmem:[%s3859 + $0x3c] sm:$0xf]
        %v3876 = vld [vmem:[%s3859 + $0x40] sm:$0xf]
        %v3877 = vld [vmem:[%s3859 + $0x44] sm:$0xf]
        %v3878 = vld [vmem:[%s3859 + $0x48] sm:$0xf]
        %v3879 = vld [vmem:[%s3859 + $0x4c] sm:$0xf]
        %v3880 = vld [vmem:[%s3859 + $0x50] sm:$0xf]
        %v3881 = vld [vmem:[%s3859 + $0x54] sm:$0xf]
        %v3882 = vld [vmem:[%s3859 + $0x58] sm:$0xf]
        %v3883 = vld [vmem:[%s3859 + $0x5c] sm:$0xf]
        %v3884 = vld [vmem:[%s3859 + $0x60] sm:$0xf]
        %v3885 = vld [vmem:[%s3859 + $0x64] sm:$0xf]
        %v3886 = vld [vmem:[%s3859 + $0x68] sm:$0xf]
        %v3887 = vld [vmem:[%s3859 + $0x6c] sm:$0xf]
        %v3888 = vld [vmem:[%s3859 + $0x70] sm:$0xf]
        %v3889 = vld [vmem:[%s3859 + $0x74] sm:$0xf]
        %v3890 = vld [vmem:[%s3859 + $0x78] sm:$0xf]
        %v3891 = vld [vmem:[%s3859 + $0x7c] sm:$0xf]
        %v3892 = vld [vmem:[%s3859 + $0x80] sm:$0xf]
        %v3893 = vld [vmem:[%s3859 + $0x84] sm:$0xf]
        %v3894 = vld [vmem:[%s3859 + $0x88] sm:$0xf]
        %v3895 = vld [vmem:[%s3859 + $0x8c] sm:$0xf]
        %v3896 = vld [vmem:[%s3859 + $0x90] sm:$0xf]
        %v3897 = vld [vmem:[%s3859 + $0x94] sm:$0xf]
        %v3898 = vld [vmem:[%s3859 + $0x98] sm:$0xf]
        %v3899 = vld [vmem:[%s3859 + $0x9c] sm:$0xf]
        %v3900 = vld [vmem:[%s3859 + $0xa0] sm:$0xf]
        %v3901 = vld [vmem:[%s3859 + $0xa4] sm:$0xf]
        %v3902 = vld [vmem:[%s3859 + $0xa8] sm:$0xf]
        %v3903 = vld [vmem:[%s3859 + $0xac] sm:$0xf]
        %v3904 = vld [vmem:[%s3859 + $0xb0] sm:$0xf]
        %v3905 = vld [vmem:[%s3859 + $0xb4] sm:$0xf]
        %v3906 = vld [vmem:[%s3859 + $0xb8] sm:$0xf]
        %v3907 = vld [vmem:[%s3859 + $0xbc] sm:$0xf]
        %v3908 = vld [vmem:[%s3859 + $0xc0] sm:$0xf]
        %v3909 = vld [vmem:[%s3859 + $0xc4] sm:$0xf]
        %v3910 = vld [vmem:[%s3859 + $0xc8] sm:$0xf]
        %v3911 = vld [vmem:[%s3859 + $0xcc] sm:$0xf]
        %v3912 = vld [vmem:[%s3859 + $0xd0] sm:$0xf]
        %v3913 = vld [vmem:[%s3859 + $0xd4] sm:$0xf]
        %v3914 = vld [vmem:[%s3859 + $0xd8] sm:$0xf]
        %v3915 = vld [vmem:[%s3859 + $0xdc] sm:$0xf]
        %v3916 = vld [vmem:[%s3859 + $0xe0] sm:$0xf]
        %v3917 = vld [vmem:[%s3859 + $0xe4] sm:$0xf]
        %v3918 = vld [vmem:[%s3859 + $0xe8] sm:$0xf]
        %v3919 = vld [vmem:[%s3859 + $0xec] sm:$0xf]
        %v3920 = vld [vmem:[%s3859 + $0xf0] sm:$0xf]
        %v3921 = vld [vmem:[%s3859 + $0xf4] sm:$0xf]
        %v3922 = vld [vmem:[%s3859 + $0xf8] sm:$0xf]
        %v3923 = vld [vmem:[%s3859 + $0xfc] sm:$0xf]
        %v3924 = vld [vmem:[%s3859 + $0x100] sm:$0xf]
        %v3925 = vld [vmem:[%s3859 + $0x104] sm:$0xf]
        %v3926 = vld [vmem:[%s3859 + $0x108] sm:$0xf]
        %v3927 = vld [vmem:[%s3859 + $0x10c] sm:$0xf]
        %v3928 = vld [vmem:[%s3859 + $0x110] sm:$0xf]
        %v3929 = vld [vmem:[%s3859 + $0x114] sm:$0xf]
        %v3930 = vld [vmem:[%s3859 + $0x118] sm:$0xf]
        %v3931 = vld [vmem:[%s3859 + $0x11c] sm:$0xf]
        %v3932 = vld [vmem:[%s3859 + $0x120] sm:$0xf]
        %v3933 = vld [vmem:[%s3859 + $0x124] sm:$0xf]
        %v3934 = vld [vmem:[%s3859 + $0x128] sm:$0xf]
        %v3935 = vld [vmem:[%s3859 + $0x12c] sm:$0xf]
        %v3936 = vld [vmem:[%s3859 + $0x130] sm:$0xf]
        %v3937 = vld [vmem:[%s3859 + $0x134] sm:$0xf]
        %v3938 = vld [vmem:[%s3859 + $0x138] sm:$0xf]
        %v3939 = vld [vmem:[%s3859 + $0x13c] sm:$0xf]
        %v3940 = vld [vmem:[%s3859 + $0x140] sm:$0xf]
        %v3941 = vld [vmem:[%s3859 + $0x144] sm:$0xf]
        %v3942 = vld [vmem:[%s3859 + $0x148] sm:$0xf]
        %v3943 = vld [vmem:[%s3859 + $0x14c] sm:$0xf]
        %v3944 = vld [vmem:[%s3859 + $0x150] sm:$0xf]
        %v3945 = vld [vmem:[%s3859 + $0x154] sm:$0xf]
        %v3946 = vld [vmem:[%s3859 + $0x158] sm:$0xf]
        %v3947 = vld [vmem:[%s3859 + $0x15c] sm:$0xf]
        %v3948 = vld [vmem:[%s3859 + $0x160] sm:$0xf]
        %v3949 = vld [vmem:[%s3859 + $0x164] sm:$0xf]
        %v3950 = vld [vmem:[%s3859 + $0x168] sm:$0xf]
        %v3951 = vld [vmem:[%s3859 + $0x16c] sm:$0xf]
        %v3952 = vld [vmem:[%s3859 + $0x170] sm:$0xf]
        %v3953 = vld [vmem:[%s3859 + $0x174] sm:$0xf]
        %v3954 = vld [vmem:[%s3859 + $0x178] sm:$0xf]
        %v3955 = vld [vmem:[%s3859 + $0x17c] sm:$0xf]
        %v3956 = vld [vmem:[%s3859 + $0x180] sm:$0xf]
        %v3957 = vld [vmem:[%s3859 + $0x184] sm:$0xf]
        %v3958 = vld [vmem:[%s3859 + $0x188] sm:$0xf]
        %v3959 = vld [vmem:[%s3859 + $0x18c] sm:$0xf]
        %v3960 = vld [vmem:[%s3859 + $0x190] sm:$0xf]
        %v3961 = vld [vmem:[%s3859 + $0x194] sm:$0xf]
        %v3962 = vld [vmem:[%s3859 + $0x198] sm:$0xf]
        %v3963 = vld [vmem:[%s3859 + $0x19c] sm:$0xf]
        %v3964 = vld [vmem:[%s3859 + $0x1a0] sm:$0xf]
        %v3965 = vld [vmem:[%s3859 + $0x1a4] sm:$0xf]
        %v3966 = vld [vmem:[%s3859 + $0x1a8] sm:$0xf]
        %v3967 = vld [vmem:[%s3859 + $0x1ac] sm:$0xf]
        %v3968 = vld [vmem:[%s3859 + $0x1b0] sm:$0xf]
        %v3969 = vld [vmem:[%s3859 + $0x1b4] sm:$0xf]
        %v3970 = vld [vmem:[%s3859 + $0x1b8] sm:$0xf]
        %v3971 = vld [vmem:[%s3859 + $0x1bc] sm:$0xf]
        %v3972 = vld [vmem:[%s3859 + $0x1c0] sm:$0xf]
        %v3973 = vld [vmem:[%s3859 + $0x1c4] sm:$0xf]
        %v3974 = vld [vmem:[%s3859 + $0x1c8] sm:$0xf]
        %v3975 = vld [vmem:[%s3859 + $0x1cc] sm:$0xf]
        %v3976 = vld [vmem:[%s3859 + $0x1d0] sm:$0xf]
        %v3977 = vld [vmem:[%s3859 + $0x1d4] sm:$0xf]
        %v3978 = vld [vmem:[%s3859 + $0x1d8] sm:$0xf]
        %v3979 = vld [vmem:[%s3859 + $0x1dc] sm:$0xf]
        %v3980 = vld [vmem:[%s3859 + $0x1e0] sm:$0xf]
        %v3981 = vld [vmem:[%s3859 + $0x1e4] sm:$0xf]
        %v3982 = vld [vmem:[%s3859 + $0x1e8] sm:$0xf]
        %v3983 = vld [vmem:[%s3859 + $0x1ec] sm:$0xf]
        %v3984 = vld [vmem:[%s3859 + $0x1f0] sm:$0xf]
        %v3985 = vld [vmem:[%s3859 + $0x1f4] sm:$0xf]
        %v3986 = vld [vmem:[%s3859 + $0x1f8] sm:$0xf]
        %v3987 = vld [vmem:[%s3859 + $0x1fc] sm:$0xf]
        %v3988 = vld [vmem:[%s3859 + $0x200] sm:$0xf]
        %v3989 = vld [vmem:[%s3859 + $0x204] sm:$0xf]
        %v3990 = vld [vmem:[%s3859 + $0x208] sm:$0xf]
        %v3991 = vld [vmem:[%s3859 + $0x20c] sm:$0xf]
        %v3992 = vld [vmem:[%s3859 + $0x210] sm:$0xf]
        %v3993 = vld [vmem:[%s3859 + $0x214] sm:$0xf]
        %v3994 = vld [vmem:[%s3859 + $0x218] sm:$0xf]
        %v3995 = vld [vmem:[%s3859 + $0x21c] sm:$0xf]
        %v3996 = vld [vmem:[%s3859 + $0x220] sm:$0xf]
        %v3997 = vld [vmem:[%s3859 + $0x224] sm:$0xf]
        %v3998 = vld [vmem:[%s3859 + $0x228] sm:$0xf]
        %v3999 = vld [vmem:[%s3859 + $0x22c] sm:$0xf]
        %v4000 = vld [vmem:[%s3859 + $0x230] sm:$0xf]
        %v4001 = vld [vmem:[%s3859 + $0x234] sm:$0xf]
        %v4002 = vld [vmem:[%s3859 + $0x238] sm:$0xf]
        %v4003 = vld [vmem:[%s3859 + $0x23c] sm:$0xf]
        %v4004 = vld [vmem:[%s3859 + $0x240] sm:$0xf]
        %v4005 = vld [vmem:[%s3859 + $0x244] sm:$0xf]
        %v4006 = vld [vmem:[%s3859 + $0x248] sm:$0xf]
        %v4007 = vld [vmem:[%s3859 + $0x24c] sm:$0xf]
        %v4008 = vld [vmem:[%s3859 + $0x250] sm:$0xf]
        %v4009 = vld [vmem:[%s3859 + $0x254] sm:$0xf]
        %v4010 = vld [vmem:[%s3859 + $0x258] sm:$0xf]
        %v4011 = vld [vmem:[%s3859 + $0x25c] sm:$0xf]
        %v4012 = vld [vmem:[%s3859 + $0x260] sm:$0xf]
        %v4013 = vld [vmem:[%s3859 + $0x264] sm:$0xf]
        %v4014 = vld [vmem:[%s3859 + $0x268] sm:$0xf]
        %v4015 = vld [vmem:[%s3859 + $0x26c] sm:$0xf]
        %v4016 = vld [vmem:[%s3859 + $0x270] sm:$0xf]
        %v4017 = vld [vmem:[%s3859 + $0x274] sm:$0xf]
        %v4018 = vld [vmem:[%s3859 + $0x278] sm:$0xf]
        %v4019 = vld [vmem:[%s3859 + $0x27c] sm:$0xf]
        %v4020 = vld [vmem:[%s3859 + $0x280] sm:$0xf]
        %v4021 = vld [vmem:[%s3859 + $0x284] sm:$0xf]
        %v4022 = vld [vmem:[%s3859 + $0x288] sm:$0xf]
        %v4023 = vld [vmem:[%s3859 + $0x28c] sm:$0xf]
        %v4024 = vld [vmem:[%s3859 + $0x290] sm:$0xf]
        %v4025 = vld [vmem:[%s3859 + $0x294] sm:$0xf]
        %v4026 = vld [vmem:[%s3859 + $0x298] sm:$0xf]
        %v4027 = vld [vmem:[%s3859 + $0x29c] sm:$0xf]
        %v4028 = vld [vmem:[%s3859 + $0x2a0] sm:$0xf]
        %v4029 = vld [vmem:[%s3859 + $0x2a4] sm:$0xf]
        %v4030 = vld [vmem:[%s3859 + $0x2a8] sm:$0xf]
        %v4031 = vld [vmem:[%s3859 + $0x2ac] sm:$0xf]
        %v4032 = vld [vmem:[%s3859 + $0x2b0] sm:$0xf]
        %v4033 = vld [vmem:[%s3859 + $0x2b4] sm:$0xf]
        %v4034 = vld [vmem:[%s3859 + $0x2b8] sm:$0xf]
        %v4035 = vld [vmem:[%s3859 + $0x2bc] sm:$0xf]
        %v4036 = vld [vmem:[%s3859 + $0x2c0] sm:$0xf]
        %v4037 = vld [vmem:[%s3859 + $0x2c4] sm:$0xf]
        %v4038 = vld [vmem:[%s3859 + $0x2c8] sm:$0xf]
        %v4039 = vld [vmem:[%s3859 + $0x2cc] sm:$0xf]
        %v4040 = vld [vmem:[%s3859 + $0x2d0] sm:$0xf]
        %v4041 = vld [vmem:[%s3859 + $0x2d4] sm:$0xf]
        %v4042 = vld [vmem:[%s3859 + $0x2d8] sm:$0xf]
        %v4043 = vld [vmem:[%s3859 + $0x2dc] sm:$0xf]
        %v4044 = vld [vmem:[%s3859 + $0x2e0] sm:$0xf]
        %v4045 = vld [vmem:[%s3859 + $0x2e4] sm:$0xf]
        %v4046 = vld [vmem:[%s3859 + $0x2e8] sm:$0xf]
        %v4047 = vld [vmem:[%s3859 + $0x2ec] sm:$0xf]
        %v4048 = vld [vmem:[%s3859 + $0x2f0] sm:$0xf]
        %v4049 = vld [vmem:[%s3859 + $0x2f4] sm:$0xf]
        %v4050 = vld [vmem:[%s3859 + $0x2f8] sm:$0xf]
        %v4051 = vld [vmem:[%s3859 + $0x2fc] sm:$0xf]
        %v4052 = vld [vmem:[%s3859 + $0x300] sm:$0xf]
        %v4053 = vld [vmem:[%s3859 + $0x304] sm:$0xf]
        %v4054 = vld [vmem:[%s3859 + $0x308] sm:$0xf]
        %v4055 = vld [vmem:[%s3859 + $0x30c] sm:$0xf]
        %v4056 = vld [vmem:[%s3859 + $0x310] sm:$0xf]
        %v4057 = vld [vmem:[%s3859 + $0x314] sm:$0xf]
        %v4058 = vld [vmem:[%s3859 + $0x318] sm:$0xf]
        %v4059 = vld [vmem:[%s3859 + $0x31c] sm:$0xf]
        %v4060 = vld [vmem:[%s3859 + $0x320] sm:$0xf]
        %v4061 = vld [vmem:[%s3859 + $0x324] sm:$0xf]
        %v4062 = vld [vmem:[%s3859 + $0x328] sm:$0xf]
        %v4063 = vld [vmem:[%s3859 + $0x32c] sm:$0xf]
        %v4064 = vld [vmem:[%s3859 + $0x330] sm:$0xf]
        %v4065 = vld [vmem:[%s3859 + $0x334] sm:$0xf]
        %v4066 = vld [vmem:[%s3859 + $0x338] sm:$0xf]
        %v4067 = vld [vmem:[%s3859 + $0x33c] sm:$0xf]
        %v4068 = vld [vmem:[%s3859 + $0x340] sm:$0xf]
        %v4069 = vld [vmem:[%s3859 + $0x344] sm:$0xf]
        %v4070 = vld [vmem:[%s3859 + $0x348] sm:$0xf]
        %v4071 = vld [vmem:[%s3859 + $0x34c] sm:$0xf]
        %v4072 = vld [vmem:[%s3859 + $0x350] sm:$0xf]
        %v4073 = vld [vmem:[%s3859 + $0x354] sm:$0xf]
        %v4074 = vld [vmem:[%s3859 + $0x358] sm:$0xf]
        %v4075 = vld [vmem:[%s3859 + $0x35c] sm:$0xf]
        %v4076 = vld [vmem:[%s3859 + $0x360] sm:$0xf]
        %v4077 = vld [vmem:[%s3859 + $0x364] sm:$0xf]
        %v4078 = vld [vmem:[%s3859 + $0x368] sm:$0xf]
        %v4079 = vld [vmem:[%s3859 + $0x36c] sm:$0xf]
        %v4080 = vld [vmem:[%s3859 + $0x370] sm:$0xf]
        %v4081 = vld [vmem:[%s3859 + $0x374] sm:$0xf]
        %v4082 = vld [vmem:[%s3859 + $0x378] sm:$0xf]
        %v4083 = vld [vmem:[%s3859 + $0x37c] sm:$0xf]
        %v4084 = vld [vmem:[%s3859 + $0x380] sm:$0xf]
        %v4085 = vld [vmem:[%s3859 + $0x384] sm:$0xf]
        %v4086 = vld [vmem:[%s3859 + $0x388] sm:$0xf]
        %v4087 = vld [vmem:[%s3859 + $0x38c] sm:$0xf]
        %v4088 = vld [vmem:[%s3859 + $0x390] sm:$0xf]
        %v4089 = vld [vmem:[%s3859 + $0x394] sm:$0xf]
        %v4090 = vld [vmem:[%s3859 + $0x398] sm:$0xf]
        %v4091 = vld [vmem:[%s3859 + $0x39c] sm:$0xf]
        %v4092 = vld [vmem:[%s3859 + $0x3a0] sm:$0xf]
        %v4093 = vld [vmem:[%s3859 + $0x3a4] sm:$0xf]
        %v4094 = vld [vmem:[%s3859 + $0x3a8] sm:$0xf]
        %v4095 = vld [vmem:[%s3859 + $0x3ac] sm:$0xf]
        %v4096 = vld [vmem:[%s3859 + $0x3b0] sm:$0xf]
        %v4097 = vld [vmem:[%s3859 + $0x3b4] sm:$0xf]
        %v4098 = vld [vmem:[%s3859 + $0x3b8] sm:$0xf]
        %v4099 = vld [vmem:[%s3859 + $0x3bc] sm:$0xf]
        %v4100 = vld [vmem:[%s3859 + $0x3c0] sm:$0xf]
        %v4101 = vld [vmem:[%s3859 + $0x3c4] sm:$0xf]
        %v4102 = vld [vmem:[%s3859 + $0x3c8] sm:$0xf]
        %v4103 = vld [vmem:[%s3859 + $0x3cc] sm:$0xf]
        %v4104 = vld [vmem:[%s3859 + $0x3d0] sm:$0xf]
        %v4105 = vld [vmem:[%s3859 + $0x3d4] sm:$0xf]
        %v4106 = vld [vmem:[%s3859 + $0x3d8] sm:$0xf]
        %v4107 = vld [vmem:[%s3859 + $0x3dc] sm:$0xf]
        %v4108 = vld [vmem:[%s3859 + $0x3e0] sm:$0xf]
        %v4109 = vld [vmem:[%s3859 + $0x3e4] sm:$0xf]
        %v4110 = vld [vmem:[%s3859 + $0x3e8] sm:$0xf]
        %v4111 = vld [vmem:[%s3859 + $0x3ec] sm:$0xf]
        %v4112 = vld [vmem:[%s3859 + $0x3f0] sm:$0xf]
        %v4113 = vld [vmem:[%s3859 + $0x3f4] sm:$0xf]
        %v4114 = vld [vmem:[%s3859 + $0x3f8] sm:$0xf]
        %v4115 = vld [vmem:[%s3859 + $0x3fc] sm:$0xf]
        %s4116 = scalar_lea.vmem %s12, 1
        %v4117 = vld [vmem:[%s4116] sm:$0x1]
        %v4119 = vperm.slane %v4117, 0
        %v4377 = vunpack.c.l.b16 %v3860
        %v4378 = vunpack.c.l.b16 %v3861
        %v4379 = vunpack.c.l.b16 %v3862
        %v4380 = vunpack.c.l.b16 %v3863
        %v4381 = vunpack.c.l.b16 %v3864
        %v4382 = vunpack.c.l.b16 %v3865
        %v4383 = vunpack.c.l.b16 %v3866
        %v4384 = vunpack.c.l.b16 %v3867
        %v4385 = vunpack.c.l.b16 %v3868
        %v4386 = vunpack.c.l.b16 %v3869
        %v4387 = vunpack.c.l.b16 %v3870
        %v4388 = vunpack.c.l.b16 %v3871
        %v4389 = vunpack.c.l.b16 %v3872
        %v4390 = vunpack.c.l.b16 %v3873
        %v4391 = vunpack.c.l.b16 %v3874
        %v4392 = vunpack.c.l.b16 %v3875
        %v4393 = vunpack.c.l.b16 %v3876
        %v4394 = vunpack.c.l.b16 %v3877
        %v4395 = vunpack.c.l.b16 %v3878
        %v4396 = vunpack.c.l.b16 %v3879
        %v4397 = vunpack.c.l.b16 %v3880
        %v4398 = vunpack.c.l.b16 %v3881
        %v4399 = vunpack.c.l.b16 %v3882
        %v4400 = vunpack.c.l.b16 %v3883
        %v4401 = vunpack.c.l.b16 %v3884
        %v4402 = vunpack.c.l.b16 %v3885
        %v4403 = vunpack.c.l.b16 %v3886
        %v4404 = vunpack.c.l.b16 %v3887
        %v4405 = vunpack.c.l.b16 %v3888
        %v4406 = vunpack.c.l.b16 %v3889
        %v4407 = vunpack.c.l.b16 %v3890
        %v4408 = vunpack.c.l.b16 %v3891
        %v4409 = vunpack.c.l.b16 %v3892
        %v4410 = vunpack.c.l.b16 %v3893
        %v4411 = vunpack.c.l.b16 %v3894
        %v4412 = vunpack.c.l.b16 %v3895
        %v4413 = vunpack.c.l.b16 %v3896
        %v4414 = vunpack.c.l.b16 %v3897
        %v4415 = vunpack.c.l.b16 %v3898
        %v4416 = vunpack.c.l.b16 %v3899
        %v4417 = vunpack.c.l.b16 %v3900
        %v4418 = vunpack.c.l.b16 %v3901
        %v4419 = vunpack.c.l.b16 %v3902
        %v4420 = vunpack.c.l.b16 %v3903
        %v4421 = vunpack.c.l.b16 %v3904
        %v4422 = vunpack.c.l.b16 %v3905
        %v4423 = vunpack.c.l.b16 %v3906
        %v4424 = vunpack.c.l.b16 %v3907
        %v4425 = vunpack.c.l.b16 %v3908
        %v4426 = vunpack.c.l.b16 %v3909
        %v4427 = vunpack.c.l.b16 %v3910
        %v4428 = vunpack.c.l.b16 %v3911
        %v4429 = vunpack.c.l.b16 %v3912
        %v4430 = vunpack.c.l.b16 %v3913
        %v4431 = vunpack.c.l.b16 %v3914
        %v4432 = vunpack.c.l.b16 %v3915
        %v4433 = vunpack.c.l.b16 %v3916
        %v4434 = vunpack.c.l.b16 %v3917
        %v4435 = vunpack.c.l.b16 %v3918
        %v4436 = vunpack.c.l.b16 %v3919
        %v4437 = vunpack.c.l.b16 %v3920
        %v4438 = vunpack.c.l.b16 %v3921
        %v4439 = vunpack.c.l.b16 %v3922
        %v4440 = vunpack.c.l.b16 %v3923
        %v4441 = vunpack.c.l.b16 %v3924
        %v4442 = vunpack.c.l.b16 %v3925
        %v4443 = vunpack.c.l.b16 %v3926
        %v4444 = vunpack.c.l.b16 %v3927
        %v4445 = vunpack.c.l.b16 %v3928
        %v4446 = vunpack.c.l.b16 %v3929
        %v4447 = vunpack.c.l.b16 %v3930
        %v4448 = vunpack.c.l.b16 %v3931
        %v4449 = vunpack.c.l.b16 %v3932
        %v4450 = vunpack.c.l.b16 %v3933
        %v4451 = vunpack.c.l.b16 %v3934
        %v4452 = vunpack.c.l.b16 %v3935
        %v4453 = vunpack.c.l.b16 %v3936
        %v4454 = vunpack.c.l.b16 %v3937
        %v4455 = vunpack.c.l.b16 %v3938
        %v4456 = vunpack.c.l.b16 %v3939
        %v4457 = vunpack.c.l.b16 %v3940
        %v4458 = vunpack.c.l.b16 %v3941
        %v4459 = vunpack.c.l.b16 %v3942
        %v4460 = vunpack.c.l.b16 %v3943
        %v4461 = vunpack.c.l.b16 %v3944
        %v4462 = vunpack.c.l.b16 %v3945
        %v4463 = vunpack.c.l.b16 %v3946
        %v4464 = vunpack.c.l.b16 %v3947
        %v4465 = vunpack.c.l.b16 %v3948
        %v4466 = vunpack.c.l.b16 %v3949
        %v4467 = vunpack.c.l.b16 %v3950
        %v4468 = vunpack.c.l.b16 %v3951
        %v4469 = vunpack.c.l.b16 %v3952
        %v4470 = vunpack.c.l.b16 %v3953
        %v4471 = vunpack.c.l.b16 %v3954
        %v4472 = vunpack.c.l.b16 %v3955
        %v4473 = vunpack.c.l.b16 %v3956
        %v4474 = vunpack.c.l.b16 %v3957
        %v4475 = vunpack.c.l.b16 %v3958
        %v4476 = vunpack.c.l.b16 %v3959
        %v4477 = vunpack.c.l.b16 %v3960
        %v4478 = vunpack.c.l.b16 %v3961
        %v4479 = vunpack.c.l.b16 %v3962
        %v4480 = vunpack.c.l.b16 %v3963
        %v4481 = vunpack.c.l.b16 %v3964
        %v4482 = vunpack.c.l.b16 %v3965
        %v4483 = vunpack.c.l.b16 %v3966
        %v4484 = vunpack.c.l.b16 %v3967
        %v4485 = vunpack.c.l.b16 %v3968
        %v4486 = vunpack.c.l.b16 %v3969
        %v4487 = vunpack.c.l.b16 %v3970
        %v4488 = vunpack.c.l.b16 %v3971
        %v4489 = vunpack.c.l.b16 %v3972
        %v4490 = vunpack.c.l.b16 %v3973
        %v4491 = vunpack.c.l.b16 %v3974
        %v4492 = vunpack.c.l.b16 %v3975
        %v4493 = vunpack.c.l.b16 %v3976
        %v4494 = vunpack.c.l.b16 %v3977
        %v4495 = vunpack.c.l.b16 %v3978
        %v4496 = vunpack.c.l.b16 %v3979
        %v4497 = vunpack.c.l.b16 %v3980
        %v4498 = vunpack.c.l.b16 %v3981
        %v4499 = vunpack.c.l.b16 %v3982
        %v4500 = vunpack.c.l.b16 %v3983
        %v4501 = vunpack.c.l.b16 %v3984
        %v4502 = vunpack.c.l.b16 %v3985
        %v4503 = vunpack.c.l.b16 %v3986
        %v4504 = vunpack.c.l.b16 %v3987
        %v4505 = vunpack.c.l.b16 %v3988
        %v4506 = vunpack.c.l.b16 %v3989
        %v4507 = vunpack.c.l.b16 %v3990
        %v4508 = vunpack.c.l.b16 %v3991
        %v4509 = vunpack.c.l.b16 %v3992
        %v4510 = vunpack.c.l.b16 %v3993
        %v4511 = vunpack.c.l.b16 %v3994
        %v4512 = vunpack.c.l.b16 %v3995
        %v4513 = vunpack.c.l.b16 %v3996
        %v4514 = vunpack.c.l.b16 %v3997
        %v4515 = vunpack.c.l.b16 %v3998
        %v4516 = vunpack.c.l.b16 %v3999
        %v4517 = vunpack.c.l.b16 %v4000
        %v4518 = vunpack.c.l.b16 %v4001
        %v4519 = vunpack.c.l.b16 %v4002
        %v4520 = vunpack.c.l.b16 %v4003
        %v4521 = vunpack.c.l.b16 %v4004
        %v4522 = vunpack.c.l.b16 %v4005
        %v4523 = vunpack.c.l.b16 %v4006
        %v4524 = vunpack.c.l.b16 %v4007
        %v4525 = vunpack.c.l.b16 %v4008
        %v4526 = vunpack.c.l.b16 %v4009
        %v4527 = vunpack.c.l.b16 %v4010
        %v4528 = vunpack.c.l.b16 %v4011
        %v4529 = vunpack.c.l.b16 %v4012
        %v4530 = vunpack.c.l.b16 %v4013
        %v4531 = vunpack.c.l.b16 %v4014
        %v4532 = vunpack.c.l.b16 %v4015
        %v4533 = vunpack.c.l.b16 %v4016
        %v4534 = vunpack.c.l.b16 %v4017
        %v4535 = vunpack.c.l.b16 %v4018
        %v4536 = vunpack.c.l.b16 %v4019
        %v4537 = vunpack.c.l.b16 %v4020
        %v4538 = vunpack.c.l.b16 %v4021
        %v4539 = vunpack.c.l.b16 %v4022
        %v4540 = vunpack.c.l.b16 %v4023
        %v4541 = vunpack.c.l.b16 %v4024
        %v4542 = vunpack.c.l.b16 %v4025
        %v4543 = vunpack.c.l.b16 %v4026
        %v4544 = vunpack.c.l.b16 %v4027
        %v4545 = vunpack.c.l.b16 %v4028
        %v4546 = vunpack.c.l.b16 %v4029
        %v4547 = vunpack.c.l.b16 %v4030
        %v4548 = vunpack.c.l.b16 %v4031
        %v4549 = vunpack.c.l.b16 %v4032
        %v4550 = vunpack.c.l.b16 %v4033
        %v4551 = vunpack.c.l.b16 %v4034
        %v4552 = vunpack.c.l.b16 %v4035
        %v4553 = vunpack.c.l.b16 %v4036
        %v4554 = vunpack.c.l.b16 %v4037
        %v4555 = vunpack.c.l.b16 %v4038
        %v4556 = vunpack.c.l.b16 %v4039
        %v4557 = vunpack.c.l.b16 %v4040
        %v4558 = vunpack.c.l.b16 %v4041
        %v4559 = vunpack.c.l.b16 %v4042
        %v4560 = vunpack.c.l.b16 %v4043
        %v4561 = vunpack.c.l.b16 %v4044
        %v4562 = vunpack.c.l.b16 %v4045
        %v4563 = vunpack.c.l.b16 %v4046
        %v4564 = vunpack.c.l.b16 %v4047
        %v4565 = vunpack.c.l.b16 %v4048
        %v4566 = vunpack.c.l.b16 %v4049
        %v4567 = vunpack.c.l.b16 %v4050
        %v4568 = vunpack.c.l.b16 %v4051
        %v4569 = vunpack.c.l.b16 %v4052
        %v4570 = vunpack.c.l.b16 %v4053
        %v4571 = vunpack.c.l.b16 %v4054
        %v4572 = vunpack.c.l.b16 %v4055
        %v4573 = vunpack.c.l.b16 %v4056
        %v4574 = vunpack.c.l.b16 %v4057
        %v4575 = vunpack.c.l.b16 %v4058
        %v4576 = vunpack.c.l.b16 %v4059
        %v4577 = vunpack.c.l.b16 %v4060
        %v4578 = vunpack.c.l.b16 %v4061
        %v4579 = vunpack.c.l.b16 %v4062
        %v4580 = vunpack.c.l.b16 %v4063
        %v4581 = vunpack.c.l.b16 %v4064
        %v4582 = vunpack.c.l.b16 %v4065
        %v4583 = vunpack.c.l.b16 %v4066
        %v4584 = vunpack.c.l.b16 %v4067
        %v4585 = vunpack.c.l.b16 %v4068
        %v4586 = vunpack.c.l.b16 %v4069
        %v4587 = vunpack.c.l.b16 %v4070
        %v4588 = vunpack.c.l.b16 %v4071
        %v4589 = vunpack.c.l.b16 %v4072
        %v4590 = vunpack.c.l.b16 %v4073
        %v4591 = vunpack.c.l.b16 %v4074
        %v4592 = vunpack.c.l.b16 %v4075
        %v4593 = vunpack.c.l.b16 %v4076
        %v4594 = vunpack.c.l.b16 %v4077
        %v4595 = vunpack.c.l.b16 %v4078
        %v4596 = vunpack.c.l.b16 %v4079
        %v4597 = vunpack.c.l.b16 %v4080
        %v4598 = vunpack.c.l.b16 %v4081
        %v4599 = vunpack.c.l.b16 %v4082
        %v4600 = vunpack.c.l.b16 %v4083
        %v4601 = vunpack.c.l.b16 %v4084
        %v4602 = vunpack.c.l.b16 %v4085
        %v4603 = vunpack.c.l.b16 %v4086
        %v4604 = vunpack.c.l.b16 %v4087
        %v4605 = vunpack.c.l.b16 %v4088
        %v4606 = vunpack.c.l.b16 %v4089
        %v4607 = vunpack.c.l.b16 %v4090
        %v4608 = vunpack.c.l.b16 %v4091
        %v4609 = vunpack.c.l.b16 %v4092
        %v4610 = vunpack.c.l.b16 %v4093
        %v4611 = vunpack.c.l.b16 %v4094
        %v4612 = vunpack.c.l.b16 %v4095
        %v4613 = vunpack.c.l.b16 %v4096
        %v4614 = vunpack.c.l.b16 %v4097
        %v4615 = vunpack.c.l.b16 %v4098
        %v4616 = vunpack.c.l.b16 %v4099
        %v4617 = vunpack.c.l.b16 %v4100
        %v4618 = vunpack.c.l.b16 %v4101
        %v4619 = vunpack.c.l.b16 %v4102
        %v4620 = vunpack.c.l.b16 %v4103
        %v4621 = vunpack.c.l.b16 %v4104
        %v4622 = vunpack.c.l.b16 %v4105
        %v4623 = vunpack.c.l.b16 %v4106
        %v4624 = vunpack.c.l.b16 %v4107
        %v4625 = vunpack.c.l.b16 %v4108
        %v4626 = vunpack.c.l.b16 %v4109
        %v4627 = vunpack.c.l.b16 %v4110
        %v4628 = vunpack.c.l.b16 %v4111
        %v4629 = vunpack.c.l.b16 %v4112
        %v4630 = vunpack.c.l.b16 %v4113
        %v4631 = vunpack.c.l.b16 %v4114
        %v4632 = vunpack.c.l.b16 %v4115
        %v4633 = vpack.c.b16 %v4378, %v4377
        %v4634 = vpack.c.b16 %v4380, %v4379
        %v4635 = vpack.c.b16 %v4382, %v4381
        %v4636 = vpack.c.b16 %v4384, %v4383
        %v4637 = vpack.c.b16 %v4386, %v4385
        %v4638 = vpack.c.b16 %v4388, %v4387
        %v4639 = vpack.c.b16 %v4390, %v4389
        %v4640 = vpack.c.b16 %v4392, %v4391
        %v4641 = vpack.c.b16 %v4394, %v4393
        %v4642 = vpack.c.b16 %v4396, %v4395
        %v4643 = vpack.c.b16 %v4398, %v4397
        %v4644 = vpack.c.b16 %v4400, %v4399
        %v4645 = vpack.c.b16 %v4402, %v4401
        %v4646 = vpack.c.b16 %v4404, %v4403
        %v4647 = vpack.c.b16 %v4406, %v4405
        %v4648 = vpack.c.b16 %v4408, %v4407
        %v4649 = vpack.c.b16 %v4410, %v4409
        %v4650 = vpack.c.b16 %v4412, %v4411
        %v4651 = vpack.c.b16 %v4414, %v4413
        %v4652 = vpack.c.b16 %v4416, %v4415
        %v4653 = vpack.c.b16 %v4418, %v4417
        %v4654 = vpack.c.b16 %v4420, %v4419
        %v4655 = vpack.c.b16 %v4422, %v4421
        %v4656 = vpack.c.b16 %v4424, %v4423
        %v4657 = vpack.c.b16 %v4426, %v4425
        %v4658 = vpack.c.b16 %v4428, %v4427
        %v4659 = vpack.c.b16 %v4430, %v4429
        %v4660 = vpack.c.b16 %v4432, %v4431
        %v4661 = vpack.c.b16 %v4434, %v4433
        %v4662 = vpack.c.b16 %v4436, %v4435
        %v4663 = vpack.c.b16 %v4438, %v4437
        %v4664 = vpack.c.b16 %v4440, %v4439
        %v4665 = vpack.c.b16 %v4442, %v4441
        %v4666 = vpack.c.b16 %v4444, %v4443
        %v4667 = vpack.c.b16 %v4446, %v4445
        %v4668 = vpack.c.b16 %v4448, %v4447
        %v4669 = vpack.c.b16 %v4450, %v4449
        %v4670 = vpack.c.b16 %v4452, %v4451
        %v4671 = vpack.c.b16 %v4454, %v4453
        %v4672 = vpack.c.b16 %v4456, %v4455
        %v4673 = vpack.c.b16 %v4458, %v4457
        %v4674 = vpack.c.b16 %v4460, %v4459
        %v4675 = vpack.c.b16 %v4462, %v4461
        %v4676 = vpack.c.b16 %v4464, %v4463
        %v4677 = vpack.c.b16 %v4466, %v4465
        %v4678 = vpack.c.b16 %v4468, %v4467
        %v4679 = vpack.c.b16 %v4470, %v4469
        %v4680 = vpack.c.b16 %v4472, %v4471
        %v4681 = vpack.c.b16 %v4474, %v4473
        %v4682 = vpack.c.b16 %v4476, %v4475
        %v4683 = vpack.c.b16 %v4478, %v4477
        %v4684 = vpack.c.b16 %v4480, %v4479
        %v4685 = vpack.c.b16 %v4482, %v4481
        %v4686 = vpack.c.b16 %v4484, %v4483
        %v4687 = vpack.c.b16 %v4486, %v4485
        %v4688 = vpack.c.b16 %v4488, %v4487
        %v4689 = vpack.c.b16 %v4490, %v4489
        %v4690 = vpack.c.b16 %v4492, %v4491
        %v4691 = vpack.c.b16 %v4494, %v4493
        %v4692 = vpack.c.b16 %v4496, %v4495
        %v4693 = vpack.c.b16 %v4498, %v4497
        %v4694 = vpack.c.b16 %v4500, %v4499
        %v4695 = vpack.c.b16 %v4502, %v4501
        %v4696 = vpack.c.b16 %v4504, %v4503
        %v4697 = vpack.c.b16 %v4506, %v4505
        %v4698 = vpack.c.b16 %v4508, %v4507
        %v4699 = vpack.c.b16 %v4510, %v4509
        %v4700 = vpack.c.b16 %v4512, %v4511
        %v4701 = vpack.c.b16 %v4514, %v4513
        %v4702 = vpack.c.b16 %v4516, %v4515
        %v4703 = vpack.c.b16 %v4518, %v4517
        %v4704 = vpack.c.b16 %v4520, %v4519
        %v4705 = vpack.c.b16 %v4522, %v4521
        %v4706 = vpack.c.b16 %v4524, %v4523
        %v4707 = vpack.c.b16 %v4526, %v4525
        %v4708 = vpack.c.b16 %v4528, %v4527
        %v4709 = vpack.c.b16 %v4530, %v4529
        %v4710 = vpack.c.b16 %v4532, %v4531
        %v4711 = vpack.c.b16 %v4534, %v4533
        %v4712 = vpack.c.b16 %v4536, %v4535
        %v4713 = vpack.c.b16 %v4538, %v4537
        %v4714 = vpack.c.b16 %v4540, %v4539
        %v4715 = vpack.c.b16 %v4542, %v4541
        %v4716 = vpack.c.b16 %v4544, %v4543
        %v4717 = vpack.c.b16 %v4546, %v4545
        %v4718 = vpack.c.b16 %v4548, %v4547
        %v4719 = vpack.c.b16 %v4550, %v4549
        %v4720 = vpack.c.b16 %v4552, %v4551
        %v4721 = vpack.c.b16 %v4554, %v4553
        %v4722 = vpack.c.b16 %v4556, %v4555
        %v4723 = vpack.c.b16 %v4558, %v4557
        %v4724 = vpack.c.b16 %v4560, %v4559
        %v4725 = vpack.c.b16 %v4562, %v4561
        %v4726 = vpack.c.b16 %v4564, %v4563
        %v4727 = vpack.c.b16 %v4566, %v4565
        %v4728 = vpack.c.b16 %v4568, %v4567
        %v4729 = vpack.c.b16 %v4570, %v4569
        %v4730 = vpack.c.b16 %v4572, %v4571
        %v4731 = vpack.c.b16 %v4574, %v4573
        %v4732 = vpack.c.b16 %v4576, %v4575
        %v4733 = vpack.c.b16 %v4578, %v4577
        %v4734 = vpack.c.b16 %v4580, %v4579
        %v4735 = vpack.c.b16 %v4582, %v4581
        %v4736 = vpack.c.b16 %v4584, %v4583
        %v4737 = vpack.c.b16 %v4586, %v4585
        %v4738 = vpack.c.b16 %v4588, %v4587
        %v4739 = vpack.c.b16 %v4590, %v4589
        %v4740 = vpack.c.b16 %v4592, %v4591
        %v4741 = vpack.c.b16 %v4594, %v4593
        %v4742 = vpack.c.b16 %v4596, %v4595
        %v4743 = vpack.c.b16 %v4598, %v4597
        %v4744 = vpack.c.b16 %v4600, %v4599
        %v4745 = vpack.c.b16 %v4602, %v4601
        %v4746 = vpack.c.b16 %v4604, %v4603
        %v4747 = vpack.c.b16 %v4606, %v4605
        %v4748 = vpack.c.b16 %v4608, %v4607
        %v4749 = vpack.c.b16 %v4610, %v4609
        %v4750 = vpack.c.b16 %v4612, %v4611
        %v4751 = vpack.c.b16 %v4614, %v4613
        %v4752 = vpack.c.b16 %v4616, %v4615
        %v4753 = vpack.c.b16 %v4618, %v4617
        %v4754 = vpack.c.b16 %v4620, %v4619
        %v4755 = vpack.c.b16 %v4622, %v4621
        %v4756 = vpack.c.b16 %v4624, %v4623
        %v4757 = vpack.c.b16 %v4626, %v4625
        %v4758 = vpack.c.b16 %v4628, %v4627
        %v4759 = vpack.c.b16 %v4630, %v4629
        %v4760 = vpack.c.b16 %v4632, %v4631
        %4889 = vmatpush.bf16.msra.mxu0 %v4640
        %4890 = vmatpush.bf16.msra.mxu0 %v4639
        %4891 = vmatpush.bf16.msra.mxu0 %v4638
        %4892 = vmatpush.bf16.msra.mxu0 %v4637
        %4893 = vmatpush.bf16.msra.mxu0 %v4636
        %4894 = vmatpush.bf16.msra.mxu0 %v4635
        %4895 = vmatpush.bf16.msra.mxu0 %v4634
        %4896 = vmatpush.bf16.msra.mxu0 %v4633
        %4897 = vmatmul.bf16.gmra.mxu0 %v3843
        %v4898 = vpop.f32.mrf.mxu0
        %v4899 = vadd.f32 %v4119, %v4898
        %v4900 = vpop.f32.mrf.mxu0
        %v4901 = vadd.f32 %v4119, %v4900
        %4902 = vdwg.mxu0
        %4903 = vmatpush.bf16.msra.mxu0 %v4648
        %4904 = vmatpush.bf16.msra.mxu0 %v4647
        %4905 = vmatpush.bf16.msra.mxu0 %v4646
        %4906 = vmatpush.bf16.msra.mxu0 %v4645
        %4907 = vmatpush.bf16.msra.mxu0 %v4644
        %4908 = vmatpush.bf16.msra.mxu0 %v4643
        %4909 = vmatpush.bf16.msra.mxu0 %v4642
        %4910 = vmatpush.bf16.msra.mxu0 %v4641
        %4911 = vmatmul.bf16.gmra.mxu0 %v3844
        %v4912 = vpop.f32.mrf.mxu0
        %v4913 = vadd.f32 %v4899, %v4912
        %v4914 = vpop.f32.mrf.mxu0
        %v4915 = vadd.f32 %v4901, %v4914
        %4916 = vdwg.mxu0
        %4917 = vmatpush.bf16.msra.mxu0 %v4656
        %4918 = vmatpush.bf16.msra.mxu0 %v4655
        %4919 = vmatpush.bf16.msra.mxu0 %v4654
        %4920 = vmatpush.bf16.msra.mxu0 %v4653
        %4921 = vmatpush.bf16.msra.mxu0 %v4652
        %4922 = vmatpush.bf16.msra.mxu0 %v4651
        %4923 = vmatpush.bf16.msra.mxu0 %v4650
        %4924 = vmatpush.bf16.msra.mxu0 %v4649
        %4925 = vmatmul.bf16.gmra.mxu0 %v3845
        %v4926 = vpop.f32.mrf.mxu0
        %v4927 = vadd.f32 %v4913, %v4926
        %v4928 = vpop.f32.mrf.mxu0
        %v4929 = vadd.f32 %v4915, %v4928
        %4930 = vdwg.mxu0
        %4931 = vmatpush.bf16.msra.mxu0 %v4664
        %4932 = vmatpush.bf16.msra.mxu0 %v4663
        %4933 = vmatpush.bf16.msra.mxu0 %v4662
        %4934 = vmatpush.bf16.msra.mxu0 %v4661
        %4935 = vmatpush.bf16.msra.mxu0 %v4660
        %4936 = vmatpush.bf16.msra.mxu0 %v4659
        %4937 = vmatpush.bf16.msra.mxu0 %v4658
        %4938 = vmatpush.bf16.msra.mxu0 %v4657
        %4939 = vmatmul.bf16.gmra.mxu0 %v3846
        %v4940 = vpop.f32.mrf.mxu0
        %v4941 = vadd.f32 %v4927, %v4940
        %v4942 = vpop.f32.mrf.mxu0
        %v4943 = vadd.f32 %v4929, %v4942
        %4944 = vdwg.mxu0
        %4945 = vmatpush.bf16.msra.mxu0 %v4672
        %4946 = vmatpush.bf16.msra.mxu0 %v4671
        %4947 = vmatpush.bf16.msra.mxu0 %v4670
        %4948 = vmatpush.bf16.msra.mxu0 %v4669
        %4949 = vmatpush.bf16.msra.mxu0 %v4668
        %4950 = vmatpush.bf16.msra.mxu0 %v4667
        %4951 = vmatpush.bf16.msra.mxu0 %v4666
        %4952 = vmatpush.bf16.msra.mxu0 %v4665
        %4953 = vmatmul.bf16.gmra.mxu0 %v3847
        %v4954 = vpop.f32.mrf.mxu0
        %v4955 = vadd.f32 %v4941, %v4954
        %v4956 = vpop.f32.mrf.mxu0
        %v4957 = vadd.f32 %v4943, %v4956
        %4958 = vdwg.mxu0
        %4959 = vmatpush.bf16.msra.mxu0 %v4680
        %4960 = vmatpush.bf16.msra.mxu0 %v4679
        %4961 = vmatpush.bf16.msra.mxu0 %v4678
        %4962 = vmatpush.bf16.msra.mxu0 %v4677
        %4963 = vmatpush.bf16.msra.mxu0 %v4676
        %4964 = vmatpush.bf16.msra.mxu0 %v4675
        %4965 = vmatpush.bf16.msra.mxu0 %v4674
        %4966 = vmatpush.bf16.msra.mxu0 %v4673
        %4967 = vmatmul.bf16.gmra.mxu0 %v3848
        %v4968 = vpop.f32.mrf.mxu0
        %v4969 = vadd.f32 %v4955, %v4968
        %v4970 = vpop.f32.mrf.mxu0
        %v4971 = vadd.f32 %v4957, %v4970
        %4972 = vdwg.mxu0
        %4973 = vmatpush.bf16.msra.mxu0 %v4688
        %4974 = vmatpush.bf16.msra.mxu0 %v4687
        %4975 = vmatpush.bf16.msra.mxu0 %v4686
        %4976 = vmatpush.bf16.msra.mxu0 %v4685
        %4977 = vmatpush.bf16.msra.mxu0 %v4684
        %4978 = vmatpush.bf16.msra.mxu0 %v4683
        %4979 = vmatpush.bf16.msra.mxu0 %v4682
        %4980 = vmatpush.bf16.msra.mxu0 %v4681
        %4981 = vmatmul.bf16.gmra.mxu0 %v3849
        %v4982 = vpop.f32.mrf.mxu0
        %v4983 = vadd.f32 %v4969, %v4982
        %v4984 = vpop.f32.mrf.mxu0
        %v4985 = vadd.f32 %v4971, %v4984
        %4986 = vdwg.mxu0
        %4987 = vmatpush.bf16.msra.mxu0 %v4696
        %4988 = vmatpush.bf16.msra.mxu0 %v4695
        %4989 = vmatpush.bf16.msra.mxu0 %v4694
        %4990 = vmatpush.bf16.msra.mxu0 %v4693
        %4991 = vmatpush.bf16.msra.mxu0 %v4692
        %4992 = vmatpush.bf16.msra.mxu0 %v4691
        %4993 = vmatpush.bf16.msra.mxu0 %v4690
        %4994 = vmatpush.bf16.msra.mxu0 %v4689
        %4995 = vmatmul.bf16.gmra.mxu0 %v3850
        %v4996 = vpop.f32.mrf.mxu0
        %v4997 = vadd.f32 %v4983, %v4996
        %v4998 = vpop.f32.mrf.mxu0
        %v4999 = vadd.f32 %v4985, %v4998
        %5000 = vdwg.mxu0
        %5001 = vmatpush.bf16.msra.mxu0 %v4704
        %5002 = vmatpush.bf16.msra.mxu0 %v4703
        %5003 = vmatpush.bf16.msra.mxu0 %v4702
        %5004 = vmatpush.bf16.msra.mxu0 %v4701
        %5005 = vmatpush.bf16.msra.mxu0 %v4700
        %5006 = vmatpush.bf16.msra.mxu0 %v4699
        %5007 = vmatpush.bf16.msra.mxu0 %v4698
        %5008 = vmatpush.bf16.msra.mxu0 %v4697
        %5009 = vmatmul.bf16.gmra.mxu0 %v3851
        %v5010 = vpop.f32.mrf.mxu0
        %v5011 = vadd.f32 %v4997, %v5010
        %v5012 = vpop.f32.mrf.mxu0
        %v5013 = vadd.f32 %v4999, %v5012
        %5014 = vdwg.mxu0
        %5015 = vmatpush.bf16.msra.mxu0 %v4712
        %5016 = vmatpush.bf16.msra.mxu0 %v4711
        %5017 = vmatpush.bf16.msra.mxu0 %v4710
        %5018 = vmatpush.bf16.msra.mxu0 %v4709
        %5019 = vmatpush.bf16.msra.mxu0 %v4708
        %5020 = vmatpush.bf16.msra.mxu0 %v4707
        %5021 = vmatpush.bf16.msra.mxu0 %v4706
        %5022 = vmatpush.bf16.msra.mxu0 %v4705
        %5023 = vmatmul.bf16.gmra.mxu0 %v3852
        %v5024 = vpop.f32.mrf.mxu0
        %v5025 = vadd.f32 %v5011, %v5024
        %v5026 = vpop.f32.mrf.mxu0
        %v5027 = vadd.f32 %v5013, %v5026
        %5028 = vdwg.mxu0
        %5029 = vmatpush.bf16.msra.mxu0 %v4720
        %5030 = vmatpush.bf16.msra.mxu0 %v4719
        %5031 = vmatpush.bf16.msra.mxu0 %v4718
        %5032 = vmatpush.bf16.msra.mxu0 %v4717
        %5033 = vmatpush.bf16.msra.mxu0 %v4716
        %5034 = vmatpush.bf16.msra.mxu0 %v4715
        %5035 = vmatpush.bf16.msra.mxu0 %v4714
        %5036 = vmatpush.bf16.msra.mxu0 %v4713
        %5037 = vmatmul.bf16.gmra.mxu0 %v3853
        %v5038 = vpop.f32.mrf.mxu0
        %v5039 = vadd.f32 %v5025, %v5038
        %v5040 = vpop.f32.mrf.mxu0
        %v5041 = vadd.f32 %v5027, %v5040
        %5042 = vdwg.mxu0
        %5043 = vmatpush.bf16.msra.mxu0 %v4728
        %5044 = vmatpush.bf16.msra.mxu0 %v4727
        %5045 = vmatpush.bf16.msra.mxu0 %v4726
        %5046 = vmatpush.bf16.msra.mxu0 %v4725
        %5047 = vmatpush.bf16.msra.mxu0 %v4724
        %5048 = vmatpush.bf16.msra.mxu0 %v4723
        %5049 = vmatpush.bf16.msra.mxu0 %v4722
        %5050 = vmatpush.bf16.msra.mxu0 %v4721
        %5051 = vmatmul.bf16.gmra.mxu0 %v3854
        %v5052 = vpop.f32.mrf.mxu0
        %v5053 = vadd.f32 %v5039, %v5052
        %v5054 = vpop.f32.mrf.mxu0
        %v5055 = vadd.f32 %v5041, %v5054
        %5056 = vdwg.mxu0
        %5057 = vmatpush.bf16.msra.mxu0 %v4736
        %5058 = vmatpush.bf16.msra.mxu0 %v4735
        %5059 = vmatpush.bf16.msra.mxu0 %v4734
        %5060 = vmatpush.bf16.msra.mxu0 %v4733
        %5061 = vmatpush.bf16.msra.mxu0 %v4732
        %5062 = vmatpush.bf16.msra.mxu0 %v4731
        %5063 = vmatpush.bf16.msra.mxu0 %v4730
        %5064 = vmatpush.bf16.msra.mxu0 %v4729
        %5065 = vmatmul.bf16.gmra.mxu0 %v3855
        %v5066 = vpop.f32.mrf.mxu0
        %v5067 = vadd.f32 %v5053, %v5066
        %v5068 = vpop.f32.mrf.mxu0
        %v5069 = vadd.f32 %v5055, %v5068
        %5070 = vdwg.mxu0
        %5071 = vmatpush.bf16.msra.mxu0 %v4744
        %5072 = vmatpush.bf16.msra.mxu0 %v4743
        %5073 = vmatpush.bf16.msra.mxu0 %v4742
        %5074 = vmatpush.bf16.msra.mxu0 %v4741
        %5075 = vmatpush.bf16.msra.mxu0 %v4740
        %5076 = vmatpush.bf16.msra.mxu0 %v4739
        %5077 = vmatpush.bf16.msra.mxu0 %v4738
        %5078 = vmatpush.bf16.msra.mxu0 %v4737
        %5079 = vmatmul.bf16.gmra.mxu0 %v3856
        %v5080 = vpop.f32.mrf.mxu0
        %v5081 = vadd.f32 %v5067, %v5080
        %v5082 = vpop.f32.mrf.mxu0
        %v5083 = vadd.f32 %v5069, %v5082
        %5084 = vdwg.mxu0
        %5085 = vmatpush.bf16.msra.mxu0 %v4752
        %5086 = vmatpush.bf16.msra.mxu0 %v4751
        %5087 = vmatpush.bf16.msra.mxu0 %v4750
        %5088 = vmatpush.bf16.msra.mxu0 %v4749
        %5089 = vmatpush.bf16.msra.mxu0 %v4748
        %5090 = vmatpush.bf16.msra.mxu0 %v4747
        %5091 = vmatpush.bf16.msra.mxu0 %v4746
        %5092 = vmatpush.bf16.msra.mxu0 %v4745
        %5093 = vmatmul.bf16.gmra.mxu0 %v3857
        %v5094 = vpop.f32.mrf.mxu0
        %v5095 = vadd.f32 %v5081, %v5094
        %v5096 = vpop.f32.mrf.mxu0
        %v5097 = vadd.f32 %v5083, %v5096
        %5098 = vdwg.mxu0
        %5099 = vmatpush.bf16.msra.mxu0 %v4760
        %5100 = vmatpush.bf16.msra.mxu0 %v4759
        %5101 = vmatpush.bf16.msra.mxu0 %v4758
        %5102 = vmatpush.bf16.msra.mxu0 %v4757
        %5103 = vmatpush.bf16.msra.mxu0 %v4756
        %5104 = vmatpush.bf16.msra.mxu0 %v4755
        %5105 = vmatpush.bf16.msra.mxu0 %v4754
        %5106 = vmatpush.bf16.msra.mxu0 %v4753
        %5107 = vmatmul.bf16.gmra.mxu0 %v3858
        %v5108 = vpop.f32.mrf.mxu0
        %v5109 = vadd.f32 %v5095, %v5108
        %v5110 = vpop.f32.mrf.mxu0
        %v5111 = vadd.f32 %v5097, %v5110
        %5112 = vdwg.mxu0
        %v5113 = vadd.f32 %v3351, %v5109
        %v5114 = vadd.f32 %v3352, %v5111
        %s5115 = scalar_lea.vmem %s15, 1
        %v5116 = vld [vmem:[%s5115] sm:$0x1]
        %s5117 = scalar_lea.vmem %s16, 1
        %v5118 = vld [vmem:[%s5117] sm:$0x1]
        %v5119 = vsel %vm765, %v5113, 0.0
        %5120 = vadd.xlane.f32.xlu0 %v5119
        %v5121 = vpop.xlane.xlu0 %5120
        %v5122 = vsel %vm765, %v5114, 0.0
        %5123 = vadd.xlane.f32.xlu0 %v5122
        %v5124 = vpop.xlane.xlu0 %5123
        %v5125 = vmul.f32 %v5121, %v1096
        %v5126 = vmul.f32 %v5124, %v1096
        %v5127 = vsub.f32 %v5113, %v5125
        %v5128 = vsub.f32 %v5114, %v5126
        %v5129 = vmul.f32 %v5127, %v5127
        %v5130 = vmul.f32 %v5128, %v5128
        %v5131 = vsel %vm765, %v5129, 0.0
        %5132 = vadd.xlane.f32.xlu0 %v5131
        %v5133 = vpop.xlane.xlu0 %5132
        %v5134 = vsel %vm765, %v5130, 0.0
        %5135 = vadd.xlane.f32.xlu0 %v5134
        %v5136 = vpop.xlane.xlu0 %5135
        %v5137 = vmul.f32 %v5133, %v1096
        %v5138 = vmul.f32 %v5136, %v1096
        %v5139 = vadd.f32 %v5137, 1e-05
        %v5140 = vadd.f32 %v5138, 1e-05
        %v5141 = vrsqrt.pop %v5139
        %v5142 = vmul.f32 %v5141, %v5139
        %v5143 = vmul.f32 %v5142, %v5141
        %v5144 = vmul.f32 0.5, %v5143
        %v5145 = vsub.f32 1.5, %v5144
        %v5146 = vmul.f32 %v5141, %v5145
        %vm5147 = vweird.f32 %v5139
        %vm5148 = vweird.f32 %v5141
        %vm5149 = vmor %vm5147, %vm5148
        %v5150 = vsel %vm5149, %v5141, %v5146
        %v5151 = vrsqrt.pop %v5140
        %v5152 = vmul.f32 %v5151, %v5140
        %v5153 = vmul.f32 %v5152, %v5151
        %v5154 = vmul.f32 0.5, %v5153
        %v5155 = vsub.f32 1.5, %v5154
        %v5156 = vmul.f32 %v5151, %v5155
        %vm5157 = vweird.f32 %v5140
        %vm5158 = vweird.f32 %v5151
        %vm5159 = vmor %vm5157, %vm5158
        %v5160 = vsel %vm5159, %v5151, %v5156
        %v5161 = vmul.f32 %v5127, %v5150
        %v5162 = vmul.f32 %v5128, %v5160
        %v5164 = vperm.slane %v5116, 0
        %v5166 = vmul.f32 %v5161, %v5164
        %v5167 = vmul.f32 %v5162, %v5164
        %v5169 = vperm.slane %v5118, 0
        %v5171 = vadd.f32 %v5166, %v5169
        %v5172 = vadd.f32 %v5167, %v5169
        %v5173 = vpack.c.bf16 %v5172, %v5171
        %v5174 = vld [vmem:[%s17] sm:$0xf]
        %v5175 = vld [vmem:[%s17 + $0x4] sm:$0xf]
        %v5176 = vld [vmem:[%s17 + $0x8] sm:$0xf]
        %v5177 = vld [vmem:[%s17 + $0xc] sm:$0xf]
        %v5178 = vld [vmem:[%s18] sm:$0x1]
        %v5180 = vperm.slane %v5178, 0
        %v5186 = vunpack.c.l.b16 %v5174
        %v5187 = vunpack.c.l.b16 %v5175
        %v5188 = vunpack.c.l.b16 %v5176
        %v5189 = vunpack.c.l.b16 %v5177
        %v5190 = vpack.c.b16 %v5187, %v5186
        %v5191 = vpack.c.b16 %v5189, %v5188
        %v5195 = vsel %vm765, %v5173, 0
        %5197 = vmatpush.bf16.msra.mxu0 0
        %5198 = vmatpush.bf16.msra.mxu0 0
        %5199 = vmatpush.bf16.msra.mxu0 0
        %5200 = vmatpush.bf16.msra.mxu0 0
        %5201 = vmatpush.bf16.msra.mxu0 0
        %5202 = vmatpush.bf16.msra.mxu0 0
        %5203 = vmatpush.bf16.msra.mxu0 %v5191
        %5204 = vmatpush.bf16.msra.mxu0 %v5190
        %5205 = vmatmul.bf16.gmra.mxu0 %v5195
        %v5206 = vpop.f32.mrf.mxu0
        %v5207 = vadd.f32 %v5180, %v5206
        %v5208 = vpop.f32.mrf.mxu0
        %v5209 = vadd.f32 %v5180, %v5208
        %5210 = vdwg.mxu0
        %v5211 = vld [vmem:[%s680] sm:$0x3]
        %v5212 = vpack.c.bf16 %v5211, %v5211
        %v5213 = vld [vmem:[%s19] sm:$0xf]
        %v5214 = vld [vmem:[%s19 + $0x4] sm:$0xf]
        %v5215 = vld [vmem:[%s20] sm:$0x1]
        %v5217 = vperm.slane %v5215, 0
        %v5221 = vunpack.c.l.b16 %v5213
        %v5222 = vunpack.c.l.b16 %v5214
        %v5223 = vpack.c.b16 %v5222, %v5221
        %v5226 = vsel %vm891, %v5212, 0
        %5228 = vmatpush.bf16.msra.mxu0 0
        %5229 = vmatpush.bf16.msra.mxu0 0
        %5230 = vmatpush.bf16.msra.mxu0 0
        %5231 = vmatpush.bf16.msra.mxu0 0
        %5232 = vmatpush.bf16.msra.mxu0 0
        %5233 = vmatpush.bf16.msra.mxu0 0
        %5234 = vmatpush.bf16.msra.mxu0 0
        %5235 = vmatpush.bf16.msra.mxu0 %v5223
        %5236 = vmatmul.bf16.gmra.mxu0 %v5226
        %v5237 = vpop.f32.mrf.mxu0
        %v5238 = vadd.f32 %v5217, %v5237
        %v5239 = vpop.f32.mrf.mxu0
        %5240 = vdwg.mxu0
        %vm5241 = vcmask 523264
        %v5243 = vsel %vm5241, %v5238, 0
        %v5246 = vsel %vm5241, %v5207, 0
        %v5249 = vsel %vm5241, %v5209, 0
        %5251 = vmatpush.xpose.msra.mxu0 0.0
        %5252 = vmatpush.xpose.msra.mxu0 0.0
        %5253 = vmatpush.xpose.msra.mxu0 0.0
        %5254 = vmatpush.xpose.msra.mxu0 0.0
        %5255 = vmatpush.xpose.msra.mxu0 0.0
        %5256 = vmatpush.xpose.msra.mxu0 0.0
        %5257 = vmatpush.xpose.msra.mxu0 0.0
        %5258 = vmatpush.xpose.msra.mxu0 0.0
        %5259 = vmatpush.xpose.msra.mxu0 0.0
        %5260 = vmatpush.xpose.msra.mxu0 0.0
        %5261 = vmatpush.xpose.msra.mxu0 0.0
        %5262 = vmatpush.xpose.msra.mxu0 0.0
        %5263 = vmatpush.xpose.msra.mxu0 0.0
        %5264 = vmatpush.xpose.msra.mxu0 0.0
        %5265 = vmatpush.xpose.msra.mxu0 %v5249
        %5266 = vmatpush.xpose.msra.mxu0 %v5246
        %5267 = vmatmul.f32.gmra.mxu0 %v5243
        %v5268 = vpop.f32.mrf.mxu0
        %v5269 = vadd.f32 0.0, %v5268
        %5270 = vdwg.mxu0
        %v5271 = vmul.u32 %v712, 8
        %vm5272 = vcmp.ge.s32.totalorder %v686, %v5271
        %v5273 = vadd.s32 %v712, 1
        %v5274 = vmul.u32 %v5273, 8
        %vm5275 = vcmp.lt.s32.totalorder %v686, %v5274
        %vm5276 = vmand %vm5272, %vm5275
        %v5277 = vsel %vm5276, %v5269, 0.0
        %vm5278 = vcmask 123904
        %v5279 = vsel %vm5278, %v5277, 0.0
        %v5280 = vrot.slane %v5279, 4
        %v5281 = vadd.f32 %v5279, %v5280
        %v5282 = vrot.slane %v5281, 2
        %v5283 = vadd.f32 %v5281, %v5282
        %v5284 = vrot.slane %v5283, 1
        %v5285 = vadd.f32 %v5283, %v5284
        %v5286 = vld [vmem:[%s676] sm:$0x1]
        %s5287 = sld [smem:[#allocation4]]
        %s5288 = sld [smem:[#allocation4 + $0x1]]
        %s5289 = sld [smem:[#allocation4 + $0x2]]
        %s5290 = sld [smem:[#allocation4 + $0x3]]
        %v5291 = vstv %s5287
        %v5292 = vmul.f32 %v5291, %v5285
        %v5293 = vstv %s5288
        %v5294 = vadd.f32 %v5292, %v5293
        %v5295 = vstv %s5289
        %v5296 = vmul.f32 %v5295, %v5286
        %v5297 = vstv %s5290
        %v5298 = vadd.f32 %v5296, %v5297
        %v5299 = vadd.f32 %v5294, %v5298
        %vm5300 = vcmask 122880
        %5301 = vst.msk [vmem:[%s668] sm:$0x1] %vm5300, %v5299
        %s5302 = sand.u32 %s487, 1
        %s5303 = scalar_lea.sflag [#allocation5], %s5302
        %s5304 = sand.u32 %s487, 1
        %s5305 = scalar_lea.vmem [#allocation7], %s5304
        // Predicated region
        $region105: #{tpu_custom_call.1} parent=99 // pred_check
          %p5306 = pneg %p497
        $region106: #{tpu_custom_call.1} parent=99 // pred_check_branch
          %5308 = sbr.rel (%p5306) target = $region108
        $region107: #{tpu_custom_call.1} parent=99 // pred_region
          %5310 = vsyncadd %s5303, 0
          %s5311 = scalar_lea.hbm %s21, %s44
          %s5313 = sshll.u32 %s5305, 4
          %s5314 = int_to_ptr.vmem [resolvable:$true] %s5313
          %s5315 = sshll.u32 %s5311, 4
          %s5316 = int_to_ptr.hbm [resolvable:$true] %s5315
          %5318 = dma.vmem_to_hbm [thread:$0]  %s5314, 16, %s5316, %s5303
        $region108: #{tpu_custom_call.1} parent=99 // pred_fallthru
          _
      $region100: #{tpu_custom_call.1} parent=5 // pred_fallthru
        _
      %p5319 = scmp.le.s32.totalorder 2, %s39
      // Predicated region
      $region109: #{tpu_custom_call.1} parent=5 // pred_check
        %p5320 = pneg %p5319
      $region110: #{tpu_custom_call.1} parent=5 // pred_check_branch
        %5322 = sbr.rel (%p5320) target = $region112
      $region111: #{tpu_custom_call.1} parent=5 // pred_region
        %s5323 = ssub.s32 %s39, 2
        // Predicated region
        $region113: #{tpu_custom_call.1} parent=111 // pred_check
          %p5324 = pneg %p503
        $region114: #{tpu_custom_call.1} parent=111 // pred_check_branch
          %5326 = sbr.rel (%p5324) target = $region116
        $region115: #{tpu_custom_call.1} parent=111 // pred_region
          %s5327 = sand.u32 %s488, 1
          %s5328 = scalar_lea.sflag [#allocation5], %s5327
          %s5329 = sand.u32 %s488, 1
          %s5330 = scalar_lea.vmem [#allocation7], %s5329
          %5332 = dma.done %s5328, 16
        $region116: #{tpu_custom_call.1} parent=111 // pred_fallthru
          _
      $region112: #{tpu_custom_call.1} parent=5 // pred_fallthru
        _
    $region6: #{tpu_custom_call.1} parent=1 // loop_footer
      %s43 = sadd.s32 1, %s39
    $region7: #{tpu_custom_call.1} parent=1 // loop_footer_branch
      %38 = sbr.rel target = $region3
    $region8: #{tpu_custom_call.1} parent=1 // loop_exit
      _
    %5333 = vsyncpa [#allocation5], 1
    %s5334 = scalar_lea.sflag [#allocation5], 1
    %5335 = vsyncpa %s5334, 1
    %5336 = vsyncpa [#allocation6], 1
    %s5337 = scalar_lea.sflag [#allocation6], 1
    %5338 = vsyncpa %s5337, 1

</llo_original>
